<compile_context>
chip_gen: v7x
topology: tpu7x:2x2x1
jax: 0.10.0
libtpu: 0.0.40
codegen_flags: <defaults>
</compile_context>

<pallas_src>
import math

import jax
import jax.numpy as jnp
from jax.experimental import pallas as pl
from jax.experimental.pallas import tpu as pltpu

# ----- small synthetic hyper-parameters (consistent with the module) -----
NUM_IMAGES = 8          # number of images -> N tokens after CLIP
IMG_C, IMG_HW = 3, 16   # NCHW pixel input
D_RNN = 32              # args.d_rnn == hidden dim of the encoder
NUM_HEADS = 4           # EncoderLayer(h_dim, 4, 512, attdp)
D_FF = 64               # FFN width (512 in the paper, shrunk for the demo)
GNN_LAYERS = 2          # args.gnnl
D_MLP = 32              # args.d_mlp (must equal D_RNN for shapes to match)
NUM_CLASSES = 4         # args.num_classes
LANES = 128             # lane-padded width for the classifier output

assert D_MLP == D_RNN
assert D_FF >= D_RNN
assert D_RNN % NUM_HEADS == 0

_LN_EPS = 1e-6   # annotated-transformer LayerNorm eps (nn.LayerNorm default 1e-5)
_L2_EPS = 1e-12  # F.normalize-style eps; avoids Inf/NaN on an all-zero row


# ----------------------------- fused Pallas kernel --------------------------

def _layernorm(v, g, b, eps=_LN_EPS):
    mu = jnp.mean(v, axis=-1, keepdims=True)
    var = jnp.mean((v - mu) ** 2, axis=-1, keepdims=True)
    return (v - mu) * jax.lax.rsqrt(var + eps) * g + b


def fused_image_encoder_kernel(
        pix_ref, clipw_ref,
        wqkv_ref, bqkv_ref, wo_ref, wff1_ref, wff2_ref, lvec_ref,
        wpair_ref, wcls_ref, misc_ref,
        out_ref):
    """Whole pipeline in one VMEM-resident kernel (no grid).

    The image mask in Image_encoder.encode is all-ones -> attention masking
    is a no-op and omitted.  Dropouts are p=0 at eval -> identity.  Stacked
    layer weights carry a leading (L, ...) axis; `ref[l]` with static l is a
    zero-cost slice.
    """
    f32, bf16 = jnp.float32, jnp.bfloat16

    n = pix_ref.shape[0]
    num_layers = wqkv_ref.shape[0]
    num_heads = wqkv_ref.shape[1] // 3
    d = clipw_ref.shape[1]
    d_mlp = wpair_ref.shape[2]
    d_k = d // num_heads
    scale = 1.0 / math.sqrt(d_k)

    # ---- 1. CLIP stand-in projection, folded into the kernel ---------------
    feats = jnp.dot(pix_ref[...], clipw_ref[...],
                    preferred_element_type=f32)                       # (N, D)

    # ---- 2. feature L2 normalization (rsqrt -> EUP), with eps --------------
    x = feats * jax.lax.rsqrt(
        jnp.sum(feats * feats, axis=-1, keepdims=True) + _L2_EPS)

    # ---- 3. pre-LN transformer encoder layers (static unroll over L) -------
    for l in range(num_layers):
        b1  = lvec_ref[l, 0:1, :]        # (1, D_FF)
        bo  = lvec_ref[l, 1:2, :d]
        b2  = lvec_ref[l, 2:3, :d]
        g1  = lvec_ref[l, 3:4, :d]
        be1 = lvec_ref[l, 4:5, :d]
        g2  = lvec_ref[l, 5:6, :d]
        be2 = lvec_ref[l, 6:7, :d]

        # -- sublayer 1: multi-head self-attention ---------------------------
        xn = _layernorm(x, g1, be1).astype(bf16)
        # Fused head-major QKV: one batched matmul against the (3H, D, d_k)
        # slab yields q/k/v already in (head, token, d_k) layout; the
        # leading-axis splits below are free (no lane slicing / stack /
        # concat relayouts).
        xn_b = jnp.broadcast_to(xn, (3 * num_heads, n, d))
        qkv = (jnp.einsum('gnd,gde->gne', xn_b, wqkv_ref[l],
                          preferred_element_type=f32)
               + bqkv_ref[l]).astype(bf16)                       # (3H, N, dk)
        qh = qkv[:num_heads]
        kh = qkv[num_heads:2 * num_heads]
        vh = qkv[2 * num_heads:]

        s = jnp.einsum('hqe,hke->hqk', qh, kh,
                       preferred_element_type=f32) * scale       # (H, N, N)
        s = s - jnp.max(s, axis=-1, keepdims=True)
        p = jnp.exp(s)
        p = p * pl.reciprocal(jnp.sum(p, axis=-1, keepdims=True), approx=True)
        ctx = jnp.einsum('hqk,hke->hqe', p.astype(bf16), vh,
                         preferred_element_type=f32)             # (H, N, dk)
        # Output projection with head-major wo (H, dk, D): batched matmul +
        # cheap leading-axis sum instead of concat + (N, D) x (D, D) dot.
        attn = jnp.einsum('hqe,hed->hqd', ctx.astype(bf16), wo_ref[l],
                          preferred_element_type=f32).sum(axis=0)
        x = x + attn + bo

        # -- sublayer 2: position-wise feed-forward (dropout = 0 at eval) ----
        xn2 = _layernorm(x, g2, be2).astype(bf16)
        h1 = jnp.maximum(
            jnp.dot(xn2, wff1_ref[l], preferred_element_type=f32) + b1, 0.0)
        x = x + jnp.dot(h1.astype(bf16), wff2_ref[l],
                        preferred_element_type=f32) + b2

    # ---- 4. final encoder LayerNorm -----------------------------------------
    x = _layernorm(x, misc_ref[0:1, :d], misc_ref[1:2, :d])

    # ---- 5. pairwise-concat + Classifier, degridded -------------------------
    # cat(x_i, x_j) @ W_lin == x_i @ W_lin[:D] + x_j @ W_lin[D:].  h_a / h_b
    # come from one batched matmul; the expansion to all N*N (i, j) pairs is a
    # broadcast-add on the (idle) VPU -- no (N, N, 2D) cp_mem buffer, no
    # selection-matrix inputs / matmuls.
    xb = jnp.broadcast_to(x.astype(bf16), (2, n, d))
    hab = jnp.einsum('gnd,gdm->gnm', xb, wpair_ref[...],
                     preferred_element_type=f32)                  # (2, N, Dm)
    hidden = jnp.tanh(hab[0][:, None, :] + hab[1][None, :, :]
                      + misc_ref[2:3, :d_mlp])                    # (N, N, Dm)
    hidden = hidden.reshape(n * n, d_mlp).astype(bf16)
    # Classifier weight/bias are zero-padded to 128 output lanes -> unmasked
    # full-lane stores; the wrapper slices the first NUM_CLASSES columns.
    logits = jnp.dot(hidden, wcls_ref[...], preferred_element_type=f32)
    out_ref[...] = logits + misc_ref[3:4, :]                      # (N*N, 128)


# ----------------------------- host-side packing -----------------------------

def pack_params(params):
    """One-time host-side repack of the parameter tree into the few
    head-major / lane-padded slabs the fused kernel consumes (bf16 for all
    matmul weights, f32 for biases / LN vectors)."""
    bf16, f32 = jnp.bfloat16, jnp.float32
    d, h, dk = D_RNN, NUM_HEADS, D_RNN // NUM_HEADS
    dff, c = D_FF, NUM_CLASSES
    layers = params["layers"]

    def qkv_hm(lp):
        def w_hm(w):                       # (D, H*dk) -> (H, D, dk), head-major
            return jnp.transpose(w.reshape(d, h, dk), (1, 0, 2))
        return jnp.concatenate([w_hm(lp["wq"]), w_hm(lp["wk"]), w_hm(lp["wv"])], 0)

    def qkv_bias_hm(lp):
        def b_hm(b):                       # (1, H*dk) -> (H, 1, dk)
            return b.reshape(h, dk)[:, None, :]
        return jnp.concatenate([b_hm(lp["bq"]), b_hm(lp["bk"]), b_hm(lp["bv"])], 0)

    def vec_rows(lp):                      # (7, D_FF): b1 | bo b2 g1 be1 g2 be2
        def pad(v):
            return jnp.pad(v, ((0, 0), (0, dff - d)))
        return jnp.concatenate([lp["b1"], pad(lp["bo"]), pad(lp["b2"]),
                                pad(lp["g1"]), pad(lp["be1"]),
                                pad(lp["g2"]), pad(lp["be2"])], 0)

    def pad_lanes(v):                      # (1, k) -> (1, 128)
        return jnp.pad(v, ((0, 0), (0, LANES - v.shape[1])))

    return dict(
        clipw=params["clip_proj"].astype(bf16),                       # (P, D)
        wqkv=jnp.stack([qkv_hm(lp) for lp in layers]).astype(bf16),   # (L,3H,D,dk)
        bqkv=jnp.stack([qkv_bias_hm(lp) for lp in layers]).astype(f32),
        wo=jnp.stack([lp["wo"].reshape(h, dk, d)
                      for lp in layers]).astype(bf16),                # (L,H,dk,D)
        wff1=jnp.stack([lp["w1"] for lp in layers]).astype(bf16),     # (L,D,Dff)
        wff2=jnp.stack([lp["w2"] for lp in layers]).astype(bf16),     # (L,Dff,D)
        lvec=jnp.stack([vec_rows(lp) for lp in layers]).astype(f32),  # (L,7,Dff)
        wpair=jnp.stack([params["w_lin"][:d],
                         params["w_lin"][d:]]).astype(bf16),          # (2,D,Dm)
        wcls=jnp.pad(params["w_cls"],
                     ((0, 0), (0, LANES - c))).astype(bf16),          # (Dm,128)
        misc=jnp.concatenate([pad_lanes(params["ln_f_g"]),
                              pad_lanes(params["ln_f_b"]),
                              pad_lanes(params["b_lin"]),
                              pad_lanes(params["b_cls"])], 0).astype(f32),  # (4,128)
    )


# ----------------------------- wrapper ---------------------------------------

def image_encoder_forward(img, packed):
    n = img.shape[0]
    # TODO(synk): CLIPModel 'openai/clip-vit-large-patch14' image tower has no
    # clean Pallas translation; replaced by a deterministic flatten + linear
    # projection stand-in whose matmul is folded into the fused kernel.
    pixels = img.reshape(n, -1).astype(jnp.bfloat16)                 # (N, C*H*W)

    args = (pixels, packed["clipw"], packed["wqkv"], packed["bqkv"],
            packed["wo"], packed["wff1"], packed["wff2"], packed["lvec"],
            packed["wpair"], packed["wcls"], packed["misc"])

    vmem = pl.BlockSpec(memory_space=pltpu.MemorySpace.VMEM)
    out_pad = pl.pallas_call(
        fused_image_encoder_kernel,
        out_shape=jax.ShapeDtypeStruct((n * n, LANES), jnp.float32),
        in_specs=[vmem] * len(args),
        out_specs=vmem,
    )(*args)
    # kernel writes a lane-dense (N*N, 128) slab; slice + reshape outside.
    return out_pad[:, :NUM_CLASSES].reshape(n, n, NUM_CLASSES)


# ----------------------------- parameters ------------------------------------

def init_params(key):
    keys = iter(jax.random.split(key, 64))

    def dense(fan_in, fan_out):
        return (jax.random.normal(next(keys), (fan_in, fan_out), jnp.float32)
                * (1.0 / math.sqrt(fan_in)))

    def bias(m):
        return jnp.zeros((1, m), jnp.float32)

    params = {"clip_proj": dense(IMG_C * IMG_HW * IMG_HW, D_RNN)}
    layers = []
    for _ in range(GNN_LAYERS):
        layers.append(dict(
            wq=dense(D_RNN, D_RNN), bq=bias(D_RNN),
            wk=dense(D_RNN, D_RNN), bk=bias(D_RNN),
            wv=dense(D_RNN, D_RNN), bv=bias(D_RNN),
            wo=dense(D_RNN, D_RNN), bo=bias(D_RNN),
            w1=dense(D_RNN, D_FF), b1=bias(D_FF),
            w2=dense(D_FF, D_RNN), b2=bias(D_RNN),
            g1=jnp.ones((1, D_RNN), jnp.float32),
            be1=jnp.zeros((1, D_RNN), jnp.float32),
            g2=jnp.ones((1, D_RNN), jnp.float32),
            be2=jnp.zeros((1, D_RNN), jnp.float32),
        ))
    params["layers"] = layers
    params["ln_f_g"] = jnp.ones((1, D_RNN), jnp.float32)
    params["ln_f_b"] = jnp.zeros((1, D_RNN), jnp.float32)
    # Classifier: Linear(2*d_mlp, d_mlp), Linear(d_mlp, num_classes)
    params["w_lin"] = dense(2 * D_MLP, D_MLP)   # stored input-major (weight^T)
    params["b_lin"] = bias(D_MLP)
    params["w_cls"] = dense(D_MLP, NUM_CLASSES)
    params["b_cls"] = bias(NUM_CLASSES)
    return params


if __name__ == "__main__":
    root = jax.random.PRNGKey(0)
    pkey, ikey = jax.random.split(root)
    params = init_params(pkey)
    packed = pack_params(params)                 # one-time host-side repack
    img = jax.random.normal(ikey, (NUM_IMAGES, IMG_C, IMG_HW, IMG_HW),
                            jnp.float32)         # NCHW, like the PyTorch input
    fwd = jax.jit(image_encoder_forward)
    out = jax.block_until_ready(fwd(img, packed))
    assert out.shape == (NUM_IMAGES, NUM_IMAGES, NUM_CLASSES), out.shape
    assert bool(jnp.all(jnp.isfinite(out)))
    print("KERNEL_OK")
</pallas_src>

<mosaic_0001>
module attributes {stable_mosaic.version = 11 : i64} {
  func.func @fused_image_encoder_kernel(%arg0: memref<8x768xbf16, #tpu.memory_space<vmem>>, %arg1: memref<768x32xbf16, #tpu.memory_space<vmem>>, %arg2: memref<2x12x32x8xbf16, #tpu.memory_space<vmem>>, %arg3: memref<2x12x1x8xf32, #tpu.memory_space<vmem>>, %arg4: memref<2x4x8x32xbf16, #tpu.memory_space<vmem>>, %arg5: memref<2x32x64xbf16, #tpu.memory_space<vmem>>, %arg6: memref<2x64x32xbf16, #tpu.memory_space<vmem>>, %arg7: memref<2x7x64xf32, #tpu.memory_space<vmem>>, %arg8: memref<2x32x32xbf16, #tpu.memory_space<vmem>>, %arg9: memref<32x128xbf16, #tpu.memory_space<vmem>>, %arg10: memref<4x128xf32, #tpu.memory_space<vmem>>, %arg11: memref<64x128xf32, #tpu.memory_space<vmem>>) attributes {dimension_semantics = [], scalar_prefetch = 0 : i64, scratch_operands = 0 : i64, tpu.core_type = #tpu.core_type<tc>} {
    %c0 = arith.constant 0 : index
    %c0_0 = arith.constant 0 : index
    %0 = vector.load %arg0[%c0, %c0_0] : memref<8x768xbf16, #tpu.memory_space<vmem>>, vector<8x768xbf16>
    %c0_1 = arith.constant 0 : index
    %c0_2 = arith.constant 0 : index
    %1 = vector.load %arg1[%c0_1, %c0_2] : memref<768x32xbf16, #tpu.memory_space<vmem>>, vector<768x32xbf16>
    %cst = arith.constant dense<0.000000e+00> : vector<8x32xf32>
    %2 = tpu.matmul %0, %1, %cst {dimension_numbers = #tpu.dot_dimension_numbers<[1], [0], [0], [1], [0, 0, 1, 1], [], []>} : vector<8x768xbf16>, vector<768x32xbf16>, vector<8x32xf32> -> vector<8x32xf32>
    %3 = arith.mulf %2, %2 : vector<8x32xf32>
    %cst_3 = arith.constant dense<0.000000e+00> : vector<8xf32>
    %4 = vector.multi_reduction <add>, %3, %cst_3 [1] : vector<8x32xf32> to vector<8xf32>
    %5 = vector.shape_cast %4 : vector<8xf32> to vector<8x1xf32>
    %cst_4 = arith.constant 9.99999996E-13 : f32
    %6 = vector.broadcast %cst_4 : f32 to vector<8x1xf32>
    %7 = arith.addf %5, %6 : vector<8x1xf32>
    %8 = math.rsqrt %7 : vector<8x1xf32>
    %9 = vector.broadcast %8 : vector<8x1xf32> to vector<8x32xf32>
    %10 = arith.mulf %2, %9 : vector<8x32xf32>
    %c0_5 = arith.constant 0 : index
    %c0_6 = arith.constant 0 : index
    %c0_7 = arith.constant 0 : index
    %11 = vector.load %arg7[%c0_5, %c0_6, %c0_7] : memref<2x7x64xf32, #tpu.memory_space<vmem>>, vector<1x1x64xf32>
    %12 = vector.shape_cast %11 : vector<1x1x64xf32> to vector<1x64xf32>
    %c0_8 = arith.constant 0 : index
    %c1 = arith.constant 1 : index
    %c0_9 = arith.constant 0 : index
    %13 = vector.load %arg7[%c0_8, %c1, %c0_9] : memref<2x7x64xf32, #tpu.memory_space<vmem>>, vector<1x1x32xf32>
    %14 = vector.shape_cast %13 : vector<1x1x32xf32> to vector<1x32xf32>
    %c0_10 = arith.constant 0 : index
    %c2 = arith.constant 2 : index
    %c0_11 = arith.constant 0 : index
    %15 = vector.load %arg7[%c0_10, %c2, %c0_11] : memref<2x7x64xf32, #tpu.memory_space<vmem>>, vector<1x1x32xf32>
    %16 = vector.shape_cast %15 : vector<1x1x32xf32> to vector<1x32xf32>
    %c0_12 = arith.constant 0 : index
    %c3 = arith.constant 3 : index
    %c0_13 = arith.constant 0 : index
    %17 = vector.load %arg7[%c0_12, %c3, %c0_13] : memref<2x7x64xf32, #tpu.memory_space<vmem>>, vector<1x1x32xf32>
    %18 = vector.shape_cast %17 : vector<1x1x32xf32> to vector<1x32xf32>
    %c0_14 = arith.constant 0 : index
    %c4 = arith.constant 4 : index
    %c0_15 = arith.constant 0 : index
    %19 = vector.load %arg7[%c0_14, %c4, %c0_15] : memref<2x7x64xf32, #tpu.memory_space<vmem>>, vector<1x1x32xf32>
    %20 = vector.shape_cast %19 : vector<1x1x32xf32> to vector<1x32xf32>
    %c0_16 = arith.constant 0 : index
    %c5 = arith.constant 5 : index
    %c0_17 = arith.constant 0 : index
    %21 = vector.load %arg7[%c0_16, %c5, %c0_17] : memref<2x7x64xf32, #tpu.memory_space<vmem>>, vector<1x1x32xf32>
    %22 = vector.shape_cast %21 : vector<1x1x32xf32> to vector<1x32xf32>
    %c0_18 = arith.constant 0 : index
    %c6 = arith.constant 6 : index
    %c0_19 = arith.constant 0 : index
    %23 = vector.load %arg7[%c0_18, %c6, %c0_19] : memref<2x7x64xf32, #tpu.memory_space<vmem>>, vector<1x1x32xf32>
    %24 = vector.shape_cast %23 : vector<1x1x32xf32> to vector<1x32xf32>
    %cst_20 = arith.constant dense<0.000000e+00> : vector<8xf32>
    %25 = vector.multi_reduction <add>, %10, %cst_20 [1] : vector<8x32xf32> to vector<8xf32>
    %26 = vector.shape_cast %25 : vector<8xf32> to vector<8x1xf32>
    %cst_21 = arith.constant 3.200000e+01 : f32
    %27 = vector.broadcast %cst_21 : f32 to vector<8x1xf32>
    %28 = arith.divf %26, %27 : vector<8x1xf32>
    %29 = vector.broadcast %28 : vector<8x1xf32> to vector<8x32xf32>
    %30 = arith.subf %10, %29 : vector<8x32xf32>
    %31 = arith.mulf %30, %30 : vector<8x32xf32>
    %cst_22 = arith.constant dense<0.000000e+00> : vector<8xf32>
    %32 = vector.multi_reduction <add>, %31, %cst_22 [1] : vector<8x32xf32> to vector<8xf32>
    %33 = vector.shape_cast %32 : vector<8xf32> to vector<8x1xf32>
    %cst_23 = arith.constant 3.200000e+01 : f32
    %34 = vector.broadcast %cst_23 : f32 to vector<8x1xf32>
    %35 = arith.divf %33, %34 : vector<8x1xf32>
    %36 = vector.broadcast %28 : vector<8x1xf32> to vector<8x32xf32>
    %37 = arith.subf %10, %36 : vector<8x32xf32>
    %cst_24 = arith.constant 9.99999997E-7 : f32
    %38 = vector.broadcast %cst_24 : f32 to vector<8x1xf32>
    %39 = arith.addf %35, %38 : vector<8x1xf32>
    %40 = math.rsqrt %39 : vector<8x1xf32>
    %41 = vector.broadcast %40 : vector<8x1xf32> to vector<8x32xf32>
    %42 = arith.mulf %37, %41 : vector<8x32xf32>
    %43 = vector.broadcast %18 : vector<1x32xf32> to vector<8x32xf32>
    %44 = arith.mulf %42, %43 : vector<8x32xf32>
    %45 = vector.broadcast %20 : vector<1x32xf32> to vector<8x32xf32>
    %46 = arith.addf %44, %45 : vector<8x32xf32>
    %47 = arith.truncf %46 : vector<8x32xf32> to vector<8x32xbf16>
    %48 = vector.shape_cast %47 : vector<8x32xbf16> to vector<1x8x32xbf16>
    %49 = vector.broadcast %48 : vector<1x8x32xbf16> to vector<12x8x32xbf16>
    %c0_25 = arith.constant 0 : index
    %c0_26 = arith.constant 0 : index
    %c0_27 = arith.constant 0 : index
    %c0_28 = arith.constant 0 : index
    %50 = vector.load %arg2[%c0_25, %c0_26, %c0_27, %c0_28] : memref<2x12x32x8xbf16, #tpu.memory_space<vmem>>, vector<1x12x32x8xbf16>
    %51 = vector.shape_cast %50 : vector<1x12x32x8xbf16> to vector<12x32x8xbf16>
    "tpu.trace_start"() <{level = 10 : i32, message = "gnd,gde->gne"}> : () -> ()
    %cst_29 = arith.constant dense<0.000000e+00> : vector<12x8x8xf32>
    %52 = tpu.matmul %49, %51, %cst_29 {dimension_numbers = #tpu.dot_dimension_numbers<[2], [1], [1], [2], [0, 0, 0, 1, 1, 2], [0], [0]>} : vector<12x8x32xbf16>, vector<12x32x8xbf16>, vector<12x8x8xf32> -> vector<12x8x8xf32>
    "tpu.trace_stop"() : () -> ()
    %c0_30 = arith.constant 0 : index
    %c0_31 = arith.constant 0 : index
    %c0_32 = arith.constant 0 : index
    %c0_33 = arith.constant 0 : index
    %53 = vector.load %arg3[%c0_30, %c0_31, %c0_32, %c0_33] : memref<2x12x1x8xf32, #tpu.memory_space<vmem>>, vector<1x12x1x8xf32>
    %54 = vector.shape_cast %53 : vector<1x12x1x8xf32> to vector<12x1x8xf32>
    %55 = vector.broadcast %54 : vector<12x1x8xf32> to vector<12x8x8xf32>
    %56 = arith.addf %52, %55 : vector<12x8x8xf32>
    %57 = arith.truncf %56 : vector<12x8x8xf32> to vector<12x8x8xbf16>
    %58 = vector.extract_strided_slice %57 {offsets = [0, 0, 0], sizes = [4, 8, 8], strides = [1, 1, 1]} : vector<12x8x8xbf16> to vector<4x8x8xbf16>
    %59 = vector.extract_strided_slice %57 {offsets = [4, 0, 0], sizes = [4, 8, 8], strides = [1, 1, 1]} : vector<12x8x8xbf16> to vector<4x8x8xbf16>
    %60 = vector.extract_strided_slice %57 {offsets = [8, 0, 0], sizes = [4, 8, 8], strides = [1, 1, 1]} : vector<12x8x8xbf16> to vector<4x8x8xbf16>
    "tpu.trace_start"() <{level = 10 : i32, message = "hqe,hke->hqk"}> : () -> ()
    %cst_34 = arith.constant dense<0.000000e+00> : vector<4x8x8xf32>
    %61 = tpu.matmul %58, %59, %cst_34 {dimension_numbers = #tpu.dot_dimension_numbers<[2], [2], [1], [1], [0, 0, 0, 1, 1, 1], [0], [0]>} : vector<4x8x8xbf16>, vector<4x8x8xbf16>, vector<4x8x8xf32> -> vector<4x8x8xf32>
    "tpu.trace_stop"() : () -> ()
    %cst_35 = arith.constant 0.353553385 : f32
    %62 = vector.broadcast %cst_35 : f32 to vector<4x8x8xf32>
    %63 = arith.mulf %61, %62 : vector<4x8x8xf32>
    %cst_36 = arith.constant dense<0xFF800000> : vector<4x8xf32>
    %64 = vector.multi_reduction <maximumf>, %63, %cst_36 [2] : vector<4x8x8xf32> to vector<4x8xf32>
    %65 = vector.shape_cast %64 : vector<4x8xf32> to vector<4x8x1xf32>
    %66 = vector.broadcast %65 : vector<4x8x1xf32> to vector<4x8x8xf32>
    %67 = arith.subf %63, %66 : vector<4x8x8xf32>
    %68 = math.exp %67 : vector<4x8x8xf32>
    %cst_37 = arith.constant dense<0.000000e+00> : vector<4x8xf32>
    %69 = vector.multi_reduction <add>, %68, %cst_37 [2] : vector<4x8x8xf32> to vector<4x8xf32>
    %70 = vector.shape_cast %69 : vector<4x8xf32> to vector<4x8x1xf32>
    %71 = tpu.reciprocal %70 {approx = true} : vector<4x8x1xf32> -> vector<4x8x1xf32>
    %72 = vector.broadcast %71 : vector<4x8x1xf32> to vector<4x8x8xf32>
    %73 = arith.mulf %68, %72 : vector<4x8x8xf32>
    %74 = arith.truncf %73 : vector<4x8x8xf32> to vector<4x8x8xbf16>
    "tpu.trace_start"() <{level = 10 : i32, message = "hqk,hke->hqe"}> : () -> ()
    %cst_38 = arith.constant dense<0.000000e+00> : vector<4x8x8xf32>
    %75 = tpu.matmul %74, %60, %cst_38 {dimension_numbers = #tpu.dot_dimension_numbers<[2], [1], [1], [2], [0, 0, 0, 1, 1, 2], [0], [0]>} : vector<4x8x8xbf16>, vector<4x8x8xbf16>, vector<4x8x8xf32> -> vector<4x8x8xf32>
    "tpu.trace_stop"() : () -> ()
    %76 = arith.truncf %75 : vector<4x8x8xf32> to vector<4x8x8xbf16>
    %c0_39 = arith.constant 0 : index
    %c0_40 = arith.constant 0 : index
    %c0_41 = arith.constant 0 : index
    %c0_42 = arith.constant 0 : index
    %77 = vector.load %arg4[%c0_39, %c0_40, %c0_41, %c0_42] : memref<2x4x8x32xbf16, #tpu.memory_space<vmem>>, vector<1x4x8x32xbf16>
    %78 = vector.shape_cast %77 : vector<1x4x8x32xbf16> to vector<4x8x32xbf16>
    "tpu.trace_start"() <{level = 10 : i32, message = "hqe,hed->hqd"}> : () -> ()
    %cst_43 = arith.constant dense<0.000000e+00> : vector<4x8x32xf32>
    %79 = tpu.matmul %76, %78, %cst_43 {dimension_numbers = #tpu.dot_dimension_numbers<[2], [1], [1], [2], [0, 0, 0, 1, 1, 2], [0], [0]>} : vector<4x8x8xbf16>, vector<4x8x32xbf16>, vector<4x8x32xf32> -> vector<4x8x32xf32>
    "tpu.trace_stop"() : () -> ()
    %cst_44 = arith.constant dense<0.000000e+00> : vector<8x32xf32>
    %80 = vector.multi_reduction <add>, %79, %cst_44 [0] : vector<4x8x32xf32> to vector<8x32xf32>
    %81 = arith.addf %10, %80 : vector<8x32xf32>
    %82 = vector.broadcast %14 : vector<1x32xf32> to vector<8x32xf32>
    %83 = arith.addf %81, %82 : vector<8x32xf32>
    %cst_45 = arith.constant dense<0.000000e+00> : vector<8xf32>
    %84 = vector.multi_reduction <add>, %83, %cst_45 [1] : vector<8x32xf32> to vector<8xf32>
    %85 = vector.shape_cast %84 : vector<8xf32> to vector<8x1xf32>
    %cst_46 = arith.constant 3.200000e+01 : f32
    %86 = vector.broadcast %cst_46 : f32 to vector<8x1xf32>
    %87 = arith.divf %85, %86 : vector<8x1xf32>
    %88 = vector.broadcast %87 : vector<8x1xf32> to vector<8x32xf32>
    %89 = arith.subf %83, %88 : vector<8x32xf32>
    %90 = arith.mulf %89, %89 : vector<8x32xf32>
    %cst_47 = arith.constant dense<0.000000e+00> : vector<8xf32>
    %91 = vector.multi_reduction <add>, %90, %cst_47 [1] : vector<8x32xf32> to vector<8xf32>
    %92 = vector.shape_cast %91 : vector<8xf32> to vector<8x1xf32>
    %cst_48 = arith.constant 3.200000e+01 : f32
    %93 = vector.broadcast %cst_48 : f32 to vector<8x1xf32>
    %94 = arith.divf %92, %93 : vector<8x1xf32>
    %95 = vector.broadcast %87 : vector<8x1xf32> to vector<8x32xf32>
    %96 = arith.subf %83, %95 : vector<8x32xf32>
    %cst_49 = arith.constant 9.99999997E-7 : f32
    %97 = vector.broadcast %cst_49 : f32 to vector<8x1xf32>
    %98 = arith.addf %94, %97 : vector<8x1xf32>
    %99 = math.rsqrt %98 : vector<8x1xf32>
    %100 = vector.broadcast %99 : vector<8x1xf32> to vector<8x32xf32>
    %101 = arith.mulf %96, %100 : vector<8x32xf32>
    %102 = vector.broadcast %22 : vector<1x32xf32> to vector<8x32xf32>
    %103 = arith.mulf %101, %102 : vector<8x32xf32>
    %104 = vector.broadcast %24 : vector<1x32xf32> to vector<8x32xf32>
    %105 = arith.addf %103, %104 : vector<8x32xf32>
    %106 = arith.truncf %105 : vector<8x32xf32> to vector<8x32xbf16>
    %c0_50 = arith.constant 0 : index
    %c0_51 = arith.constant 0 : index
    %c0_52 = arith.constant 0 : index
    %107 = vector.load %arg5[%c0_50, %c0_51, %c0_52] : memref<2x32x64xbf16, #tpu.memory_space<vmem>>, vector<1x32x64xbf16>
    %108 = vector.shape_cast %107 : vector<1x32x64xbf16> to vector<32x64xbf16>
    %cst_53 = arith.constant dense<0.000000e+00> : vector<8x64xf32>
    %109 = tpu.matmul %106, %108, %cst_53 {dimension_numbers = #tpu.dot_dimension_numbers<[1], [0], [0], [1], [0, 0, 1, 1], [], []>} : vector<8x32xbf16>, vector<32x64xbf16>, vector<8x64xf32> -> vector<8x64xf32>
    %110 = vector.broadcast %12 : vector<1x64xf32> to vector<8x64xf32>
    %111 = arith.addf %109, %110 : vector<8x64xf32>
    %cst_54 = arith.constant 0.000000e+00 : f32
    %112 = vector.broadcast %cst_54 : f32 to vector<8x64xf32>
    %113 = arith.maximumf %111, %112 : vector<8x64xf32>
    %114 = arith.truncf %113 : vector<8x64xf32> to vector<8x64xbf16>
    %c0_55 = arith.constant 0 : index
    %c0_56 = arith.constant 0 : index
    %c0_57 = arith.constant 0 : index
    %115 = vector.load %arg6[%c0_55, %c0_56, %c0_57] : memref<2x64x32xbf16, #tpu.memory_space<vmem>>, vector<1x64x32xbf16>
    %116 = vector.shape_cast %115 : vector<1x64x32xbf16> to vector<64x32xbf16>
    %cst_58 = arith.constant dense<0.000000e+00> : vector<8x32xf32>
    %117 = tpu.matmul %114, %116, %cst_58 {dimension_numbers = #tpu.dot_dimension_numbers<[1], [0], [0], [1], [0, 0, 1, 1], [], []>} : vector<8x64xbf16>, vector<64x32xbf16>, vector<8x32xf32> -> vector<8x32xf32>
    %118 = arith.addf %83, %117 : vector<8x32xf32>
    %119 = vector.broadcast %16 : vector<1x32xf32> to vector<8x32xf32>
    %120 = arith.addf %118, %119 : vector<8x32xf32>
    %c1_59 = arith.constant 1 : index
    %c0_60 = arith.constant 0 : index
    %c0_61 = arith.constant 0 : index
    %121 = vector.load %arg7[%c1_59, %c0_60, %c0_61] : memref<2x7x64xf32, #tpu.memory_space<vmem>>, vector<1x1x64xf32>
    %122 = vector.shape_cast %121 : vector<1x1x64xf32> to vector<1x64xf32>
    %c1_62 = arith.constant 1 : index
    %c1_63 = arith.constant 1 : index
    %c0_64 = arith.constant 0 : index
    %123 = vector.load %arg7[%c1_62, %c1_63, %c0_64] : memref<2x7x64xf32, #tpu.memory_space<vmem>>, vector<1x1x32xf32>
    %124 = vector.shape_cast %123 : vector<1x1x32xf32> to vector<1x32xf32>
    %c1_65 = arith.constant 1 : index
    %c2_66 = arith.constant 2 : index
    %c0_67 = arith.constant 0 : index
    %125 = vector.load %arg7[%c1_65, %c2_66, %c0_67] : memref<2x7x64xf32, #tpu.memory_space<vmem>>, vector<1x1x32xf32>
    %126 = vector.shape_cast %125 : vector<1x1x32xf32> to vector<1x32xf32>
    %c1_68 = arith.constant 1 : index
    %c3_69 = arith.constant 3 : index
    %c0_70 = arith.constant 0 : index
    %127 = vector.load %arg7[%c1_68, %c3_69, %c0_70] : memref<2x7x64xf32, #tpu.memory_space<vmem>>, vector<1x1x32xf32>
    %128 = vector.shape_cast %127 : vector<1x1x32xf32> to vector<1x32xf32>
    %c1_71 = arith.constant 1 : index
    %c4_72 = arith.constant 4 : index
    %c0_73 = arith.constant 0 : index
    %129 = vector.load %arg7[%c1_71, %c4_72, %c0_73] : memref<2x7x64xf32, #tpu.memory_space<vmem>>, vector<1x1x32xf32>
    %130 = vector.shape_cast %129 : vector<1x1x32xf32> to vector<1x32xf32>
    %c1_74 = arith.constant 1 : index
    %c5_75 = arith.constant 5 : index
    %c0_76 = arith.constant 0 : index
    %131 = vector.load %arg7[%c1_74, %c5_75, %c0_76] : memref<2x7x64xf32, #tpu.memory_space<vmem>>, vector<1x1x32xf32>
    %132 = vector.shape_cast %131 : vector<1x1x32xf32> to vector<1x32xf32>
    %c1_77 = arith.constant 1 : index
    %c6_78 = arith.constant 6 : index
    %c0_79 = arith.constant 0 : index
    %133 = vector.load %arg7[%c1_77, %c6_78, %c0_79] : memref<2x7x64xf32, #tpu.memory_space<vmem>>, vector<1x1x32xf32>
    %134 = vector.shape_cast %133 : vector<1x1x32xf32> to vector<1x32xf32>
    %cst_80 = arith.constant dense<0.000000e+00> : vector<8xf32>
    %135 = vector.multi_reduction <add>, %120, %cst_80 [1] : vector<8x32xf32> to vector<8xf32>
    %136 = vector.shape_cast %135 : vector<8xf32> to vector<8x1xf32>
    %cst_81 = arith.constant 3.200000e+01 : f32
    %137 = vector.broadcast %cst_81 : f32 to vector<8x1xf32>
    %138 = arith.divf %136, %137 : vector<8x1xf32>
    %139 = vector.broadcast %138 : vector<8x1xf32> to vector<8x32xf32>
    %140 = arith.subf %120, %139 : vector<8x32xf32>
    %141 = arith.mulf %140, %140 : vector<8x32xf32>
    %cst_82 = arith.constant dense<0.000000e+00> : vector<8xf32>
    %142 = vector.multi_reduction <add>, %141, %cst_82 [1] : vector<8x32xf32> to vector<8xf32>
    %143 = vector.shape_cast %142 : vector<8xf32> to vector<8x1xf32>
    %cst_83 = arith.constant 3.200000e+01 : f32
    %144 = vector.broadcast %cst_83 : f32 to vector<8x1xf32>
    %145 = arith.divf %143, %144 : vector<8x1xf32>
    %146 = vector.broadcast %138 : vector<8x1xf32> to vector<8x32xf32>
    %147 = arith.subf %120, %146 : vector<8x32xf32>
    %cst_84 = arith.constant 9.99999997E-7 : f32
    %148 = vector.broadcast %cst_84 : f32 to vector<8x1xf32>
    %149 = arith.addf %145, %148 : vector<8x1xf32>
    %150 = math.rsqrt %149 : vector<8x1xf32>
    %151 = vector.broadcast %150 : vector<8x1xf32> to vector<8x32xf32>
    %152 = arith.mulf %147, %151 : vector<8x32xf32>
    %153 = vector.broadcast %128 : vector<1x32xf32> to vector<8x32xf32>
    %154 = arith.mulf %152, %153 : vector<8x32xf32>
    %155 = vector.broadcast %130 : vector<1x32xf32> to vector<8x32xf32>
    %156 = arith.addf %154, %155 : vector<8x32xf32>
    %157 = arith.truncf %156 : vector<8x32xf32> to vector<8x32xbf16>
    %158 = vector.shape_cast %157 : vector<8x32xbf16> to vector<1x8x32xbf16>
    %159 = vector.broadcast %158 : vector<1x8x32xbf16> to vector<12x8x32xbf16>
    %c1_85 = arith.constant 1 : index
    %c0_86 = arith.constant 0 : index
    %c0_87 = arith.constant 0 : index
    %c0_88 = arith.constant 0 : index
    %160 = vector.load %arg2[%c1_85, %c0_86, %c0_87, %c0_88] : memref<2x12x32x8xbf16, #tpu.memory_space<vmem>>, vector<1x12x32x8xbf16>
    %161 = vector.shape_cast %160 : vector<1x12x32x8xbf16> to vector<12x32x8xbf16>
    "tpu.trace_start"() <{level = 10 : i32, message = "gnd,gde->gne"}> : () -> ()
    %cst_89 = arith.constant dense<0.000000e+00> : vector<12x8x8xf32>
    %162 = tpu.matmul %159, %161, %cst_89 {dimension_numbers = #tpu.dot_dimension_numbers<[2], [1], [1], [2], [0, 0, 0, 1, 1, 2], [0], [0]>} : vector<12x8x32xbf16>, vector<12x32x8xbf16>, vector<12x8x8xf32> -> vector<12x8x8xf32>
    "tpu.trace_stop"() : () -> ()
    %c1_90 = arith.constant 1 : index
    %c0_91 = arith.constant 0 : index
    %c0_92 = arith.constant 0 : index
    %c0_93 = arith.constant 0 : index
    %163 = vector.load %arg3[%c1_90, %c0_91, %c0_92, %c0_93] : memref<2x12x1x8xf32, #tpu.memory_space<vmem>>, vector<1x12x1x8xf32>
    %164 = vector.shape_cast %163 : vector<1x12x1x8xf32> to vector<12x1x8xf32>
    %165 = vector.broadcast %164 : vector<12x1x8xf32> to vector<12x8x8xf32>
    %166 = arith.addf %162, %165 : vector<12x8x8xf32>
    %167 = arith.truncf %166 : vector<12x8x8xf32> to vector<12x8x8xbf16>
    %168 = vector.extract_strided_slice %167 {offsets = [0, 0, 0], sizes = [4, 8, 8], strides = [1, 1, 1]} : vector<12x8x8xbf16> to vector<4x8x8xbf16>
    %169 = vector.extract_strided_slice %167 {offsets = [4, 0, 0], sizes = [4, 8, 8], strides = [1, 1, 1]} : vector<12x8x8xbf16> to vector<4x8x8xbf16>
    %170 = vector.extract_strided_slice %167 {offsets = [8, 0, 0], sizes = [4, 8, 8], strides = [1, 1, 1]} : vector<12x8x8xbf16> to vector<4x8x8xbf16>
    "tpu.trace_start"() <{level = 10 : i32, message = "hqe,hke->hqk"}> : () -> ()
    %cst_94 = arith.constant dense<0.000000e+00> : vector<4x8x8xf32>
    %171 = tpu.matmul %168, %169, %cst_94 {dimension_numbers = #tpu.dot_dimension_numbers<[2], [2], [1], [1], [0, 0, 0, 1, 1, 1], [0], [0]>} : vector<4x8x8xbf16>, vector<4x8x8xbf16>, vector<4x8x8xf32> -> vector<4x8x8xf32>
    "tpu.trace_stop"() : () -> ()
    %cst_95 = arith.constant 0.353553385 : f32
    %172 = vector.broadcast %cst_95 : f32 to vector<4x8x8xf32>
    %173 = arith.mulf %171, %172 : vector<4x8x8xf32>
    %cst_96 = arith.constant dense<0xFF800000> : vector<4x8xf32>
    %174 = vector.multi_reduction <maximumf>, %173, %cst_96 [2] : vector<4x8x8xf32> to vector<4x8xf32>
    %175 = vector.shape_cast %174 : vector<4x8xf32> to vector<4x8x1xf32>
    %176 = vector.broadcast %175 : vector<4x8x1xf32> to vector<4x8x8xf32>
    %177 = arith.subf %173, %176 : vector<4x8x8xf32>
    %178 = math.exp %177 : vector<4x8x8xf32>
    %cst_97 = arith.constant dense<0.000000e+00> : vector<4x8xf32>
    %179 = vector.multi_reduction <add>, %178, %cst_97 [2] : vector<4x8x8xf32> to vector<4x8xf32>
    %180 = vector.shape_cast %179 : vector<4x8xf32> to vector<4x8x1xf32>
    %181 = tpu.reciprocal %180 {approx = true} : vector<4x8x1xf32> -> vector<4x8x1xf32>
    %182 = vector.broadcast %181 : vector<4x8x1xf32> to vector<4x8x8xf32>
    %183 = arith.mulf %178, %182 : vector<4x8x8xf32>
    %184 = arith.truncf %183 : vector<4x8x8xf32> to vector<4x8x8xbf16>
    "tpu.trace_start"() <{level = 10 : i32, message = "hqk,hke->hqe"}> : () -> ()
    %cst_98 = arith.constant dense<0.000000e+00> : vector<4x8x8xf32>
    %185 = tpu.matmul %184, %170, %cst_98 {dimension_numbers = #tpu.dot_dimension_numbers<[2], [1], [1], [2], [0, 0, 0, 1, 1, 2], [0], [0]>} : vector<4x8x8xbf16>, vector<4x8x8xbf16>, vector<4x8x8xf32> -> vector<4x8x8xf32>
    "tpu.trace_stop"() : () -> ()
    %186 = arith.truncf %185 : vector<4x8x8xf32> to vector<4x8x8xbf16>
    %c1_99 = arith.constant 1 : index
    %c0_100 = arith.constant 0 : index
    %c0_101 = arith.constant 0 : index
    %c0_102 = arith.constant 0 : index
    %187 = vector.load %arg4[%c1_99, %c0_100, %c0_101, %c0_102] : memref<2x4x8x32xbf16, #tpu.memory_space<vmem>>, vector<1x4x8x32xbf16>
    %188 = vector.shape_cast %187 : vector<1x4x8x32xbf16> to vector<4x8x32xbf16>
    "tpu.trace_start"() <{level = 10 : i32, message = "hqe,hed->hqd"}> : () -> ()
    %cst_103 = arith.constant dense<0.000000e+00> : vector<4x8x32xf32>
    %189 = tpu.matmul %186, %188, %cst_103 {dimension_numbers = #tpu.dot_dimension_numbers<[2], [1], [1], [2], [0, 0, 0, 1, 1, 2], [0], [0]>} : vector<4x8x8xbf16>, vector<4x8x32xbf16>, vector<4x8x32xf32> -> vector<4x8x32xf32>
    "tpu.trace_stop"() : () -> ()
    %cst_104 = arith.constant dense<0.000000e+00> : vector<8x32xf32>
    %190 = vector.multi_reduction <add>, %189, %cst_104 [0] : vector<4x8x32xf32> to vector<8x32xf32>
    %191 = arith.addf %120, %190 : vector<8x32xf32>
    %192 = vector.broadcast %124 : vector<1x32xf32> to vector<8x32xf32>
    %193 = arith.addf %191, %192 : vector<8x32xf32>
    %cst_105 = arith.constant dense<0.000000e+00> : vector<8xf32>
    %194 = vector.multi_reduction <add>, %193, %cst_105 [1] : vector<8x32xf32> to vector<8xf32>
    %195 = vector.shape_cast %194 : vector<8xf32> to vector<8x1xf32>
    %cst_106 = arith.constant 3.200000e+01 : f32
    %196 = vector.broadcast %cst_106 : f32 to vector<8x1xf32>
    %197 = arith.divf %195, %196 : vector<8x1xf32>
    %198 = vector.broadcast %197 : vector<8x1xf32> to vector<8x32xf32>
    %199 = arith.subf %193, %198 : vector<8x32xf32>
    %200 = arith.mulf %199, %199 : vector<8x32xf32>
    %cst_107 = arith.constant dense<0.000000e+00> : vector<8xf32>
    %201 = vector.multi_reduction <add>, %200, %cst_107 [1] : vector<8x32xf32> to vector<8xf32>
    %202 = vector.shape_cast %201 : vector<8xf32> to vector<8x1xf32>
    %cst_108 = arith.constant 3.200000e+01 : f32
    %203 = vector.broadcast %cst_108 : f32 to vector<8x1xf32>
    %204 = arith.divf %202, %203 : vector<8x1xf32>
    %205 = vector.broadcast %197 : vector<8x1xf32> to vector<8x32xf32>
    %206 = arith.subf %193, %205 : vector<8x32xf32>
    %cst_109 = arith.constant 9.99999997E-7 : f32
    %207 = vector.broadcast %cst_109 : f32 to vector<8x1xf32>
    %208 = arith.addf %204, %207 : vector<8x1xf32>
    %209 = math.rsqrt %208 : vector<8x1xf32>
    %210 = vector.broadcast %209 : vector<8x1xf32> to vector<8x32xf32>
    %211 = arith.mulf %206, %210 : vector<8x32xf32>
    %212 = vector.broadcast %132 : vector<1x32xf32> to vector<8x32xf32>
    %213 = arith.mulf %211, %212 : vector<8x32xf32>
    %214 = vector.broadcast %134 : vector<1x32xf32> to vector<8x32xf32>
    %215 = arith.addf %213, %214 : vector<8x32xf32>
    %216 = arith.truncf %215 : vector<8x32xf32> to vector<8x32xbf16>
    %c1_110 = arith.constant 1 : index
    %c0_111 = arith.constant 0 : index
    %c0_112 = arith.constant 0 : index
    %217 = vector.load %arg5[%c1_110, %c0_111, %c0_112] : memref<2x32x64xbf16, #tpu.memory_space<vmem>>, vector<1x32x64xbf16>
    %218 = vector.shape_cast %217 : vector<1x32x64xbf16> to vector<32x64xbf16>
    %cst_113 = arith.constant dense<0.000000e+00> : vector<8x64xf32>
    %219 = tpu.matmul %216, %218, %cst_113 {dimension_numbers = #tpu.dot_dimension_numbers<[1], [0], [0], [1], [0, 0, 1, 1], [], []>} : vector<8x32xbf16>, vector<32x64xbf16>, vector<8x64xf32> -> vector<8x64xf32>
    %220 = vector.broadcast %122 : vector<1x64xf32> to vector<8x64xf32>
    %221 = arith.addf %219, %220 : vector<8x64xf32>
    %cst_114 = arith.constant 0.000000e+00 : f32
    %222 = vector.broadcast %cst_114 : f32 to vector<8x64xf32>
    %223 = arith.maximumf %221, %222 : vector<8x64xf32>
    %224 = arith.truncf %223 : vector<8x64xf32> to vector<8x64xbf16>
    %c1_115 = arith.constant 1 : index
    %c0_116 = arith.constant 0 : index
    %c0_117 = arith.constant 0 : index
    %225 = vector.load %arg6[%c1_115, %c0_116, %c0_117] : memref<2x64x32xbf16, #tpu.memory_space<vmem>>, vector<1x64x32xbf16>
    %226 = vector.shape_cast %225 : vector<1x64x32xbf16> to vector<64x32xbf16>
    %cst_118 = arith.constant dense<0.000000e+00> : vector<8x32xf32>
    %227 = tpu.matmul %224, %226, %cst_118 {dimension_numbers = #tpu.dot_dimension_numbers<[1], [0], [0], [1], [0, 0, 1, 1], [], []>} : vector<8x64xbf16>, vector<64x32xbf16>, vector<8x32xf32> -> vector<8x32xf32>
    %228 = arith.addf %193, %227 : vector<8x32xf32>
    %229 = vector.broadcast %126 : vector<1x32xf32> to vector<8x32xf32>
    %230 = arith.addf %228, %229 : vector<8x32xf32>
    %c0_119 = arith.constant 0 : index
    %c0_120 = arith.constant 0 : index
    %231 = vector.load %arg10[%c0_119, %c0_120] : memref<4x128xf32, #tpu.memory_space<vmem>>, vector<1x32xf32>
    %c1_121 = arith.constant 1 : index
    %c0_122 = arith.constant 0 : index
    %232 = vector.load %arg10[%c1_121, %c0_122] : memref<4x128xf32, #tpu.memory_space<vmem>>, vector<1x32xf32>
    %cst_123 = arith.constant dense<0.000000e+00> : vector<8xf32>
    %233 = vector.multi_reduction <add>, %230, %cst_123 [1] : vector<8x32xf32> to vector<8xf32>
    %234 = vector.shape_cast %233 : vector<8xf32> to vector<8x1xf32>
    %cst_124 = arith.constant 3.200000e+01 : f32
    %235 = vector.broadcast %cst_124 : f32 to vector<8x1xf32>
    %236 = arith.divf %234, %235 : vector<8x1xf32>
    %237 = vector.broadcast %236 : vector<8x1xf32> to vector<8x32xf32>
    %238 = arith.subf %230, %237 : vector<8x32xf32>
    %239 = arith.mulf %238, %238 : vector<8x32xf32>
    %cst_125 = arith.constant dense<0.000000e+00> : vector<8xf32>
    %240 = vector.multi_reduction <add>, %239, %cst_125 [1] : vector<8x32xf32> to vector<8xf32>
    %241 = vector.shape_cast %240 : vector<8xf32> to vector<8x1xf32>
    %cst_126 = arith.constant 3.200000e+01 : f32
    %242 = vector.broadcast %cst_126 : f32 to vector<8x1xf32>
    %243 = arith.divf %241, %242 : vector<8x1xf32>
    %244 = vector.broadcast %236 : vector<8x1xf32> to vector<8x32xf32>
    %245 = arith.subf %230, %244 : vector<8x32xf32>
    %cst_127 = arith.constant 9.99999997E-7 : f32
    %246 = vector.broadcast %cst_127 : f32 to vector<8x1xf32>
    %247 = arith.addf %243, %246 : vector<8x1xf32>
    %248 = math.rsqrt %247 : vector<8x1xf32>
    %249 = vector.broadcast %248 : vector<8x1xf32> to vector<8x32xf32>
    %250 = arith.mulf %245, %249 : vector<8x32xf32>
    %251 = vector.broadcast %231 : vector<1x32xf32> to vector<8x32xf32>
    %252 = arith.mulf %250, %251 : vector<8x32xf32>
    %253 = vector.broadcast %232 : vector<1x32xf32> to vector<8x32xf32>
    %254 = arith.addf %252, %253 : vector<8x32xf32>
    %255 = arith.truncf %254 : vector<8x32xf32> to vector<8x32xbf16>
    %256 = vector.shape_cast %255 : vector<8x32xbf16> to vector<1x8x32xbf16>
    %257 = vector.broadcast %256 : vector<1x8x32xbf16> to vector<2x8x32xbf16>
    %c0_128 = arith.constant 0 : index
    %c0_129 = arith.constant 0 : index
    %c0_130 = arith.constant 0 : index
    %258 = vector.load %arg8[%c0_128, %c0_129, %c0_130] : memref<2x32x32xbf16, #tpu.memory_space<vmem>>, vector<2x32x32xbf16>
    "tpu.trace_start"() <{level = 10 : i32, message = "gnd,gdm->gnm"}> : () -> ()
    %cst_131 = arith.constant dense<0.000000e+00> : vector<2x8x32xf32>
    %259 = tpu.matmul %257, %258, %cst_131 {dimension_numbers = #tpu.dot_dimension_numbers<[2], [1], [1], [2], [0, 0, 0, 1, 1, 2], [0], [0]>} : vector<2x8x32xbf16>, vector<2x32x32xbf16>, vector<2x8x32xf32> -> vector<2x8x32xf32>
    "tpu.trace_stop"() : () -> ()
    %260 = vector.extract_strided_slice %259 {offsets = [0, 0, 0], sizes = [1, 8, 32], strides = [1, 1, 1]} : vector<2x8x32xf32> to vector<1x8x32xf32>
    %261 = vector.shape_cast %260 : vector<1x8x32xf32> to vector<8x32xf32>
    %262 = vector.shape_cast %261 : vector<8x32xf32> to vector<8x1x32xf32>
    %263 = vector.extract_strided_slice %259 {offsets = [1, 0, 0], sizes = [1, 8, 32], strides = [1, 1, 1]} : vector<2x8x32xf32> to vector<1x8x32xf32>
    %264 = vector.shape_cast %263 : vector<1x8x32xf32> to vector<8x32xf32>
    %265 = vector.shape_cast %264 : vector<8x32xf32> to vector<1x8x32xf32>
    %266 = vector.broadcast %262 : vector<8x1x32xf32> to vector<8x8x32xf32>
    %267 = vector.broadcast %265 : vector<1x8x32xf32> to vector<8x8x32xf32>
    %268 = arith.addf %266, %267 : vector<8x8x32xf32>
    %c2_132 = arith.constant 2 : index
    %c0_133 = arith.constant 0 : index
    %269 = vector.load %arg10[%c2_132, %c0_133] : memref<4x128xf32, #tpu.memory_space<vmem>>, vector<1x32xf32>
    %270 = vector.shape_cast %269 : vector<1x32xf32> to vector<1x1x32xf32>
    %271 = vector.broadcast %270 : vector<1x1x32xf32> to vector<8x8x32xf32>
    %272 = arith.addf %268, %271 : vector<8x8x32xf32>
    %273 = math.tanh %272 : vector<8x8x32xf32>
    %274 = vector.shape_cast %273 : vector<8x8x32xf32> to vector<64x32xf32>
    %275 = arith.truncf %274 : vector<64x32xf32> to vector<64x32xbf16>
    %c0_134 = arith.constant 0 : index
    %c0_135 = arith.constant 0 : index
    %276 = vector.load %arg9[%c0_134, %c0_135] : memref<32x128xbf16, #tpu.memory_space<vmem>>, vector<32x128xbf16>
    %cst_136 = arith.constant dense<0.000000e+00> : vector<64x128xf32>
    %277 = tpu.matmul %275, %276, %cst_136 {dimension_numbers = #tpu.dot_dimension_numbers<[1], [0], [0], [1], [0, 0, 1, 1], [], []>} : vector<64x32xbf16>, vector<32x128xbf16>, vector<64x128xf32> -> vector<64x128xf32>
    %c3_137 = arith.constant 3 : index
    %c0_138 = arith.constant 0 : index
    %278 = vector.load %arg10[%c3_137, %c0_138] : memref<4x128xf32, #tpu.memory_space<vmem>>, vector<1x128xf32>
    %279 = vector.broadcast %278 : vector<1x128xf32> to vector<64x128xf32>
    %280 = arith.addf %277, %279 : vector<64x128xf32>
    %c0_139 = arith.constant 0 : index
    %c0_140 = arith.constant 0 : index
    %281 = vector.load %arg11[%c0_139, %c0_140] : memref<64x128xf32, #tpu.memory_space<vmem>>, vector<64x128xf32>
    tpu.vector_store %arg11[%c0_139, %c0_140], %280 {strides = array<i32>} : memref<64x128xf32, #tpu.memory_space<vmem>>, vector<64x128xf32>,
    return
  }
}

</mosaic_0001>

<llo_original>
// kernel: image_encoder_forward.1
$region0: #{image_encoder_forward.1}
  #allocation0 [shape = 'u32[]', space=smem, size = 0x4, offset = 0x4, fixed_abs, tag = 'smem constant byte address 0x4 - core index']
  #allocation1 [shape = 'u32[144,128]{1,0:T(1,128)}', space=vmem, size = 0x12000, scoped, tag = 'internal scratch']
  %s0 = inlined_call_operand.vmem [shape: bf16[8,768], index: 0, kind: input, shape index: {}]
  %s1 = inlined_call_operand.vmem [shape: bf16[768,32], index: 1, kind: input, shape index: {}]
  %s2 = inlined_call_operand.vmem [shape: bf16[2,12,32,8], index: 2, kind: input, shape index: {}]
  %s3 = inlined_call_operand.vmem [shape: f32[2,12,1,8], index: 3, kind: input, shape index: {}]
  %s4 = inlined_call_operand.vmem [shape: bf16[2,4,8,32], index: 4, kind: input, shape index: {}]
  %s5 = inlined_call_operand.vmem [shape: bf16[2,32,64], index: 5, kind: input, shape index: {}]
  %s6 = inlined_call_operand.vmem [shape: bf16[2,64,32], index: 6, kind: input, shape index: {}]
  %s7 = inlined_call_operand.vmem [shape: f32[2,7,64], index: 7, kind: input, shape index: {}]
  %s8 = inlined_call_operand.vmem [shape: bf16[2,32,32], index: 8, kind: input, shape index: {}]
  %s9 = inlined_call_operand.vmem [shape: bf16[32,128], index: 9, kind: input, shape index: {}]
  %s10 = inlined_call_operand.vmem [shape: f32[4,128], index: 10, kind: input, shape index: {}]
  %s11 = inlined_call_operand.vmem [shape: f32[64,128], index: 11, kind: output, shape index: {}]
  %s12 = sld [smem:[#allocation0]]
  $region54: #{image_encoder_forward.1} parent=0
    _
  %s14 = ssub.s32 1, %s12
  %s15 = scalar_select 0, %s14, %s12
  // Predicated region
  $region2: #{image_encoder_forward.1} parent=0 // pred_check
    _
  $region3: #{image_encoder_forward.1} parent=0 // pred_check_branch
    %17 = sbr.rel (0) target = $region5
  $region4: #{image_encoder_forward.1} parent=0 // pred_region
    _
  $region5: #{image_encoder_forward.1} parent=0 // pred_fallthru
    _
  // Predicated region
  $region6: #{image_encoder_forward.1} parent=0 // pred_check
    _
  $region7: #{image_encoder_forward.1} parent=0 // pred_check_branch
    %19 = sbr.rel (0) target = $region9
  $region8: #{image_encoder_forward.1} parent=0 // pred_region
    _
  $region9: #{image_encoder_forward.1} parent=0 // pred_fallthru
    _
  // Predicated region
  $region10: #{image_encoder_forward.1} parent=0 // pred_check
    _
  $region11: #{image_encoder_forward.1} parent=0 // pred_check_branch
    %21 = sbr.rel (0) target = $region13
  $region12: #{image_encoder_forward.1} parent=0 // pred_region
    _
  $region13: #{image_encoder_forward.1} parent=0 // pred_fallthru
    _
  // Predicated region
  $region14: #{image_encoder_forward.1} parent=0 // pred_check
    _
  $region15: #{image_encoder_forward.1} parent=0 // pred_check_branch
    %23 = sbr.rel (0) target = $region17
  $region16: #{image_encoder_forward.1} parent=0 // pred_region
    _
  $region17: #{image_encoder_forward.1} parent=0 // pred_fallthru
    _
  // Predicated region
  $region18: #{image_encoder_forward.1} parent=0 // pred_check
    _
  $region19: #{image_encoder_forward.1} parent=0 // pred_check_branch
    %25 = sbr.rel (0) target = $region21
  $region20: #{image_encoder_forward.1} parent=0 // pred_region
    _
  $region21: #{image_encoder_forward.1} parent=0 // pred_fallthru
    _
  // Predicated region
  $region22: #{image_encoder_forward.1} parent=0 // pred_check
    _
  $region23: #{image_encoder_forward.1} parent=0 // pred_check_branch
    %27 = sbr.rel (0) target = $region25
  $region24: #{image_encoder_forward.1} parent=0 // pred_region
    _
  $region25: #{image_encoder_forward.1} parent=0 // pred_fallthru
    _
  // Predicated region
  $region26: #{image_encoder_forward.1} parent=0 // pred_check
    _
  $region27: #{image_encoder_forward.1} parent=0 // pred_check_branch
    %29 = sbr.rel (0) target = $region29
  $region28: #{image_encoder_forward.1} parent=0 // pred_region
    _
  $region29: #{image_encoder_forward.1} parent=0 // pred_fallthru
    _
  // Predicated region
  $region30: #{image_encoder_forward.1} parent=0 // pred_check
    _
  $region31: #{image_encoder_forward.1} parent=0 // pred_check_branch
    %31 = sbr.rel (0) target = $region33
  $region32: #{image_encoder_forward.1} parent=0 // pred_region
    _
  $region33: #{image_encoder_forward.1} parent=0 // pred_fallthru
    _
  // Predicated region
  $region34: #{image_encoder_forward.1} parent=0 // pred_check
    _
  $region35: #{image_encoder_forward.1} parent=0 // pred_check_branch
    %33 = sbr.rel (0) target = $region37
  $region36: #{image_encoder_forward.1} parent=0 // pred_region
    _
  $region37: #{image_encoder_forward.1} parent=0 // pred_fallthru
    _
  // Predicated region
  $region38: #{image_encoder_forward.1} parent=0 // pred_check
    _
  $region39: #{image_encoder_forward.1} parent=0 // pred_check_branch
    %35 = sbr.rel (0) target = $region41
  $region40: #{image_encoder_forward.1} parent=0 // pred_region
    _
  $region41: #{image_encoder_forward.1} parent=0 // pred_fallthru
    _
  // Predicated region
  $region42: #{image_encoder_forward.1} parent=0 // pred_check
    _
  $region43: #{image_encoder_forward.1} parent=0 // pred_check_branch
    %37 = sbr.rel (0) target = $region45
  $region44: #{image_encoder_forward.1} parent=0 // pred_region
    _
  $region45: #{image_encoder_forward.1} parent=0 // pred_fallthru
    _
  %v39 = vld [vmem:[%s0] sm:$0xff]
  %v40 = vld [vmem:[%s0 + $0x8] sm:$0xff]
  %v41 = vld [vmem:[%s0 + $0x10] sm:$0xff]
  %v42 = vld [vmem:[%s1] sm:$0xf]
  %v43 = vld [vmem:[%s1 + $0x4] sm:$0xf]
  %v44 = vld [vmem:[%s1 + $0x8] sm:$0xf]
  %v45 = vld [vmem:[%s1 + $0xc] sm:$0xf]
  %v46 = vld [vmem:[%s1 + $0x10] sm:$0xf]
  %v47 = vld [vmem:[%s1 + $0x14] sm:$0xf]
  %v48 = vld [vmem:[%s1 + $0x18] sm:$0xf]
  %v49 = vld [vmem:[%s1 + $0x1c] sm:$0xf]
  %v50 = vld [vmem:[%s1 + $0x20] sm:$0xf]
  %v51 = vld [vmem:[%s1 + $0x24] sm:$0xf]
  %v52 = vld [vmem:[%s1 + $0x28] sm:$0xf]
  %v53 = vld [vmem:[%s1 + $0x2c] sm:$0xf]
  %v54 = vld [vmem:[%s1 + $0x30] sm:$0xf]
  %v55 = vld [vmem:[%s1 + $0x34] sm:$0xf]
  %v56 = vld [vmem:[%s1 + $0x38] sm:$0xf]
  %v57 = vld [vmem:[%s1 + $0x3c] sm:$0xf]
  %v58 = vld [vmem:[%s1 + $0x40] sm:$0xf]
  %v59 = vld [vmem:[%s1 + $0x44] sm:$0xf]
  %v60 = vld [vmem:[%s1 + $0x48] sm:$0xf]
  %v61 = vld [vmem:[%s1 + $0x4c] sm:$0xf]
  %v62 = vld [vmem:[%s1 + $0x50] sm:$0xf]
  %v63 = vld [vmem:[%s1 + $0x54] sm:$0xf]
  %v64 = vld [vmem:[%s1 + $0x58] sm:$0xf]
  %v65 = vld [vmem:[%s1 + $0x5c] sm:$0xf]
  %v66 = vld [vmem:[%s1 + $0x60] sm:$0xf]
  %v67 = vld [vmem:[%s1 + $0x64] sm:$0xf]
  %v68 = vld [vmem:[%s1 + $0x68] sm:$0xf]
  %v69 = vld [vmem:[%s1 + $0x6c] sm:$0xf]
  %v70 = vld [vmem:[%s1 + $0x70] sm:$0xf]
  %v71 = vld [vmem:[%s1 + $0x74] sm:$0xf]
  %v72 = vld [vmem:[%s1 + $0x78] sm:$0xf]
  %v73 = vld [vmem:[%s1 + $0x7c] sm:$0xf]
  %v74 = vld [vmem:[%s1 + $0x80] sm:$0xf]
  %v75 = vld [vmem:[%s1 + $0x84] sm:$0xf]
  %v76 = vld [vmem:[%s1 + $0x88] sm:$0xf]
  %v77 = vld [vmem:[%s1 + $0x8c] sm:$0xf]
  %v78 = vld [vmem:[%s1 + $0x90] sm:$0xf]
  %v79 = vld [vmem:[%s1 + $0x94] sm:$0xf]
  %v80 = vld [vmem:[%s1 + $0x98] sm:$0xf]
  %v81 = vld [vmem:[%s1 + $0x9c] sm:$0xf]
  %v82 = vld [vmem:[%s1 + $0xa0] sm:$0xf]
  %v83 = vld [vmem:[%s1 + $0xa4] sm:$0xf]
  %v84 = vld [vmem:[%s1 + $0xa8] sm:$0xf]
  %v85 = vld [vmem:[%s1 + $0xac] sm:$0xf]
  %v86 = vld [vmem:[%s1 + $0xb0] sm:$0xf]
  %v87 = vld [vmem:[%s1 + $0xb4] sm:$0xf]
  %v88 = vld [vmem:[%s1 + $0xb8] sm:$0xf]
  %v89 = vld [vmem:[%s1 + $0xbc] sm:$0xf]
  %v90 = vld [vmem:[%s1 + $0xc0] sm:$0xf]
  %v91 = vld [vmem:[%s1 + $0xc4] sm:$0xf]
  %v92 = vld [vmem:[%s1 + $0xc8] sm:$0xf]
  %v93 = vld [vmem:[%s1 + $0xcc] sm:$0xf]
  %v94 = vld [vmem:[%s1 + $0xd0] sm:$0xf]
  %v95 = vld [vmem:[%s1 + $0xd4] sm:$0xf]
  %v96 = vld [vmem:[%s1 + $0xd8] sm:$0xf]
  %v97 = vld [vmem:[%s1 + $0xdc] sm:$0xf]
  %v98 = vld [vmem:[%s1 + $0xe0] sm:$0xf]
  %v99 = vld [vmem:[%s1 + $0xe4] sm:$0xf]
  %v100 = vld [vmem:[%s1 + $0xe8] sm:$0xf]
  %v101 = vld [vmem:[%s1 + $0xec] sm:$0xf]
  %v102 = vld [vmem:[%s1 + $0xf0] sm:$0xf]
  %v103 = vld [vmem:[%s1 + $0xf4] sm:$0xf]
  %v104 = vld [vmem:[%s1 + $0xf8] sm:$0xf]
  %v105 = vld [vmem:[%s1 + $0xfc] sm:$0xf]
  %v106 = vld [vmem:[%s1 + $0x100] sm:$0xf]
  %v107 = vld [vmem:[%s1 + $0x104] sm:$0xf]
  %v108 = vld [vmem:[%s1 + $0x108] sm:$0xf]
  %v109 = vld [vmem:[%s1 + $0x10c] sm:$0xf]
  %v110 = vld [vmem:[%s1 + $0x110] sm:$0xf]
  %v111 = vld [vmem:[%s1 + $0x114] sm:$0xf]
  %v112 = vld [vmem:[%s1 + $0x118] sm:$0xf]
  %v113 = vld [vmem:[%s1 + $0x11c] sm:$0xf]
  %v114 = vld [vmem:[%s1 + $0x120] sm:$0xf]
  %v115 = vld [vmem:[%s1 + $0x124] sm:$0xf]
  %v116 = vld [vmem:[%s1 + $0x128] sm:$0xf]
  %v117 = vld [vmem:[%s1 + $0x12c] sm:$0xf]
  %v118 = vld [vmem:[%s1 + $0x130] sm:$0xf]
  %v119 = vld [vmem:[%s1 + $0x134] sm:$0xf]
  %v120 = vld [vmem:[%s1 + $0x138] sm:$0xf]
  %v121 = vld [vmem:[%s1 + $0x13c] sm:$0xf]
  %v122 = vld [vmem:[%s1 + $0x140] sm:$0xf]
  %v123 = vld [vmem:[%s1 + $0x144] sm:$0xf]
  %v124 = vld [vmem:[%s1 + $0x148] sm:$0xf]
  %v125 = vld [vmem:[%s1 + $0x14c] sm:$0xf]
  %v126 = vld [vmem:[%s1 + $0x150] sm:$0xf]
  %v127 = vld [vmem:[%s1 + $0x154] sm:$0xf]
  %v128 = vld [vmem:[%s1 + $0x158] sm:$0xf]
  %v129 = vld [vmem:[%s1 + $0x15c] sm:$0xf]
  %v130 = vld [vmem:[%s1 + $0x160] sm:$0xf]
  %v131 = vld [vmem:[%s1 + $0x164] sm:$0xf]
  %v132 = vld [vmem:[%s1 + $0x168] sm:$0xf]
  %v133 = vld [vmem:[%s1 + $0x16c] sm:$0xf]
  %v134 = vld [vmem:[%s1 + $0x170] sm:$0xf]
  %v135 = vld [vmem:[%s1 + $0x174] sm:$0xf]
  %v136 = vld [vmem:[%s1 + $0x178] sm:$0xf]
  %v137 = vld [vmem:[%s1 + $0x17c] sm:$0xf]
  %v141 = vunpack.c.l.b16 %v39
  %v142 = vunpack.c.h.b16 %v39
  %v143 = vunpack.c.l.b16 %v40
  %v144 = vunpack.c.h.b16 %v40
  %v145 = vunpack.c.l.b16 %v41
  %v146 = vunpack.c.h.b16 %v41
  %v147 = vpack.c.b16 %v141, %v141
  %v148 = vpack.c.b16 %v142, %v142
  %v149 = vpack.c.b16 %v143, %v143
  %v150 = vpack.c.b16 %v144, %v144
  %v151 = vpack.c.b16 %v145, %v145
  %v152 = vpack.c.b16 %v146, %v146
  %v255 = vunpack.c.l.b16 %v42
  %v256 = vunpack.c.l.b16 %v43
  %v257 = vunpack.c.l.b16 %v44
  %v258 = vunpack.c.l.b16 %v45
  %v259 = vunpack.c.l.b16 %v46
  %v260 = vunpack.c.l.b16 %v47
  %v261 = vunpack.c.l.b16 %v48
  %v262 = vunpack.c.l.b16 %v49
  %v263 = vunpack.c.l.b16 %v50
  %v264 = vunpack.c.l.b16 %v51
  %v265 = vunpack.c.l.b16 %v52
  %v266 = vunpack.c.l.b16 %v53
  %v267 = vunpack.c.l.b16 %v54
  %v268 = vunpack.c.l.b16 %v55
  %v269 = vunpack.c.l.b16 %v56
  %v270 = vunpack.c.l.b16 %v57
  %v271 = vunpack.c.l.b16 %v58
  %v272 = vunpack.c.l.b16 %v59
  %v273 = vunpack.c.l.b16 %v60
  %v274 = vunpack.c.l.b16 %v61
  %v275 = vunpack.c.l.b16 %v62
  %v276 = vunpack.c.l.b16 %v63
  %v277 = vunpack.c.l.b16 %v64
  %v278 = vunpack.c.l.b16 %v65
  %v279 = vunpack.c.l.b16 %v66
  %v280 = vunpack.c.l.b16 %v67
  %v281 = vunpack.c.l.b16 %v68
  %v282 = vunpack.c.l.b16 %v69
  %v283 = vunpack.c.l.b16 %v70
  %v284 = vunpack.c.l.b16 %v71
  %v285 = vunpack.c.l.b16 %v72
  %v286 = vunpack.c.l.b16 %v73
  %v287 = vunpack.c.l.b16 %v74
  %v288 = vunpack.c.l.b16 %v75
  %v289 = vunpack.c.l.b16 %v76
  %v290 = vunpack.c.l.b16 %v77
  %v291 = vunpack.c.l.b16 %v78
  %v292 = vunpack.c.l.b16 %v79
  %v293 = vunpack.c.l.b16 %v80
  %v294 = vunpack.c.l.b16 %v81
  %v295 = vunpack.c.l.b16 %v82
  %v296 = vunpack.c.l.b16 %v83
  %v297 = vunpack.c.l.b16 %v84
  %v298 = vunpack.c.l.b16 %v85
  %v299 = vunpack.c.l.b16 %v86
  %v300 = vunpack.c.l.b16 %v87
  %v301 = vunpack.c.l.b16 %v88
  %v302 = vunpack.c.l.b16 %v89
  %v303 = vunpack.c.l.b16 %v90
  %v304 = vunpack.c.l.b16 %v91
  %v305 = vunpack.c.l.b16 %v92
  %v306 = vunpack.c.l.b16 %v93
  %v307 = vunpack.c.l.b16 %v94
  %v308 = vunpack.c.l.b16 %v95
  %v309 = vunpack.c.l.b16 %v96
  %v310 = vunpack.c.l.b16 %v97
  %v311 = vunpack.c.l.b16 %v98
  %v312 = vunpack.c.l.b16 %v99
  %v313 = vunpack.c.l.b16 %v100
  %v314 = vunpack.c.l.b16 %v101
  %v315 = vunpack.c.l.b16 %v102
  %v316 = vunpack.c.l.b16 %v103
  %v317 = vunpack.c.l.b16 %v104
  %v318 = vunpack.c.l.b16 %v105
  %v319 = vunpack.c.l.b16 %v106
  %v320 = vunpack.c.l.b16 %v107
  %v321 = vunpack.c.l.b16 %v108
  %v322 = vunpack.c.l.b16 %v109
  %v323 = vunpack.c.l.b16 %v110
  %v324 = vunpack.c.l.b16 %v111
  %v325 = vunpack.c.l.b16 %v112
  %v326 = vunpack.c.l.b16 %v113
  %v327 = vunpack.c.l.b16 %v114
  %v328 = vunpack.c.l.b16 %v115
  %v329 = vunpack.c.l.b16 %v116
  %v330 = vunpack.c.l.b16 %v117
  %v331 = vunpack.c.l.b16 %v118
  %v332 = vunpack.c.l.b16 %v119
  %v333 = vunpack.c.l.b16 %v120
  %v334 = vunpack.c.l.b16 %v121
  %v335 = vunpack.c.l.b16 %v122
  %v336 = vunpack.c.l.b16 %v123
  %v337 = vunpack.c.l.b16 %v124
  %v338 = vunpack.c.l.b16 %v125
  %v339 = vunpack.c.l.b16 %v126
  %v340 = vunpack.c.l.b16 %v127
  %v341 = vunpack.c.l.b16 %v128
  %v342 = vunpack.c.l.b16 %v129
  %v343 = vunpack.c.l.b16 %v130
  %v344 = vunpack.c.l.b16 %v131
  %v345 = vunpack.c.l.b16 %v132
  %v346 = vunpack.c.l.b16 %v133
  %v347 = vunpack.c.l.b16 %v134
  %v348 = vunpack.c.l.b16 %v135
  %v349 = vunpack.c.l.b16 %v136
  %v350 = vunpack.c.l.b16 %v137
  %v351 = vpack.c.b16 %v256, %v255
  %v352 = vpack.c.b16 %v258, %v257
  %v353 = vpack.c.b16 %v260, %v259
  %v354 = vpack.c.b16 %v262, %v261
  %v355 = vpack.c.b16 %v264, %v263
  %v356 = vpack.c.b16 %v266, %v265
  %v357 = vpack.c.b16 %v268, %v267
  %v358 = vpack.c.b16 %v270, %v269
  %v359 = vpack.c.b16 %v272, %v271
  %v360 = vpack.c.b16 %v274, %v273
  %v361 = vpack.c.b16 %v276, %v275
  %v362 = vpack.c.b16 %v278, %v277
  %v363 = vpack.c.b16 %v280, %v279
  %v364 = vpack.c.b16 %v282, %v281
  %v365 = vpack.c.b16 %v284, %v283
  %v366 = vpack.c.b16 %v286, %v285
  %v367 = vpack.c.b16 %v288, %v287
  %v368 = vpack.c.b16 %v290, %v289
  %v369 = vpack.c.b16 %v292, %v291
  %v370 = vpack.c.b16 %v294, %v293
  %v371 = vpack.c.b16 %v296, %v295
  %v372 = vpack.c.b16 %v298, %v297
  %v373 = vpack.c.b16 %v300, %v299
  %v374 = vpack.c.b16 %v302, %v301
  %v375 = vpack.c.b16 %v304, %v303
  %v376 = vpack.c.b16 %v306, %v305
  %v377 = vpack.c.b16 %v308, %v307
  %v378 = vpack.c.b16 %v310, %v309
  %v379 = vpack.c.b16 %v312, %v311
  %v380 = vpack.c.b16 %v314, %v313
  %v381 = vpack.c.b16 %v316, %v315
  %v382 = vpack.c.b16 %v318, %v317
  %v383 = vpack.c.b16 %v320, %v319
  %v384 = vpack.c.b16 %v322, %v321
  %v385 = vpack.c.b16 %v324, %v323
  %v386 = vpack.c.b16 %v326, %v325
  %v387 = vpack.c.b16 %v328, %v327
  %v388 = vpack.c.b16 %v330, %v329
  %v389 = vpack.c.b16 %v332, %v331
  %v390 = vpack.c.b16 %v334, %v333
  %v391 = vpack.c.b16 %v336, %v335
  %v392 = vpack.c.b16 %v338, %v337
  %v393 = vpack.c.b16 %v340, %v339
  %v394 = vpack.c.b16 %v342, %v341
  %v395 = vpack.c.b16 %v344, %v343
  %v396 = vpack.c.b16 %v346, %v345
  %v397 = vpack.c.b16 %v348, %v347
  %v398 = vpack.c.b16 %v350, %v349
  %447 = vmatprep.subr.bf16.mxu0 0
  %448 = vmatpush1.bf16.msra.mxu0 %v351
  %449 = vmatprep.subr.bf16.mxu0 0
  %450 = vmatpush1.bf16.msra.mxu0 %v352
  %451 = vmatprep.subr.bf16.mxu0 0
  %452 = vmatpush1.bf16.msra.mxu0 %v353
  %453 = vmatprep.subr.bf16.mxu0 0
  %454 = vmatpush1.bf16.msra.mxu0 %v354
  %455 = vmatprep.subr.bf16.mxu0 0
  %456 = vmatpush1.bf16.msra.mxu0 %v355
  %457 = vmatprep.subr.bf16.mxu0 0
  %458 = vmatpush1.bf16.msra.mxu0 %v356
  %459 = vmatprep.subr.bf16.mxu0 0
  %460 = vmatpush1.bf16.msra.mxu0 %v357
  %461 = vmatprep.subr.bf16.mxu0 0
  %462 = vmatpush1.bf16.msra.mxu0 %v358
  %463 = vmatprep.subr.bf16.mxu0 0
  %464 = vmatpush1.bf16.msra.mxu0 %v359
  %465 = vmatprep.subr.bf16.mxu0 0
  %466 = vmatpush1.bf16.msra.mxu0 %v360
  %467 = vmatprep.subr.bf16.mxu0 0
  %468 = vmatpush1.bf16.msra.mxu0 %v361
  %469 = vmatprep.subr.bf16.mxu0 0
  %470 = vmatpush1.bf16.msra.mxu0 %v362
  %471 = vmatprep.subr.bf16.mxu0 0
  %472 = vmatpush1.bf16.msra.mxu0 %v363
  %473 = vmatprep.subr.bf16.mxu0 0
  %474 = vmatpush1.bf16.msra.mxu0 %v364
  %475 = vmatprep.subr.bf16.mxu0 0
  %476 = vmatpush1.bf16.msra.mxu0 %v365
  %477 = vmatprep.subr.bf16.mxu0 0
  %478 = vmatpush1.bf16.msra.mxu0 %v366
  %479 = vmatprep.mubr.bf16.mxu0 %v148
  %480 = vmatmul.mubr.bf16.gmra.mrb[0].mxu0 %v147
  %v481 = vpop.f32.mrb[0].mxu0
  %v482 = vadd.f32 0.0, %v481
  %v483 = vpop.f32.mrb[0].mxu0
  %v484 = vpop.f32.mrb[0].mxu0
  %v485 = vpop.f32.mrb[0].mxu0
  %486 = vdwg.mxu0
  %487 = vmatprep.subr.bf16.mxu0 0
  %488 = vmatpush1.bf16.msra.mxu0 %v367
  %489 = vmatprep.subr.bf16.mxu0 0
  %490 = vmatpush1.bf16.msra.mxu0 %v368
  %491 = vmatprep.subr.bf16.mxu0 0
  %492 = vmatpush1.bf16.msra.mxu0 %v369
  %493 = vmatprep.subr.bf16.mxu0 0
  %494 = vmatpush1.bf16.msra.mxu0 %v370
  %495 = vmatprep.subr.bf16.mxu0 0
  %496 = vmatpush1.bf16.msra.mxu0 %v371
  %497 = vmatprep.subr.bf16.mxu0 0
  %498 = vmatpush1.bf16.msra.mxu0 %v372
  %499 = vmatprep.subr.bf16.mxu0 0
  %500 = vmatpush1.bf16.msra.mxu0 %v373
  %501 = vmatprep.subr.bf16.mxu0 0
  %502 = vmatpush1.bf16.msra.mxu0 %v374
  %503 = vmatprep.subr.bf16.mxu0 0
  %504 = vmatpush1.bf16.msra.mxu0 %v375
  %505 = vmatprep.subr.bf16.mxu0 0
  %506 = vmatpush1.bf16.msra.mxu0 %v376
  %507 = vmatprep.subr.bf16.mxu0 0
  %508 = vmatpush1.bf16.msra.mxu0 %v377
  %509 = vmatprep.subr.bf16.mxu0 0
  %510 = vmatpush1.bf16.msra.mxu0 %v378
  %511 = vmatprep.subr.bf16.mxu0 0
  %512 = vmatpush1.bf16.msra.mxu0 %v379
  %513 = vmatprep.subr.bf16.mxu0 0
  %514 = vmatpush1.bf16.msra.mxu0 %v380
  %515 = vmatprep.subr.bf16.mxu0 0
  %516 = vmatpush1.bf16.msra.mxu0 %v381
  %517 = vmatprep.subr.bf16.mxu0 0
  %518 = vmatpush1.bf16.msra.mxu0 %v382
  %519 = vmatprep.mubr.bf16.mxu0 %v150
  %520 = vmatmul.mubr.bf16.gmra.mrb[0].mxu0 %v149
  %v521 = vpop.f32.mrb[0].mxu0
  %v522 = vadd.f32 %v482, %v521
  %v523 = vpop.f32.mrb[0].mxu0
  %v524 = vpop.f32.mrb[0].mxu0
  %v525 = vpop.f32.mrb[0].mxu0
  %526 = vdwg.mxu0
  %527 = vmatprep.subr.bf16.mxu0 0
  %528 = vmatpush1.bf16.msra.mxu0 %v383
  %529 = vmatprep.subr.bf16.mxu0 0
  %530 = vmatpush1.bf16.msra.mxu0 %v384
  %531 = vmatprep.subr.bf16.mxu0 0
  %532 = vmatpush1.bf16.msra.mxu0 %v385
  %533 = vmatprep.subr.bf16.mxu0 0
  %534 = vmatpush1.bf16.msra.mxu0 %v386
  %535 = vmatprep.subr.bf16.mxu0 0
  %536 = vmatpush1.bf16.msra.mxu0 %v387
  %537 = vmatprep.subr.bf16.mxu0 0
  %538 = vmatpush1.bf16.msra.mxu0 %v388
  %539 = vmatprep.subr.bf16.mxu0 0
  %540 = vmatpush1.bf16.msra.mxu0 %v389
  %541 = vmatprep.subr.bf16.mxu0 0
  %542 = vmatpush1.bf16.msra.mxu0 %v390
  %543 = vmatprep.subr.bf16.mxu0 0
  %544 = vmatpush1.bf16.msra.mxu0 %v391
  %545 = vmatprep.subr.bf16.mxu0 0
  %546 = vmatpush1.bf16.msra.mxu0 %v392
  %547 = vmatprep.subr.bf16.mxu0 0
  %548 = vmatpush1.bf16.msra.mxu0 %v393
  %549 = vmatprep.subr.bf16.mxu0 0
  %550 = vmatpush1.bf16.msra.mxu0 %v394
  %551 = vmatprep.subr.bf16.mxu0 0
  %552 = vmatpush1.bf16.msra.mxu0 %v395
  %553 = vmatprep.subr.bf16.mxu0 0
  %554 = vmatpush1.bf16.msra.mxu0 %v396
  %555 = vmatprep.subr.bf16.mxu0 0
  %556 = vmatpush1.bf16.msra.mxu0 %v397
  %557 = vmatprep.subr.bf16.mxu0 0
  %558 = vmatpush1.bf16.msra.mxu0 %v398
  %559 = vmatprep.mubr.bf16.mxu0 %v152
  %560 = vmatmul.mubr.bf16.gmra.mrb[0].mxu0 %v151
  %v561 = vpop.f32.mrb[0].mxu0
  %v562 = vadd.f32 %v522, %v561
  %v563 = vpop.f32.mrb[0].mxu0
  %v564 = vpop.f32.mrb[0].mxu0
  %v565 = vpop.f32.mrb[0].mxu0
  %566 = vdwg.mxu0
  %v567 = vmul.f32 %v562, %v562
  %vm568 = vcmask 261120
  %v569 = vsel %vm568, %v567, 0.0
  %570 = vadd.xlane.f32.xlu0 %v569
  %v571 = vpop.xlane.xlu0 %570
  %v572 = vadd.f32 %v571, 1e-12
  %v573 = vrsqrt.pop %v572
  %v574 = vmul.f32 %v562, %v573
  %v575 = vld [vmem:[%s7] sm:$0x1]
  %v576 = vld [vmem:[%s7 + $0x1] sm:$0x1]
  %v577 = vld [vmem:[%s7 + $0x2] sm:$0x1]
  %v578 = vld [vmem:[%s7 + $0x3] sm:$0x1]
  %v579 = vld [vmem:[%s7 + $0x4] sm:$0x1]
  %v580 = vld [vmem:[%s7 + $0x5] sm:$0x1]
  %v581 = vld [vmem:[%s7 + $0x6] sm:$0x1]
  %v582 = vsel %vm568, %v574, 0.0
  %583 = vadd.xlane.f32.xlu0 %v582
  %v584 = vpop.xlane.xlu0 %583
  %v585 = vrcp.pop 32.0
  %v586 = vmul.f32 %v584, %v585
  %v587 = vsub.f32 %v574, %v586
  %v588 = vmul.f32 %v587, %v587
  %v589 = vsel %vm568, %v588, 0.0
  %590 = vadd.xlane.f32.xlu0 %v589
  %v591 = vpop.xlane.xlu0 %590
  %v592 = vmul.f32 %v591, %v585
  %v593 = vadd.f32 %v592, 1e-06
  %v594 = vrsqrt.pop %v593
  %v595 = vmul.f32 %v587, %v594
  %v596 = vlaneseq
  %v597 = vshrl.u32 %v596, 7
  %v598 = vsub.s32 0, %v597
  %v599 = vrot.slane %v578, %v598
  %v600 = vmul.f32 %v595, %v599
  %v601 = vlaneseq
  %v602 = vshrl.u32 %v601, 7
  %v603 = vsub.s32 0, %v602
  %v604 = vrot.slane %v579, %v603
  %v605 = vadd.f32 %v600, %v604
  %v606 = vpack.c.bf16 %v605, %v605
  %v607 = vld [vmem:[%s2] sm:$0xf]
  %v608 = vld [vmem:[%s2 + $0x4] sm:$0xf]
  %v609 = vld [vmem:[%s2 + $0x8] sm:$0xf]
  %v610 = vld [vmem:[%s2 + $0xc] sm:$0xf]
  %v611 = vld [vmem:[%s2 + $0x10] sm:$0xf]
  %v612 = vld [vmem:[%s2 + $0x14] sm:$0xf]
  %v613 = vld [vmem:[%s2 + $0x18] sm:$0xf]
  %v614 = vld [vmem:[%s2 + $0x1c] sm:$0xf]
  %v615 = vld [vmem:[%s2 + $0x20] sm:$0xf]
  %v616 = vld [vmem:[%s2 + $0x24] sm:$0xf]
  %v617 = vld [vmem:[%s2 + $0x28] sm:$0xf]
  %v618 = vld [vmem:[%s2 + $0x2c] sm:$0xf]
  %v619 = vld [vmem:[%s2 + $0x30] sm:$0xf]
  %v620 = vld [vmem:[%s2 + $0x34] sm:$0xf]
  %v621 = vld [vmem:[%s2 + $0x38] sm:$0xf]
  %v622 = vld [vmem:[%s2 + $0x3c] sm:$0xf]
  %v623 = vld [vmem:[%s2 + $0x40] sm:$0xf]
  %v624 = vld [vmem:[%s2 + $0x44] sm:$0xf]
  %v625 = vld [vmem:[%s2 + $0x48] sm:$0xf]
  %v626 = vld [vmem:[%s2 + $0x4c] sm:$0xf]
  %v627 = vld [vmem:[%s2 + $0x50] sm:$0xf]
  %v628 = vld [vmem:[%s2 + $0x54] sm:$0xf]
  %v629 = vld [vmem:[%s2 + $0x58] sm:$0xf]
  %v630 = vld [vmem:[%s2 + $0x5c] sm:$0xf]
  %v631 = vld [vmem:[%s2 + $0x60] sm:$0xf]
  %v632 = vld [vmem:[%s2 + $0x64] sm:$0xf]
  %v633 = vld [vmem:[%s2 + $0x68] sm:$0xf]
  %v634 = vld [vmem:[%s2 + $0x6c] sm:$0xf]
  %v635 = vld [vmem:[%s2 + $0x70] sm:$0xf]
  %v636 = vld [vmem:[%s2 + $0x74] sm:$0xf]
  %v637 = vld [vmem:[%s2 + $0x78] sm:$0xf]
  %v638 = vld [vmem:[%s2 + $0x7c] sm:$0xf]
  %v639 = vld [vmem:[%s2 + $0x80] sm:$0xf]
  %v640 = vld [vmem:[%s2 + $0x84] sm:$0xf]
  %v641 = vld [vmem:[%s2 + $0x88] sm:$0xf]
  %v642 = vld [vmem:[%s2 + $0x8c] sm:$0xf]
  %v643 = vld [vmem:[%s2 + $0x90] sm:$0xf]
  %v644 = vld [vmem:[%s2 + $0x94] sm:$0xf]
  %v645 = vld [vmem:[%s2 + $0x98] sm:$0xf]
  %v646 = vld [vmem:[%s2 + $0x9c] sm:$0xf]
  %v647 = vld [vmem:[%s2 + $0xa0] sm:$0xf]
  %v648 = vld [vmem:[%s2 + $0xa4] sm:$0xf]
  %v649 = vld [vmem:[%s2 + $0xa8] sm:$0xf]
  %v650 = vld [vmem:[%s2 + $0xac] sm:$0xf]
  %v651 = vld [vmem:[%s2 + $0xb0] sm:$0xf]
  %v652 = vld [vmem:[%s2 + $0xb4] sm:$0xf]
  %v653 = vld [vmem:[%s2 + $0xb8] sm:$0xf]
  %v654 = vld [vmem:[%s2 + $0xbc] sm:$0xf]
  %v655 = vld [vmem:[%s3] sm:$0x1]
  %v656 = vld [vmem:[%s3 + $0x1] sm:$0x1]
  %v657 = vld [vmem:[%s3 + $0x2] sm:$0x1]
  %v658 = vld [vmem:[%s3 + $0x3] sm:$0x1]
  %v659 = vld [vmem:[%s3 + $0x4] sm:$0x1]
  %v660 = vld [vmem:[%s3 + $0x5] sm:$0x1]
  %v661 = vld [vmem:[%s3 + $0x6] sm:$0x1]
  %v662 = vld [vmem:[%s3 + $0x7] sm:$0x1]
  %v663 = vld [vmem:[%s3 + $0x8] sm:$0x1]
  %v664 = vld [vmem:[%s3 + $0x9] sm:$0x1]
  %v665 = vld [vmem:[%s3 + $0xa] sm:$0x1]
  %v666 = vld [vmem:[%s3 + $0xb] sm:$0x1]
  %v679 = vlaneseq
  %v680 = vshrl.u32 %v679, 7
  %v681 = vsub.s32 0, %v680
  %v682 = vrot.slane %v655, %v681
  %v683 = vlaneseq
  %v684 = vshrl.u32 %v683, 7
  %v685 = vsub.s32 0, %v684
  %v686 = vrot.slane %v656, %v685
  %v687 = vlaneseq
  %v688 = vshrl.u32 %v687, 7
  %v689 = vsub.s32 0, %v688
  %v690 = vrot.slane %v657, %v689
  %v691 = vlaneseq
  %v692 = vshrl.u32 %v691, 7
  %v693 = vsub.s32 0, %v692
  %v694 = vrot.slane %v658, %v693
  %v695 = vlaneseq
  %v696 = vshrl.u32 %v695, 7
  %v697 = vsub.s32 0, %v696
  %v698 = vrot.slane %v659, %v697
  %v699 = vlaneseq
  %v700 = vshrl.u32 %v699, 7
  %v701 = vsub.s32 0, %v700
  %v702 = vrot.slane %v660, %v701
  %v703 = vlaneseq
  %v704 = vshrl.u32 %v703, 7
  %v705 = vsub.s32 0, %v704
  %v706 = vrot.slane %v661, %v705
  %v707 = vlaneseq
  %v708 = vshrl.u32 %v707, 7
  %v709 = vsub.s32 0, %v708
  %v710 = vrot.slane %v662, %v709
  %v711 = vlaneseq
  %v712 = vshrl.u32 %v711, 7
  %v713 = vsub.s32 0, %v712
  %v714 = vrot.slane %v663, %v713
  %v715 = vlaneseq
  %v716 = vshrl.u32 %v715, 7
  %v717 = vsub.s32 0, %v716
  %v718 = vrot.slane %v664, %v717
  %v719 = vlaneseq
  %v720 = vshrl.u32 %v719, 7
  %v721 = vsub.s32 0, %v720
  %v722 = vrot.slane %v665, %v721
  %v723 = vlaneseq
  %v724 = vshrl.u32 %v723, 7
  %v725 = vsub.s32 0, %v724
  %v726 = vrot.slane %v666, %v725
  %v743 = vunpack.c.l.b16 %v607
  %v744 = vunpack.c.l.b16 %v608
  %v745 = vunpack.c.l.b16 %v609
  %v746 = vunpack.c.l.b16 %v610
  %v747 = vpack.c.b16 %v744, %v743
  %v748 = vpack.c.b16 %v746, %v745
  %v752 = vsel %vm568, %v606, 0
  %754 = vmatprep.subr.bf16.mxu0 0
  %755 = vmatpush1.bf16.msra.mxu0 %v747
  %756 = vmatprep.subr.bf16.mxu0 0
  %757 = vmatpush1.bf16.msra.mxu0 %v748
  %758 = vmatprep.subr.bf16.mxu0 0
  %759 = vmatpush1.bf16.msra.mxu0 0
  %760 = vmatprep.subr.bf16.mxu0 0
  %761 = vmatpush1.bf16.msra.mxu0 0
  %762 = vmatprep.subr.bf16.mxu0 0
  %763 = vmatpush1.bf16.msra.mxu0 0
  %764 = vmatprep.subr.bf16.mxu0 0
  %765 = vmatpush1.bf16.msra.mxu0 0
  %766 = vmatprep.subr.bf16.mxu0 0
  %767 = vmatpush1.bf16.msra.mxu0 0
  %768 = vmatprep.subr.bf16.mxu0 0
  %769 = vmatpush1.bf16.msra.mxu0 0
  %770 = vmatprep.subr.bf16.mxu0 0
  %771 = vmatpush1.bf16.msra.mxu0 0
  %772 = vmatprep.subr.bf16.mxu0 0
  %773 = vmatpush1.bf16.msra.mxu0 0
  %774 = vmatprep.subr.bf16.mxu0 0
  %775 = vmatpush1.bf16.msra.mxu0 0
  %776 = vmatprep.subr.bf16.mxu0 0
  %777 = vmatpush1.bf16.msra.mxu0 0
  %778 = vmatprep.subr.bf16.mxu0 0
  %779 = vmatpush1.bf16.msra.mxu0 0
  %780 = vmatprep.subr.bf16.mxu0 0
  %781 = vmatpush1.bf16.msra.mxu0 0
  %782 = vmatprep.subr.bf16.mxu0 0
  %783 = vmatpush1.bf16.msra.mxu0 0
  %784 = vmatprep.subr.bf16.mxu0 0
  %785 = vmatpush1.bf16.msra.mxu0 0
  %786 = vmatprep.mubr.bf16.mxu0 0
  %787 = vmatmul.mubr.bf16.gmra.mrb[0].mxu0 %v752
  %v788 = vpop.f32.mrb[0].mxu0
  %v789 = vadd.f32 %v682, %v788
  %v790 = vpop.f32.mrb[0].mxu0
  %v791 = vpop.f32.mrb[0].mxu0
  %v792 = vpop.f32.mrb[0].mxu0
  %793 = vdwg.mxu0
  %v798 = vunpack.c.l.b16 %v611
  %v799 = vunpack.c.l.b16 %v612
  %v800 = vunpack.c.l.b16 %v613
  %v801 = vunpack.c.l.b16 %v614
  %v802 = vpack.c.b16 %v799, %v798
  %v803 = vpack.c.b16 %v801, %v800
  %806 = vmatprep.subr.bf16.mxu0 0
  %807 = vmatpush1.bf16.msra.mxu0 %v802
  %808 = vmatprep.subr.bf16.mxu0 0
  %809 = vmatpush1.bf16.msra.mxu0 %v803
  %810 = vmatprep.subr.bf16.mxu0 0
  %811 = vmatpush1.bf16.msra.mxu0 0
  %812 = vmatprep.subr.bf16.mxu0 0
  %813 = vmatpush1.bf16.msra.mxu0 0
  %814 = vmatprep.subr.bf16.mxu0 0
  %815 = vmatpush1.bf16.msra.mxu0 0
  %816 = vmatprep.subr.bf16.mxu0 0
  %817 = vmatpush1.bf16.msra.mxu0 0
  %818 = vmatprep.subr.bf16.mxu0 0
  %819 = vmatpush1.bf16.msra.mxu0 0
  %820 = vmatprep.subr.bf16.mxu0 0
  %821 = vmatpush1.bf16.msra.mxu0 0
  %822 = vmatprep.subr.bf16.mxu0 0
  %823 = vmatpush1.bf16.msra.mxu0 0
  %824 = vmatprep.subr.bf16.mxu0 0
  %825 = vmatpush1.bf16.msra.mxu0 0
  %826 = vmatprep.subr.bf16.mxu0 0
  %827 = vmatpush1.bf16.msra.mxu0 0
  %828 = vmatprep.subr.bf16.mxu0 0
  %829 = vmatpush1.bf16.msra.mxu0 0
  %830 = vmatprep.subr.bf16.mxu0 0
  %831 = vmatpush1.bf16.msra.mxu0 0
  %832 = vmatprep.subr.bf16.mxu0 0
  %833 = vmatpush1.bf16.msra.mxu0 0
  %834 = vmatprep.subr.bf16.mxu0 0
  %835 = vmatpush1.bf16.msra.mxu0 0
  %836 = vmatprep.subr.bf16.mxu0 0
  %837 = vmatpush1.bf16.msra.mxu0 0
  %838 = vmatprep.mubr.bf16.mxu0 0
  %839 = vmatmul.mubr.bf16.gmra.mrb[0].mxu0 %v752
  %v840 = vpop.f32.mrb[0].mxu0
  %v841 = vadd.f32 %v686, %v840
  %v842 = vpop.f32.mrb[0].mxu0
  %v843 = vpop.f32.mrb[0].mxu0
  %v844 = vpop.f32.mrb[0].mxu0
  %845 = vdwg.mxu0
  %v850 = vunpack.c.l.b16 %v615
  %v851 = vunpack.c.l.b16 %v616
  %v852 = vunpack.c.l.b16 %v617
  %v853 = vunpack.c.l.b16 %v618
  %v854 = vpack.c.b16 %v851, %v850
  %v855 = vpack.c.b16 %v853, %v852
  %858 = vmatprep.subr.bf16.mxu0 0
  %859 = vmatpush1.bf16.msra.mxu0 %v854
  %860 = vmatprep.subr.bf16.mxu0 0
  %861 = vmatpush1.bf16.msra.mxu0 %v855
  %862 = vmatprep.subr.bf16.mxu0 0
  %863 = vmatpush1.bf16.msra.mxu0 0
  %864 = vmatprep.subr.bf16.mxu0 0
  %865 = vmatpush1.bf16.msra.mxu0 0
  %866 = vmatprep.subr.bf16.mxu0 0
  %867 = vmatpush1.bf16.msra.mxu0 0
  %868 = vmatprep.subr.bf16.mxu0 0
  %869 = vmatpush1.bf16.msra.mxu0 0
  %870 = vmatprep.subr.bf16.mxu0 0
  %871 = vmatpush1.bf16.msra.mxu0 0
  %872 = vmatprep.subr.bf16.mxu0 0
  %873 = vmatpush1.bf16.msra.mxu0 0
  %874 = vmatprep.subr.bf16.mxu0 0
  %875 = vmatpush1.bf16.msra.mxu0 0
  %876 = vmatprep.subr.bf16.mxu0 0
  %877 = vmatpush1.bf16.msra.mxu0 0
  %878 = vmatprep.subr.bf16.mxu0 0
  %879 = vmatpush1.bf16.msra.mxu0 0
  %880 = vmatprep.subr.bf16.mxu0 0
  %881 = vmatpush1.bf16.msra.mxu0 0
  %882 = vmatprep.subr.bf16.mxu0 0
  %883 = vmatpush1.bf16.msra.mxu0 0
  %884 = vmatprep.subr.bf16.mxu0 0
  %885 = vmatpush1.bf16.msra.mxu0 0
  %886 = vmatprep.subr.bf16.mxu0 0
  %887 = vmatpush1.bf16.msra.mxu0 0
  %888 = vmatprep.subr.bf16.mxu0 0
  %889 = vmatpush1.bf16.msra.mxu0 0
  %890 = vmatprep.mubr.bf16.mxu0 0
  %891 = vmatmul.mubr.bf16.gmra.mrb[0].mxu0 %v752
  %v892 = vpop.f32.mrb[0].mxu0
  %v893 = vadd.f32 %v690, %v892
  %v894 = vpop.f32.mrb[0].mxu0
  %v895 = vpop.f32.mrb[0].mxu0
  %v896 = vpop.f32.mrb[0].mxu0
  %897 = vdwg.mxu0
  %v902 = vunpack.c.l.b16 %v619
  %v903 = vunpack.c.l.b16 %v620
  %v904 = vunpack.c.l.b16 %v621
  %v905 = vunpack.c.l.b16 %v622
  %v906 = vpack.c.b16 %v903, %v902
  %v907 = vpack.c.b16 %v905, %v904
  %910 = vmatprep.subr.bf16.mxu0 0
  %911 = vmatpush1.bf16.msra.mxu0 %v906
  %912 = vmatprep.subr.bf16.mxu0 0
  %913 = vmatpush1.bf16.msra.mxu0 %v907
  %914 = vmatprep.subr.bf16.mxu0 0
  %915 = vmatpush1.bf16.msra.mxu0 0
  %916 = vmatprep.subr.bf16.mxu0 0
  %917 = vmatpush1.bf16.msra.mxu0 0
  %918 = vmatprep.subr.bf16.mxu0 0
  %919 = vmatpush1.bf16.msra.mxu0 0
  %920 = vmatprep.subr.bf16.mxu0 0
  %921 = vmatpush1.bf16.msra.mxu0 0
  %922 = vmatprep.subr.bf16.mxu0 0
  %923 = vmatpush1.bf16.msra.mxu0 0
  %924 = vmatprep.subr.bf16.mxu0 0
  %925 = vmatpush1.bf16.msra.mxu0 0
  %926 = vmatprep.subr.bf16.mxu0 0
  %927 = vmatpush1.bf16.msra.mxu0 0
  %928 = vmatprep.subr.bf16.mxu0 0
  %929 = vmatpush1.bf16.msra.mxu0 0
  %930 = vmatprep.subr.bf16.mxu0 0
  %931 = vmatpush1.bf16.msra.mxu0 0
  %932 = vmatprep.subr.bf16.mxu0 0
  %933 = vmatpush1.bf16.msra.mxu0 0
  %934 = vmatprep.subr.bf16.mxu0 0
  %935 = vmatpush1.bf16.msra.mxu0 0
  %936 = vmatprep.subr.bf16.mxu0 0
  %937 = vmatpush1.bf16.msra.mxu0 0
  %938 = vmatprep.subr.bf16.mxu0 0
  %939 = vmatpush1.bf16.msra.mxu0 0
  %940 = vmatprep.subr.bf16.mxu0 0
  %941 = vmatpush1.bf16.msra.mxu0 0
  %942 = vmatprep.mubr.bf16.mxu0 0
  %943 = vmatmul.mubr.bf16.gmra.mrb[0].mxu0 %v752
  %v944 = vpop.f32.mrb[0].mxu0
  %v945 = vadd.f32 %v694, %v944
  %v946 = vpop.f32.mrb[0].mxu0
  %v947 = vpop.f32.mrb[0].mxu0
  %v948 = vpop.f32.mrb[0].mxu0
  %949 = vdwg.mxu0
  %v954 = vunpack.c.l.b16 %v623
  %v955 = vunpack.c.l.b16 %v624
  %v956 = vunpack.c.l.b16 %v625
  %v957 = vunpack.c.l.b16 %v626
  %v958 = vpack.c.b16 %v955, %v954
  %v959 = vpack.c.b16 %v957, %v956
  %962 = vmatprep.subr.bf16.mxu0 0
  %963 = vmatpush1.bf16.msra.mxu0 %v958
  %964 = vmatprep.subr.bf16.mxu0 0
  %965 = vmatpush1.bf16.msra.mxu0 %v959
  %966 = vmatprep.subr.bf16.mxu0 0
  %967 = vmatpush1.bf16.msra.mxu0 0
  %968 = vmatprep.subr.bf16.mxu0 0
  %969 = vmatpush1.bf16.msra.mxu0 0
  %970 = vmatprep.subr.bf16.mxu0 0
  %971 = vmatpush1.bf16.msra.mxu0 0
  %972 = vmatprep.subr.bf16.mxu0 0
  %973 = vmatpush1.bf16.msra.mxu0 0
  %974 = vmatprep.subr.bf16.mxu0 0
  %975 = vmatpush1.bf16.msra.mxu0 0
  %976 = vmatprep.subr.bf16.mxu0 0
  %977 = vmatpush1.bf16.msra.mxu0 0
  %978 = vmatprep.subr.bf16.mxu0 0
  %979 = vmatpush1.bf16.msra.mxu0 0
  %980 = vmatprep.subr.bf16.mxu0 0
  %981 = vmatpush1.bf16.msra.mxu0 0
  %982 = vmatprep.subr.bf16.mxu0 0
  %983 = vmatpush1.bf16.msra.mxu0 0
  %984 = vmatprep.subr.bf16.mxu0 0
  %985 = vmatpush1.bf16.msra.mxu0 0
  %986 = vmatprep.subr.bf16.mxu0 0
  %987 = vmatpush1.bf16.msra.mxu0 0
  %988 = vmatprep.subr.bf16.mxu0 0
  %989 = vmatpush1.bf16.msra.mxu0 0
  %990 = vmatprep.subr.bf16.mxu0 0
  %991 = vmatpush1.bf16.msra.mxu0 0
  %992 = vmatprep.subr.bf16.mxu0 0
  %993 = vmatpush1.bf16.msra.mxu0 0
  %994 = vmatprep.mubr.bf16.mxu0 0
  %995 = vmatmul.mubr.bf16.gmra.mrb[0].mxu0 %v752
  %v996 = vpop.f32.mrb[0].mxu0
  %v997 = vadd.f32 %v698, %v996
  %v998 = vpop.f32.mrb[0].mxu0
  %v999 = vpop.f32.mrb[0].mxu0
  %v1000 = vpop.f32.mrb[0].mxu0
  %1001 = vdwg.mxu0
  %v1006 = vunpack.c.l.b16 %v627
  %v1007 = vunpack.c.l.b16 %v628
  %v1008 = vunpack.c.l.b16 %v629
  %v1009 = vunpack.c.l.b16 %v630
  %v1010 = vpack.c.b16 %v1007, %v1006
  %v1011 = vpack.c.b16 %v1009, %v1008
  %1014 = vmatprep.subr.bf16.mxu0 0
  %1015 = vmatpush1.bf16.msra.mxu0 %v1010
  %1016 = vmatprep.subr.bf16.mxu0 0
  %1017 = vmatpush1.bf16.msra.mxu0 %v1011
  %1018 = vmatprep.subr.bf16.mxu0 0
  %1019 = vmatpush1.bf16.msra.mxu0 0
  %1020 = vmatprep.subr.bf16.mxu0 0
  %1021 = vmatpush1.bf16.msra.mxu0 0
  %1022 = vmatprep.subr.bf16.mxu0 0
  %1023 = vmatpush1.bf16.msra.mxu0 0
  %1024 = vmatprep.subr.bf16.mxu0 0
  %1025 = vmatpush1.bf16.msra.mxu0 0
  %1026 = vmatprep.subr.bf16.mxu0 0
  %1027 = vmatpush1.bf16.msra.mxu0 0
  %1028 = vmatprep.subr.bf16.mxu0 0
  %1029 = vmatpush1.bf16.msra.mxu0 0
  %1030 = vmatprep.subr.bf16.mxu0 0
  %1031 = vmatpush1.bf16.msra.mxu0 0
  %1032 = vmatprep.subr.bf16.mxu0 0
  %1033 = vmatpush1.bf16.msra.mxu0 0
  %1034 = vmatprep.subr.bf16.mxu0 0
  %1035 = vmatpush1.bf16.msra.mxu0 0
  %1036 = vmatprep.subr.bf16.mxu0 0
  %1037 = vmatpush1.bf16.msra.mxu0 0
  %1038 = vmatprep.subr.bf16.mxu0 0
  %1039 = vmatpush1.bf16.msra.mxu0 0
  %1040 = vmatprep.subr.bf16.mxu0 0
  %1041 = vmatpush1.bf16.msra.mxu0 0
  %1042 = vmatprep.subr.bf16.mxu0 0
  %1043 = vmatpush1.bf16.msra.mxu0 0
  %1044 = vmatprep.subr.bf16.mxu0 0
  %1045 = vmatpush1.bf16.msra.mxu0 0
  %1046 = vmatprep.mubr.bf16.mxu0 0
  %1047 = vmatmul.mubr.bf16.gmra.mrb[0].mxu0 %v752
  %v1048 = vpop.f32.mrb[0].mxu0
  %v1049 = vadd.f32 %v702, %v1048
  %v1050 = vpop.f32.mrb[0].mxu0
  %v1051 = vpop.f32.mrb[0].mxu0
  %v1052 = vpop.f32.mrb[0].mxu0
  %1053 = vdwg.mxu0
  %v1058 = vunpack.c.l.b16 %v631
  %v1059 = vunpack.c.l.b16 %v632
  %v1060 = vunpack.c.l.b16 %v633
  %v1061 = vunpack.c.l.b16 %v634
  %v1062 = vpack.c.b16 %v1059, %v1058
  %v1063 = vpack.c.b16 %v1061, %v1060
  %1066 = vmatprep.subr.bf16.mxu0 0
  %1067 = vmatpush1.bf16.msra.mxu0 %v1062
  %1068 = vmatprep.subr.bf16.mxu0 0
  %1069 = vmatpush1.bf16.msra.mxu0 %v1063
  %1070 = vmatprep.subr.bf16.mxu0 0
  %1071 = vmatpush1.bf16.msra.mxu0 0
  %1072 = vmatprep.subr.bf16.mxu0 0
  %1073 = vmatpush1.bf16.msra.mxu0 0
  %1074 = vmatprep.subr.bf16.mxu0 0
  %1075 = vmatpush1.bf16.msra.mxu0 0
  %1076 = vmatprep.subr.bf16.mxu0 0
  %1077 = vmatpush1.bf16.msra.mxu0 0
  %1078 = vmatprep.subr.bf16.mxu0 0
  %1079 = vmatpush1.bf16.msra.mxu0 0
  %1080 = vmatprep.subr.bf16.mxu0 0
  %1081 = vmatpush1.bf16.msra.mxu0 0
  %1082 = vmatprep.subr.bf16.mxu0 0
  %1083 = vmatpush1.bf16.msra.mxu0 0
  %1084 = vmatprep.subr.bf16.mxu0 0
  %1085 = vmatpush1.bf16.msra.mxu0 0
  %1086 = vmatprep.subr.bf16.mxu0 0
  %1087 = vmatpush1.bf16.msra.mxu0 0
  %1088 = vmatprep.subr.bf16.mxu0 0
  %1089 = vmatpush1.bf16.msra.mxu0 0
  %1090 = vmatprep.subr.bf16.mxu0 0
  %1091 = vmatpush1.bf16.msra.mxu0 0
  %1092 = vmatprep.subr.bf16.mxu0 0
  %1093 = vmatpush1.bf16.msra.mxu0 0
  %1094 = vmatprep.subr.bf16.mxu0 0
  %1095 = vmatpush1.bf16.msra.mxu0 0
  %1096 = vmatprep.subr.bf16.mxu0 0
  %1097 = vmatpush1.bf16.msra.mxu0 0
  %1098 = vmatprep.mubr.bf16.mxu0 0
  %1099 = vmatmul.mubr.bf16.gmra.mrb[0].mxu0 %v752
  %v1100 = vpop.f32.mrb[0].mxu0
  %v1101 = vadd.f32 %v706, %v1100
  %v1102 = vpop.f32.mrb[0].mxu0
  %v1103 = vpop.f32.mrb[0].mxu0
  %v1104 = vpop.f32.mrb[0].mxu0
  %1105 = vdwg.mxu0
  %v1110 = vunpack.c.l.b16 %v635
  %v1111 = vunpack.c.l.b16 %v636
  %v1112 = vunpack.c.l.b16 %v637
  %v1113 = vunpack.c.l.b16 %v638
  %v1114 = vpack.c.b16 %v1111, %v1110
  %v1115 = vpack.c.b16 %v1113, %v1112
  %1118 = vmatprep.subr.bf16.mxu0 0
  %1119 = vmatpush1.bf16.msra.mxu0 %v1114
  %1120 = vmatprep.subr.bf16.mxu0 0
  %1121 = vmatpush1.bf16.msra.mxu0 %v1115
  %1122 = vmatprep.subr.bf16.mxu0 0
  %1123 = vmatpush1.bf16.msra.mxu0 0
  %1124 = vmatprep.subr.bf16.mxu0 0
  %1125 = vmatpush1.bf16.msra.mxu0 0
  %1126 = vmatprep.subr.bf16.mxu0 0
  %1127 = vmatpush1.bf16.msra.mxu0 0
  %1128 = vmatprep.subr.bf16.mxu0 0
  %1129 = vmatpush1.bf16.msra.mxu0 0
  %1130 = vmatprep.subr.bf16.mxu0 0
  %1131 = vmatpush1.bf16.msra.mxu0 0
  %1132 = vmatprep.subr.bf16.mxu0 0
  %1133 = vmatpush1.bf16.msra.mxu0 0
  %1134 = vmatprep.subr.bf16.mxu0 0
  %1135 = vmatpush1.bf16.msra.mxu0 0
  %1136 = vmatprep.subr.bf16.mxu0 0
  %1137 = vmatpush1.bf16.msra.mxu0 0
  %1138 = vmatprep.subr.bf16.mxu0 0
  %1139 = vmatpush1.bf16.msra.mxu0 0
  %1140 = vmatprep.subr.bf16.mxu0 0
  %1141 = vmatpush1.bf16.msra.mxu0 0
  %1142 = vmatprep.subr.bf16.mxu0 0
  %1143 = vmatpush1.bf16.msra.mxu0 0
  %1144 = vmatprep.subr.bf16.mxu0 0
  %1145 = vmatpush1.bf16.msra.mxu0 0
  %1146 = vmatprep.subr.bf16.mxu0 0
  %1147 = vmatpush1.bf16.msra.mxu0 0
  %1148 = vmatprep.subr.bf16.mxu0 0
  %1149 = vmatpush1.bf16.msra.mxu0 0
  %1150 = vmatprep.mubr.bf16.mxu0 0
  %1151 = vmatmul.mubr.bf16.gmra.mrb[0].mxu0 %v752
  %v1152 = vpop.f32.mrb[0].mxu0
  %v1153 = vadd.f32 %v710, %v1152
  %v1154 = vpop.f32.mrb[0].mxu0
  %v1155 = vpop.f32.mrb[0].mxu0
  %v1156 = vpop.f32.mrb[0].mxu0
  %1157 = vdwg.mxu0
  %v1162 = vunpack.c.l.b16 %v639
  %v1163 = vunpack.c.l.b16 %v640
  %v1164 = vunpack.c.l.b16 %v641
  %v1165 = vunpack.c.l.b16 %v642
  %v1166 = vpack.c.b16 %v1163, %v1162
  %v1167 = vpack.c.b16 %v1165, %v1164
  %1170 = vmatprep.subr.bf16.mxu0 0
  %1171 = vmatpush1.bf16.msra.mxu0 %v1166
  %1172 = vmatprep.subr.bf16.mxu0 0
  %1173 = vmatpush1.bf16.msra.mxu0 %v1167
  %1174 = vmatprep.subr.bf16.mxu0 0
  %1175 = vmatpush1.bf16.msra.mxu0 0
  %1176 = vmatprep.subr.bf16.mxu0 0
  %1177 = vmatpush1.bf16.msra.mxu0 0
  %1178 = vmatprep.subr.bf16.mxu0 0
  %1179 = vmatpush1.bf16.msra.mxu0 0
  %1180 = vmatprep.subr.bf16.mxu0 0
  %1181 = vmatpush1.bf16.msra.mxu0 0
  %1182 = vmatprep.subr.bf16.mxu0 0
  %1183 = vmatpush1.bf16.msra.mxu0 0
  %1184 = vmatprep.subr.bf16.mxu0 0
  %1185 = vmatpush1.bf16.msra.mxu0 0
  %1186 = vmatprep.subr.bf16.mxu0 0
  %1187 = vmatpush1.bf16.msra.mxu0 0
  %1188 = vmatprep.subr.bf16.mxu0 0
  %1189 = vmatpush1.bf16.msra.mxu0 0
  %1190 = vmatprep.subr.bf16.mxu0 0
  %1191 = vmatpush1.bf16.msra.mxu0 0
  %1192 = vmatprep.subr.bf16.mxu0 0
  %1193 = vmatpush1.bf16.msra.mxu0 0
  %1194 = vmatprep.subr.bf16.mxu0 0
  %1195 = vmatpush1.bf16.msra.mxu0 0
  %1196 = vmatprep.subr.bf16.mxu0 0
  %1197 = vmatpush1.bf16.msra.mxu0 0
  %1198 = vmatprep.subr.bf16.mxu0 0
  %1199 = vmatpush1.bf16.msra.mxu0 0
  %1200 = vmatprep.subr.bf16.mxu0 0
  %1201 = vmatpush1.bf16.msra.mxu0 0
  %1202 = vmatprep.mubr.bf16.mxu0 0
  %1203 = vmatmul.mubr.bf16.gmra.mrb[0].mxu0 %v752
  %v1204 = vpop.f32.mrb[0].mxu0
  %v1205 = vadd.f32 %v714, %v1204
  %v1206 = vpop.f32.mrb[0].mxu0
  %v1207 = vpop.f32.mrb[0].mxu0
  %v1208 = vpop.f32.mrb[0].mxu0
  %1209 = vdwg.mxu0
  %v1214 = vunpack.c.l.b16 %v643
  %v1215 = vunpack.c.l.b16 %v644
  %v1216 = vunpack.c.l.b16 %v645
  %v1217 = vunpack.c.l.b16 %v646
  %v1218 = vpack.c.b16 %v1215, %v1214
  %v1219 = vpack.c.b16 %v1217, %v1216
  %1222 = vmatprep.subr.bf16.mxu0 0
  %1223 = vmatpush1.bf16.msra.mxu0 %v1218
  %1224 = vmatprep.subr.bf16.mxu0 0
  %1225 = vmatpush1.bf16.msra.mxu0 %v1219
  %1226 = vmatprep.subr.bf16.mxu0 0
  %1227 = vmatpush1.bf16.msra.mxu0 0
  %1228 = vmatprep.subr.bf16.mxu0 0
  %1229 = vmatpush1.bf16.msra.mxu0 0
  %1230 = vmatprep.subr.bf16.mxu0 0
  %1231 = vmatpush1.bf16.msra.mxu0 0
  %1232 = vmatprep.subr.bf16.mxu0 0
  %1233 = vmatpush1.bf16.msra.mxu0 0
  %1234 = vmatprep.subr.bf16.mxu0 0
  %1235 = vmatpush1.bf16.msra.mxu0 0
  %1236 = vmatprep.subr.bf16.mxu0 0
  %1237 = vmatpush1.bf16.msra.mxu0 0
  %1238 = vmatprep.subr.bf16.mxu0 0
  %1239 = vmatpush1.bf16.msra.mxu0 0
  %1240 = vmatprep.subr.bf16.mxu0 0
  %1241 = vmatpush1.bf16.msra.mxu0 0
  %1242 = vmatprep.subr.bf16.mxu0 0
  %1243 = vmatpush1.bf16.msra.mxu0 0
  %1244 = vmatprep.subr.bf16.mxu0 0
  %1245 = vmatpush1.bf16.msra.mxu0 0
  %1246 = vmatprep.subr.bf16.mxu0 0
  %1247 = vmatpush1.bf16.msra.mxu0 0
  %1248 = vmatprep.subr.bf16.mxu0 0
  %1249 = vmatpush1.bf16.msra.mxu0 0
  %1250 = vmatprep.subr.bf16.mxu0 0
  %1251 = vmatpush1.bf16.msra.mxu0 0
  %1252 = vmatprep.subr.bf16.mxu0 0
  %1253 = vmatpush1.bf16.msra.mxu0 0
  %1254 = vmatprep.mubr.bf16.mxu0 0
  %1255 = vmatmul.mubr.bf16.gmra.mrb[0].mxu0 %v752
  %v1256 = vpop.f32.mrb[0].mxu0
  %v1257 = vadd.f32 %v718, %v1256
  %v1258 = vpop.f32.mrb[0].mxu0
  %v1259 = vpop.f32.mrb[0].mxu0
  %v1260 = vpop.f32.mrb[0].mxu0
  %1261 = vdwg.mxu0
  %v1266 = vunpack.c.l.b16 %v647
  %v1267 = vunpack.c.l.b16 %v648
  %v1268 = vunpack.c.l.b16 %v649
  %v1269 = vunpack.c.l.b16 %v650
  %v1270 = vpack.c.b16 %v1267, %v1266
  %v1271 = vpack.c.b16 %v1269, %v1268
  %1274 = vmatprep.subr.bf16.mxu0 0
  %1275 = vmatpush1.bf16.msra.mxu0 %v1270
  %1276 = vmatprep.subr.bf16.mxu0 0
  %1277 = vmatpush1.bf16.msra.mxu0 %v1271
  %1278 = vmatprep.subr.bf16.mxu0 0
  %1279 = vmatpush1.bf16.msra.mxu0 0
  %1280 = vmatprep.subr.bf16.mxu0 0
  %1281 = vmatpush1.bf16.msra.mxu0 0
  %1282 = vmatprep.subr.bf16.mxu0 0
  %1283 = vmatpush1.bf16.msra.mxu0 0
  %1284 = vmatprep.subr.bf16.mxu0 0
  %1285 = vmatpush1.bf16.msra.mxu0 0
  %1286 = vmatprep.subr.bf16.mxu0 0
  %1287 = vmatpush1.bf16.msra.mxu0 0
  %1288 = vmatprep.subr.bf16.mxu0 0
  %1289 = vmatpush1.bf16.msra.mxu0 0
  %1290 = vmatprep.subr.bf16.mxu0 0
  %1291 = vmatpush1.bf16.msra.mxu0 0
  %1292 = vmatprep.subr.bf16.mxu0 0
  %1293 = vmatpush1.bf16.msra.mxu0 0
  %1294 = vmatprep.subr.bf16.mxu0 0
  %1295 = vmatpush1.bf16.msra.mxu0 0
  %1296 = vmatprep.subr.bf16.mxu0 0
  %1297 = vmatpush1.bf16.msra.mxu0 0
  %1298 = vmatprep.subr.bf16.mxu0 0
  %1299 = vmatpush1.bf16.msra.mxu0 0
  %1300 = vmatprep.subr.bf16.mxu0 0
  %1301 = vmatpush1.bf16.msra.mxu0 0
  %1302 = vmatprep.subr.bf16.mxu0 0
  %1303 = vmatpush1.bf16.msra.mxu0 0
  %1304 = vmatprep.subr.bf16.mxu0 0
  %1305 = vmatpush1.bf16.msra.mxu0 0
  %1306 = vmatprep.mubr.bf16.mxu0 0
  %1307 = vmatmul.mubr.bf16.gmra.mrb[0].mxu0 %v752
  %v1308 = vpop.f32.mrb[0].mxu0
  %v1309 = vadd.f32 %v722, %v1308
  %v1310 = vpop.f32.mrb[0].mxu0
  %v1311 = vpop.f32.mrb[0].mxu0
  %v1312 = vpop.f32.mrb[0].mxu0
  %1313 = vdwg.mxu0
  %v1318 = vunpack.c.l.b16 %v651
  %v1319 = vunpack.c.l.b16 %v652
  %v1320 = vunpack.c.l.b16 %v653
  %v1321 = vunpack.c.l.b16 %v654
  %v1322 = vpack.c.b16 %v1319, %v1318
  %v1323 = vpack.c.b16 %v1321, %v1320
  %1326 = vmatprep.subr.bf16.mxu0 0
  %1327 = vmatpush1.bf16.msra.mxu0 %v1322
  %1328 = vmatprep.subr.bf16.mxu0 0
  %1329 = vmatpush1.bf16.msra.mxu0 %v1323
  %1330 = vmatprep.subr.bf16.mxu0 0
  %1331 = vmatpush1.bf16.msra.mxu0 0
  %1332 = vmatprep.subr.bf16.mxu0 0
  %1333 = vmatpush1.bf16.msra.mxu0 0
  %1334 = vmatprep.subr.bf16.mxu0 0
  %1335 = vmatpush1.bf16.msra.mxu0 0
  %1336 = vmatprep.subr.bf16.mxu0 0
  %1337 = vmatpush1.bf16.msra.mxu0 0
  %1338 = vmatprep.subr.bf16.mxu0 0
  %1339 = vmatpush1.bf16.msra.mxu0 0
  %1340 = vmatprep.subr.bf16.mxu0 0
  %1341 = vmatpush1.bf16.msra.mxu0 0
  %1342 = vmatprep.subr.bf16.mxu0 0
  %1343 = vmatpush1.bf16.msra.mxu0 0
  %1344 = vmatprep.subr.bf16.mxu0 0
  %1345 = vmatpush1.bf16.msra.mxu0 0
  %1346 = vmatprep.subr.bf16.mxu0 0
  %1347 = vmatpush1.bf16.msra.mxu0 0
  %1348 = vmatprep.subr.bf16.mxu0 0
  %1349 = vmatpush1.bf16.msra.mxu0 0
  %1350 = vmatprep.subr.bf16.mxu0 0
  %1351 = vmatpush1.bf16.msra.mxu0 0
  %1352 = vmatprep.subr.bf16.mxu0 0
  %1353 = vmatpush1.bf16.msra.mxu0 0
  %1354 = vmatprep.subr.bf16.mxu0 0
  %1355 = vmatpush1.bf16.msra.mxu0 0
  %1356 = vmatprep.subr.bf16.mxu0 0
  %1357 = vmatpush1.bf16.msra.mxu0 0
  %1358 = vmatprep.mubr.bf16.mxu0 0
  %1359 = vmatmul.mubr.bf16.gmra.mrb[0].mxu0 %v752
  %v1360 = vpop.f32.mrb[0].mxu0
  %v1361 = vadd.f32 %v726, %v1360
  %v1362 = vpop.f32.mrb[0].mxu0
  %v1363 = vpop.f32.mrb[0].mxu0
  %v1364 = vpop.f32.mrb[0].mxu0
  %1365 = vdwg.mxu0
  %v1366 = vpack.c.bf16 %v789, %v789
  %v1367 = vpack.c.bf16 %v841, %v841
  %v1368 = vpack.c.bf16 %v893, %v893
  %v1369 = vpack.c.bf16 %v945, %v945
  %v1370 = vpack.c.bf16 %v997, %v997
  %v1371 = vpack.c.bf16 %v1049, %v1049
  %v1372 = vpack.c.bf16 %v1101, %v1101
  %v1373 = vpack.c.bf16 %v1153, %v1153
  %v1374 = vpack.c.bf16 %v1205, %v1205
  %v1375 = vpack.c.bf16 %v1257, %v1257
  %v1376 = vpack.c.bf16 %v1309, %v1309
  %v1377 = vpack.c.bf16 %v1361, %v1361
  %vm1378 = vcmask 64512
  %v1380 = vsel %vm1378, %v1366, 0
  %v1383 = vsel %vm1378, %v1370, 0
  %1385 = vmatprep.subr.bf16.mxu0 0
  %1386 = vmatpush1.bf16.xpose.msra.mxu0 %v1383
  %1387 = vmatprep.subr.bf16.mxu0 0
  %1388 = vmatpush1.bf16.xpose.msra.mxu0 0
  %1389 = vmatprep.subr.bf16.mxu0 0
  %1390 = vmatpush1.bf16.xpose.msra.mxu0 0
  %1391 = vmatprep.subr.bf16.mxu0 0
  %1392 = vmatpush1.bf16.xpose.msra.mxu0 0
  %1393 = vmatprep.subr.bf16.mxu0 0
  %1394 = vmatpush1.bf16.xpose.msra.mxu0 0
  %1395 = vmatprep.subr.bf16.mxu0 0
  %1396 = vmatpush1.bf16.xpose.msra.mxu0 0
  %1397 = vmatprep.subr.bf16.mxu0 0
  %1398 = vmatpush1.bf16.xpose.msra.mxu0 0
  %1399 = vmatprep.subr.bf16.mxu0 0
  %1400 = vmatpush1.bf16.xpose.msra.mxu0 0
  %1401 = vmatprep.subr.bf16.mxu0 0
  %1402 = vmatpush1.bf16.xpose.msra.mxu0 0
  %1403 = vmatprep.subr.bf16.mxu0 0
  %1404 = vmatpush1.bf16.xpose.msra.mxu0 0
  %1405 = vmatprep.subr.bf16.mxu0 0
  %1406 = vmatpush1.bf16.xpose.msra.mxu0 0
  %1407 = vmatprep.subr.bf16.mxu0 0
  %1408 = vmatpush1.bf16.xpose.msra.mxu0 0
  %1409 = vmatprep.subr.bf16.mxu0 0
  %1410 = vmatpush1.bf16.xpose.msra.mxu0 0
  %1411 = vmatprep.subr.bf16.mxu0 0
  %1412 = vmatpush1.bf16.xpose.msra.mxu0 0
  %1413 = vmatprep.subr.bf16.mxu0 0
  %1414 = vmatpush1.bf16.xpose.msra.mxu0 0
  %1415 = vmatprep.subr.bf16.mxu0 0
  %1416 = vmatpush1.bf16.xpose.msra.mxu0 0
  %1417 = vmatprep.mubr.bf16.mxu0 0
  %1418 = vmatmul.mubr.bf16.gmra.mrb[0].mxu0 %v1380
  %v1419 = vpop.f32.mrb[0].mxu0
  %v1420 = vadd.f32 0.0, %v1419
  %v1421 = vpop.f32.mrb[0].mxu0
  %v1422 = vpop.f32.mrb[0].mxu0
  %v1423 = vpop.f32.mrb[0].mxu0
  %1424 = vdwg.mxu0
  %v1426 = vsel %vm1378, %v1367, 0
  %v1429 = vsel %vm1378, %v1371, 0
  %1431 = vmatprep.subr.bf16.mxu0 0
  %1432 = vmatpush1.bf16.xpose.msra.mxu0 %v1429
  %1433 = vmatprep.subr.bf16.mxu0 0
  %1434 = vmatpush1.bf16.xpose.msra.mxu0 0
  %1435 = vmatprep.subr.bf16.mxu0 0
  %1436 = vmatpush1.bf16.xpose.msra.mxu0 0
  %1437 = vmatprep.subr.bf16.mxu0 0
  %1438 = vmatpush1.bf16.xpose.msra.mxu0 0
  %1439 = vmatprep.subr.bf16.mxu0 0
  %1440 = vmatpush1.bf16.xpose.msra.mxu0 0
  %1441 = vmatprep.subr.bf16.mxu0 0
  %1442 = vmatpush1.bf16.xpose.msra.mxu0 0
  %1443 = vmatprep.subr.bf16.mxu0 0
  %1444 = vmatpush1.bf16.xpose.msra.mxu0 0
  %1445 = vmatprep.subr.bf16.mxu0 0
  %1446 = vmatpush1.bf16.xpose.msra.mxu0 0
  %1447 = vmatprep.subr.bf16.mxu0 0
  %1448 = vmatpush1.bf16.xpose.msra.mxu0 0
  %1449 = vmatprep.subr.bf16.mxu0 0
  %1450 = vmatpush1.bf16.xpose.msra.mxu0 0
  %1451 = vmatprep.subr.bf16.mxu0 0
  %1452 = vmatpush1.bf16.xpose.msra.mxu0 0
  %1453 = vmatprep.subr.bf16.mxu0 0
  %1454 = vmatpush1.bf16.xpose.msra.mxu0 0
  %1455 = vmatprep.subr.bf16.mxu0 0
  %1456 = vmatpush1.bf16.xpose.msra.mxu0 0
  %1457 = vmatprep.subr.bf16.mxu0 0
  %1458 = vmatpush1.bf16.xpose.msra.mxu0 0
  %1459 = vmatprep.subr.bf16.mxu0 0
  %1460 = vmatpush1.bf16.xpose.msra.mxu0 0
  %1461 = vmatprep.subr.bf16.mxu0 0
  %1462 = vmatpush1.bf16.xpose.msra.mxu0 0
  %1463 = vmatprep.mubr.bf16.mxu0 0
  %1464 = vmatmul.mubr.bf16.gmra.mrb[0].mxu0 %v1426
  %v1465 = vpop.f32.mrb[0].mxu0
  %v1466 = vadd.f32 0.0, %v1465
  %v1467 = vpop.f32.mrb[0].mxu0
  %v1468 = vpop.f32.mrb[0].mxu0
  %v1469 = vpop.f32.mrb[0].mxu0
  %1470 = vdwg.mxu0
  %v1472 = vsel %vm1378, %v1368, 0
  %v1475 = vsel %vm1378, %v1372, 0
  %1477 = vmatprep.subr.bf16.mxu0 0
  %1478 = vmatpush1.bf16.xpose.msra.mxu0 %v1475
  %1479 = vmatprep.subr.bf16.mxu0 0
  %1480 = vmatpush1.bf16.xpose.msra.mxu0 0
  %1481 = vmatprep.subr.bf16.mxu0 0
  %1482 = vmatpush1.bf16.xpose.msra.mxu0 0
  %1483 = vmatprep.subr.bf16.mxu0 0
  %1484 = vmatpush1.bf16.xpose.msra.mxu0 0
  %1485 = vmatprep.subr.bf16.mxu0 0
  %1486 = vmatpush1.bf16.xpose.msra.mxu0 0
  %1487 = vmatprep.subr.bf16.mxu0 0
  %1488 = vmatpush1.bf16.xpose.msra.mxu0 0
  %1489 = vmatprep.subr.bf16.mxu0 0
  %1490 = vmatpush1.bf16.xpose.msra.mxu0 0
  %1491 = vmatprep.subr.bf16.mxu0 0
  %1492 = vmatpush1.bf16.xpose.msra.mxu0 0
  %1493 = vmatprep.subr.bf16.mxu0 0
  %1494 = vmatpush1.bf16.xpose.msra.mxu0 0
  %1495 = vmatprep.subr.bf16.mxu0 0
  %1496 = vmatpush1.bf16.xpose.msra.mxu0 0
  %1497 = vmatprep.subr.bf16.mxu0 0
  %1498 = vmatpush1.bf16.xpose.msra.mxu0 0
  %1499 = vmatprep.subr.bf16.mxu0 0
  %1500 = vmatpush1.bf16.xpose.msra.mxu0 0
  %1501 = vmatprep.subr.bf16.mxu0 0
  %1502 = vmatpush1.bf16.xpose.msra.mxu0 0
  %1503 = vmatprep.subr.bf16.mxu0 0
  %1504 = vmatpush1.bf16.xpose.msra.mxu0 0
  %1505 = vmatprep.subr.bf16.mxu0 0
  %1506 = vmatpush1.bf16.xpose.msra.mxu0 0
  %1507 = vmatprep.subr.bf16.mxu0 0
  %1508 = vmatpush1.bf16.xpose.msra.mxu0 0
  %1509 = vmatprep.mubr.bf16.mxu0 0
  %1510 = vmatmul.mubr.bf16.gmra.mrb[0].mxu0 %v1472
  %v1511 = vpop.f32.mrb[0].mxu0
  %v1512 = vadd.f32 0.0, %v1511
  %v1513 = vpop.f32.mrb[0].mxu0
  %v1514 = vpop.f32.mrb[0].mxu0
  %v1515 = vpop.f32.mrb[0].mxu0
  %1516 = vdwg.mxu0
  %v1518 = vsel %vm1378, %v1369, 0
  %v1521 = vsel %vm1378, %v1373, 0
  %1523 = vmatprep.subr.bf16.mxu0 0
  %1524 = vmatpush1.bf16.xpose.msra.mxu0 %v1521
  %1525 = vmatprep.subr.bf16.mxu0 0
  %1526 = vmatpush1.bf16.xpose.msra.mxu0 0
  %1527 = vmatprep.subr.bf16.mxu0 0
  %1528 = vmatpush1.bf16.xpose.msra.mxu0 0
  %1529 = vmatprep.subr.bf16.mxu0 0
  %1530 = vmatpush1.bf16.xpose.msra.mxu0 0
  %1531 = vmatprep.subr.bf16.mxu0 0
  %1532 = vmatpush1.bf16.xpose.msra.mxu0 0
  %1533 = vmatprep.subr.bf16.mxu0 0
  %1534 = vmatpush1.bf16.xpose.msra.mxu0 0
  %1535 = vmatprep.subr.bf16.mxu0 0
  %1536 = vmatpush1.bf16.xpose.msra.mxu0 0
  %1537 = vmatprep.subr.bf16.mxu0 0
  %1538 = vmatpush1.bf16.xpose.msra.mxu0 0
  %1539 = vmatprep.subr.bf16.mxu0 0
  %1540 = vmatpush1.bf16.xpose.msra.mxu0 0
  %1541 = vmatprep.subr.bf16.mxu0 0
  %1542 = vmatpush1.bf16.xpose.msra.mxu0 0
  %1543 = vmatprep.subr.bf16.mxu0 0
  %1544 = vmatpush1.bf16.xpose.msra.mxu0 0
  %1545 = vmatprep.subr.bf16.mxu0 0
  %1546 = vmatpush1.bf16.xpose.msra.mxu0 0
  %1547 = vmatprep.subr.bf16.mxu0 0
  %1548 = vmatpush1.bf16.xpose.msra.mxu0 0
  %1549 = vmatprep.subr.bf16.mxu0 0
  %1550 = vmatpush1.bf16.xpose.msra.mxu0 0
  %1551 = vmatprep.subr.bf16.mxu0 0
  %1552 = vmatpush1.bf16.xpose.msra.mxu0 0
  %1553 = vmatprep.subr.bf16.mxu0 0
  %1554 = vmatpush1.bf16.xpose.msra.mxu0 0
  %1555 = vmatprep.mubr.bf16.mxu0 0
  %1556 = vmatmul.mubr.bf16.gmra.mrb[0].mxu0 %v1518
  %v1557 = vpop.f32.mrb[0].mxu0
  %v1558 = vadd.f32 0.0, %v1557
  %v1559 = vpop.f32.mrb[0].mxu0
  %v1560 = vpop.f32.mrb[0].mxu0
  %v1561 = vpop.f32.mrb[0].mxu0
  %1562 = vdwg.mxu0
  %v1563 = vmul.f32 %v1420, 0.35355338
  %v1564 = vmul.f32 %v1466, 0.35355338
  %v1565 = vmul.f32 %v1512, 0.35355338
  %v1566 = vmul.f32 %v1558, 0.35355338
  %v1567 = vsel %vm1378, %v1563, -inf
  %1568 = vmax.xlane.f32.xlu0 %v1567
  %v1569 = vpop.xlane.xlu0 %1568
  %v1570 = vsel %vm1378, %v1564, -inf
  %1571 = vmax.xlane.f32.xlu0 %v1570
  %v1572 = vpop.xlane.xlu0 %1571
  %v1573 = vsel %vm1378, %v1565, -inf
  %1574 = vmax.xlane.f32.xlu0 %v1573
  %v1575 = vpop.xlane.xlu0 %1574
  %v1576 = vsel %vm1378, %v1566, -inf
  %1577 = vmax.xlane.f32.xlu0 %v1576
  %v1578 = vpop.xlane.xlu0 %1577
  %v1579 = vsub.f32 %v1563, %v1569
  %v1580 = vsub.f32 %v1564, %v1572
  %v1581 = vsub.f32 %v1565, %v1575
  %v1582 = vsub.f32 %v1566, %v1578
  %v1583 = vmul.f32 %v1579, 1.442695
  %v1584 = vpow.pop %v1583
  %v1585 = vmul.f32 %v1580, 1.442695
  %v1586 = vpow.pop %v1585
  %v1587 = vmul.f32 %v1581, 1.442695
  %v1588 = vpow.pop %v1587
  %v1589 = vmul.f32 %v1582, 1.442695
  %v1590 = vpow.pop %v1589
  %v1591 = vsel %vm1378, %v1584, 0.0
  %1592 = vadd.xlane.f32.xlu0 %v1591
  %v1593 = vpop.xlane.xlu0 %1592
  %v1594 = vsel %vm1378, %v1586, 0.0
  %1595 = vadd.xlane.f32.xlu0 %v1594
  %v1596 = vpop.xlane.xlu0 %1595
  %v1597 = vsel %vm1378, %v1588, 0.0
  %1598 = vadd.xlane.f32.xlu0 %v1597
  %v1599 = vpop.xlane.xlu0 %1598
  %v1600 = vsel %vm1378, %v1590, 0.0
  %1601 = vadd.xlane.f32.xlu0 %v1600
  %v1602 = vpop.xlane.xlu0 %1601
  %v1603 = vrcp.pop %v1593
  %v1604 = vrcp.pop %v1596
  %v1605 = vrcp.pop %v1599
  %v1606 = vrcp.pop %v1602
  %v1607 = vmul.f32 %v1584, %v1603
  %v1608 = vmul.f32 %v1586, %v1604
  %v1609 = vmul.f32 %v1588, %v1605
  %v1610 = vmul.f32 %v1590, %v1606
  %v1611 = vpack.c.bf16 %v1607, %v1607
  %v1612 = vpack.c.bf16 %v1608, %v1608
  %v1613 = vpack.c.bf16 %v1609, %v1609
  %v1614 = vpack.c.bf16 %v1610, %v1610
  %v1616 = vsel %vm1378, %v1611, 0
  %vm1618 = vcmask 1043456
  %v1620 = vsel %vm1618, %v1374, 0
  %1622 = vmatprep.subr.bf16.mxu0 0
  %1623 = vmatpush1.bf16.msra.mxu0 %v1620
  %1624 = vmatprep.subr.bf16.mxu0 0
  %1625 = vmatpush1.bf16.msra.mxu0 0
  %1626 = vmatprep.subr.bf16.mxu0 0
  %1627 = vmatpush1.bf16.msra.mxu0 0
  %1628 = vmatprep.subr.bf16.mxu0 0
  %1629 = vmatpush1.bf16.msra.mxu0 0
  %1630 = vmatprep.subr.bf16.mxu0 0
  %1631 = vmatpush1.bf16.msra.mxu0 0
  %1632 = vmatprep.subr.bf16.mxu0 0
  %1633 = vmatpush1.bf16.msra.mxu0 0
  %1634 = vmatprep.subr.bf16.mxu0 0
  %1635 = vmatpush1.bf16.msra.mxu0 0
  %1636 = vmatprep.subr.bf16.mxu0 0
  %1637 = vmatpush1.bf16.msra.mxu0 0
  %1638 = vmatprep.subr.bf16.mxu0 0
  %1639 = vmatpush1.bf16.msra.mxu0 0
  %1640 = vmatprep.subr.bf16.mxu0 0
  %1641 = vmatpush1.bf16.msra.mxu0 0
  %1642 = vmatprep.subr.bf16.mxu0 0
  %1643 = vmatpush1.bf16.msra.mxu0 0
  %1644 = vmatprep.subr.bf16.mxu0 0
  %1645 = vmatpush1.bf16.msra.mxu0 0
  %1646 = vmatprep.subr.bf16.mxu0 0
  %1647 = vmatpush1.bf16.msra.mxu0 0
  %1648 = vmatprep.subr.bf16.mxu0 0
  %1649 = vmatpush1.bf16.msra.mxu0 0
  %1650 = vmatprep.subr.bf16.mxu0 0
  %1651 = vmatpush1.bf16.msra.mxu0 0
  %1652 = vmatprep.subr.bf16.mxu0 0
  %1653 = vmatpush1.bf16.msra.mxu0 0
  %1654 = vmatprep.mubr.bf16.mxu0 0
  %1655 = vmatmul.mubr.bf16.gmra.mrb[0].mxu0 %v1616
  %v1656 = vpop.f32.mrb[0].mxu0
  %v1657 = vadd.f32 0.0, %v1656
  %v1658 = vpop.f32.mrb[0].mxu0
  %v1659 = vpop.f32.mrb[0].mxu0
  %v1660 = vpop.f32.mrb[0].mxu0
  %1661 = vdwg.mxu0
  %v1663 = vsel %vm1378, %v1612, 0
  %v1666 = vsel %vm1618, %v1375, 0
  %1668 = vmatprep.subr.bf16.mxu0 0
  %1669 = vmatpush1.bf16.msra.mxu0 %v1666
  %1670 = vmatprep.subr.bf16.mxu0 0
  %1671 = vmatpush1.bf16.msra.mxu0 0
  %1672 = vmatprep.subr.bf16.mxu0 0
  %1673 = vmatpush1.bf16.msra.mxu0 0
  %1674 = vmatprep.subr.bf16.mxu0 0
  %1675 = vmatpush1.bf16.msra.mxu0 0
  %1676 = vmatprep.subr.bf16.mxu0 0
  %1677 = vmatpush1.bf16.msra.mxu0 0
  %1678 = vmatprep.subr.bf16.mxu0 0
  %1679 = vmatpush1.bf16.msra.mxu0 0
  %1680 = vmatprep.subr.bf16.mxu0 0
  %1681 = vmatpush1.bf16.msra.mxu0 0
  %1682 = vmatprep.subr.bf16.mxu0 0
  %1683 = vmatpush1.bf16.msra.mxu0 0
  %1684 = vmatprep.subr.bf16.mxu0 0
  %1685 = vmatpush1.bf16.msra.mxu0 0
  %1686 = vmatprep.subr.bf16.mxu0 0
  %1687 = vmatpush1.bf16.msra.mxu0 0
  %1688 = vmatprep.subr.bf16.mxu0 0
  %1689 = vmatpush1.bf16.msra.mxu0 0
  %1690 = vmatprep.subr.bf16.mxu0 0
  %1691 = vmatpush1.bf16.msra.mxu0 0
  %1692 = vmatprep.subr.bf16.mxu0 0
  %1693 = vmatpush1.bf16.msra.mxu0 0
  %1694 = vmatprep.subr.bf16.mxu0 0
  %1695 = vmatpush1.bf16.msra.mxu0 0
  %1696 = vmatprep.subr.bf16.mxu0 0
  %1697 = vmatpush1.bf16.msra.mxu0 0
  %1698 = vmatprep.subr.bf16.mxu0 0
  %1699 = vmatpush1.bf16.msra.mxu0 0
  %1700 = vmatprep.mubr.bf16.mxu0 0
  %1701 = vmatmul.mubr.bf16.gmra.mrb[0].mxu0 %v1663
  %v1702 = vpop.f32.mrb[0].mxu0
  %v1703 = vadd.f32 0.0, %v1702
  %v1704 = vpop.f32.mrb[0].mxu0
  %v1705 = vpop.f32.mrb[0].mxu0
  %v1706 = vpop.f32.mrb[0].mxu0
  %1707 = vdwg.mxu0
  %v1709 = vsel %vm1378, %v1613, 0
  %v1712 = vsel %vm1618, %v1376, 0
  %1714 = vmatprep.subr.bf16.mxu0 0
  %1715 = vmatpush1.bf16.msra.mxu0 %v1712
  %1716 = vmatprep.subr.bf16.mxu0 0
  %1717 = vmatpush1.bf16.msra.mxu0 0
  %1718 = vmatprep.subr.bf16.mxu0 0
  %1719 = vmatpush1.bf16.msra.mxu0 0
  %1720 = vmatprep.subr.bf16.mxu0 0
  %1721 = vmatpush1.bf16.msra.mxu0 0
  %1722 = vmatprep.subr.bf16.mxu0 0
  %1723 = vmatpush1.bf16.msra.mxu0 0
  %1724 = vmatprep.subr.bf16.mxu0 0
  %1725 = vmatpush1.bf16.msra.mxu0 0
  %1726 = vmatprep.subr.bf16.mxu0 0
  %1727 = vmatpush1.bf16.msra.mxu0 0
  %1728 = vmatprep.subr.bf16.mxu0 0
  %1729 = vmatpush1.bf16.msra.mxu0 0
  %1730 = vmatprep.subr.bf16.mxu0 0
  %1731 = vmatpush1.bf16.msra.mxu0 0
  %1732 = vmatprep.subr.bf16.mxu0 0
  %1733 = vmatpush1.bf16.msra.mxu0 0
  %1734 = vmatprep.subr.bf16.mxu0 0
  %1735 = vmatpush1.bf16.msra.mxu0 0
  %1736 = vmatprep.subr.bf16.mxu0 0
  %1737 = vmatpush1.bf16.msra.mxu0 0
  %1738 = vmatprep.subr.bf16.mxu0 0
  %1739 = vmatpush1.bf16.msra.mxu0 0
  %1740 = vmatprep.subr.bf16.mxu0 0
  %1741 = vmatpush1.bf16.msra.mxu0 0
  %1742 = vmatprep.subr.bf16.mxu0 0
  %1743 = vmatpush1.bf16.msra.mxu0 0
  %1744 = vmatprep.subr.bf16.mxu0 0
  %1745 = vmatpush1.bf16.msra.mxu0 0
  %1746 = vmatprep.mubr.bf16.mxu0 0
  %1747 = vmatmul.mubr.bf16.gmra.mrb[0].mxu0 %v1709
  %v1748 = vpop.f32.mrb[0].mxu0
  %v1749 = vadd.f32 0.0, %v1748
  %v1750 = vpop.f32.mrb[0].mxu0
  %v1751 = vpop.f32.mrb[0].mxu0
  %v1752 = vpop.f32.mrb[0].mxu0
  %1753 = vdwg.mxu0
  %v1755 = vsel %vm1378, %v1614, 0
  %v1758 = vsel %vm1618, %v1377, 0
  %1760 = vmatprep.subr.bf16.mxu0 0
  %1761 = vmatpush1.bf16.msra.mxu0 %v1758
  %1762 = vmatprep.subr.bf16.mxu0 0
  %1763 = vmatpush1.bf16.msra.mxu0 0
  %1764 = vmatprep.subr.bf16.mxu0 0
  %1765 = vmatpush1.bf16.msra.mxu0 0
  %1766 = vmatprep.subr.bf16.mxu0 0
  %1767 = vmatpush1.bf16.msra.mxu0 0
  %1768 = vmatprep.subr.bf16.mxu0 0
  %1769 = vmatpush1.bf16.msra.mxu0 0
  %1770 = vmatprep.subr.bf16.mxu0 0
  %1771 = vmatpush1.bf16.msra.mxu0 0
  %1772 = vmatprep.subr.bf16.mxu0 0
  %1773 = vmatpush1.bf16.msra.mxu0 0
  %1774 = vmatprep.subr.bf16.mxu0 0
  %1775 = vmatpush1.bf16.msra.mxu0 0
  %1776 = vmatprep.subr.bf16.mxu0 0
  %1777 = vmatpush1.bf16.msra.mxu0 0
  %1778 = vmatprep.subr.bf16.mxu0 0
  %1779 = vmatpush1.bf16.msra.mxu0 0
  %1780 = vmatprep.subr.bf16.mxu0 0
  %1781 = vmatpush1.bf16.msra.mxu0 0
  %1782 = vmatprep.subr.bf16.mxu0 0
  %1783 = vmatpush1.bf16.msra.mxu0 0
  %1784 = vmatprep.subr.bf16.mxu0 0
  %1785 = vmatpush1.bf16.msra.mxu0 0
  %1786 = vmatprep.subr.bf16.mxu0 0
  %1787 = vmatpush1.bf16.msra.mxu0 0
  %1788 = vmatprep.subr.bf16.mxu0 0
  %1789 = vmatpush1.bf16.msra.mxu0 0
  %1790 = vmatprep.subr.bf16.mxu0 0
  %1791 = vmatpush1.bf16.msra.mxu0 0
  %1792 = vmatprep.mubr.bf16.mxu0 0
  %1793 = vmatmul.mubr.bf16.gmra.mrb[0].mxu0 %v1755
  %v1794 = vpop.f32.mrb[0].mxu0
  %v1795 = vadd.f32 0.0, %v1794
  %v1796 = vpop.f32.mrb[0].mxu0
  %v1797 = vpop.f32.mrb[0].mxu0
  %v1798 = vpop.f32.mrb[0].mxu0
  %1799 = vdwg.mxu0
  %v1800 = vpack.c.bf16 %v1657, %v1657
  %v1801 = vpack.c.bf16 %v1703, %v1703
  %v1802 = vpack.c.bf16 %v1749, %v1749
  %v1803 = vpack.c.bf16 %v1795, %v1795
  %v1804 = vld [vmem:[%s4] sm:$0xf]
  %v1805 = vld [vmem:[%s4 + $0x4] sm:$0xf]
  %v1806 = vld [vmem:[%s4 + $0x8] sm:$0xf]
  %v1807 = vld [vmem:[%s4 + $0xc] sm:$0xf]
  %v1809 = vsel %vm1378, %v1800, 0
  %v1812 = vsel %vm1618, %v1804, 0
  %1814 = vmatprep.subr.bf16.mxu0 0
  %1815 = vmatpush1.bf16.msra.mxu0 %v1812
  %1816 = vmatprep.subr.bf16.mxu0 0
  %1817 = vmatpush1.bf16.msra.mxu0 0
  %1818 = vmatprep.subr.bf16.mxu0 0
  %1819 = vmatpush1.bf16.msra.mxu0 0
  %1820 = vmatprep.subr.bf16.mxu0 0
  %1821 = vmatpush1.bf16.msra.mxu0 0
  %1822 = vmatprep.subr.bf16.mxu0 0
  %1823 = vmatpush1.bf16.msra.mxu0 0
  %1824 = vmatprep.subr.bf16.mxu0 0
  %1825 = vmatpush1.bf16.msra.mxu0 0
  %1826 = vmatprep.subr.bf16.mxu0 0
  %1827 = vmatpush1.bf16.msra.mxu0 0
  %1828 = vmatprep.subr.bf16.mxu0 0
  %1829 = vmatpush1.bf16.msra.mxu0 0
  %1830 = vmatprep.subr.bf16.mxu0 0
  %1831 = vmatpush1.bf16.msra.mxu0 0
  %1832 = vmatprep.subr.bf16.mxu0 0
  %1833 = vmatpush1.bf16.msra.mxu0 0
  %1834 = vmatprep.subr.bf16.mxu0 0
  %1835 = vmatpush1.bf16.msra.mxu0 0
  %1836 = vmatprep.subr.bf16.mxu0 0
  %1837 = vmatpush1.bf16.msra.mxu0 0
  %1838 = vmatprep.subr.bf16.mxu0 0
  %1839 = vmatpush1.bf16.msra.mxu0 0
  %1840 = vmatprep.subr.bf16.mxu0 0
  %1841 = vmatpush1.bf16.msra.mxu0 0
  %1842 = vmatprep.subr.bf16.mxu0 0
  %1843 = vmatpush1.bf16.msra.mxu0 0
  %1844 = vmatprep.subr.bf16.mxu0 0
  %1845 = vmatpush1.bf16.msra.mxu0 0
  %1846 = vmatprep.mubr.bf16.mxu0 0
  %1847 = vmatmul.mubr.bf16.gmra.mrb[0].mxu0 %v1809
  %v1848 = vpop.f32.mrb[0].mxu0
  %v1849 = vadd.f32 0.0, %v1848
  %v1850 = vpop.f32.mrb[0].mxu0
  %v1851 = vpop.f32.mrb[0].mxu0
  %v1852 = vpop.f32.mrb[0].mxu0
  %1853 = vdwg.mxu0
  %v1855 = vsel %vm1378, %v1801, 0
  %v1858 = vsel %vm1618, %v1805, 0
  %1860 = vmatprep.subr.bf16.mxu0 0
  %1861 = vmatpush1.bf16.msra.mxu0 %v1858
  %1862 = vmatprep.subr.bf16.mxu0 0
  %1863 = vmatpush1.bf16.msra.mxu0 0
  %1864 = vmatprep.subr.bf16.mxu0 0
  %1865 = vmatpush1.bf16.msra.mxu0 0
  %1866 = vmatprep.subr.bf16.mxu0 0
  %1867 = vmatpush1.bf16.msra.mxu0 0
  %1868 = vmatprep.subr.bf16.mxu0 0
  %1869 = vmatpush1.bf16.msra.mxu0 0
  %1870 = vmatprep.subr.bf16.mxu0 0
  %1871 = vmatpush1.bf16.msra.mxu0 0
  %1872 = vmatprep.subr.bf16.mxu0 0
  %1873 = vmatpush1.bf16.msra.mxu0 0
  %1874 = vmatprep.subr.bf16.mxu0 0
  %1875 = vmatpush1.bf16.msra.mxu0 0
  %1876 = vmatprep.subr.bf16.mxu0 0
  %1877 = vmatpush1.bf16.msra.mxu0 0
  %1878 = vmatprep.subr.bf16.mxu0 0
  %1879 = vmatpush1.bf16.msra.mxu0 0
  %1880 = vmatprep.subr.bf16.mxu0 0
  %1881 = vmatpush1.bf16.msra.mxu0 0
  %1882 = vmatprep.subr.bf16.mxu0 0
  %1883 = vmatpush1.bf16.msra.mxu0 0
  %1884 = vmatprep.subr.bf16.mxu0 0
  %1885 = vmatpush1.bf16.msra.mxu0 0
  %1886 = vmatprep.subr.bf16.mxu0 0
  %1887 = vmatpush1.bf16.msra.mxu0 0
  %1888 = vmatprep.subr.bf16.mxu0 0
  %1889 = vmatpush1.bf16.msra.mxu0 0
  %1890 = vmatprep.subr.bf16.mxu0 0
  %1891 = vmatpush1.bf16.msra.mxu0 0
  %1892 = vmatprep.mubr.bf16.mxu0 0
  %1893 = vmatmul.mubr.bf16.gmra.mrb[0].mxu0 %v1855
  %v1894 = vpop.f32.mrb[0].mxu0
  %v1895 = vadd.f32 0.0, %v1894
  %v1896 = vpop.f32.mrb[0].mxu0
  %v1897 = vpop.f32.mrb[0].mxu0
  %v1898 = vpop.f32.mrb[0].mxu0
  %1899 = vdwg.mxu0
  %v1901 = vsel %vm1378, %v1802, 0
  %v1904 = vsel %vm1618, %v1806, 0
  %1906 = vmatprep.subr.bf16.mxu0 0
  %1907 = vmatpush1.bf16.msra.mxu0 %v1904
  %1908 = vmatprep.subr.bf16.mxu0 0
  %1909 = vmatpush1.bf16.msra.mxu0 0
  %1910 = vmatprep.subr.bf16.mxu0 0
  %1911 = vmatpush1.bf16.msra.mxu0 0
  %1912 = vmatprep.subr.bf16.mxu0 0
  %1913 = vmatpush1.bf16.msra.mxu0 0
  %1914 = vmatprep.subr.bf16.mxu0 0
  %1915 = vmatpush1.bf16.msra.mxu0 0
  %1916 = vmatprep.subr.bf16.mxu0 0
  %1917 = vmatpush1.bf16.msra.mxu0 0
  %1918 = vmatprep.subr.bf16.mxu0 0
  %1919 = vmatpush1.bf16.msra.mxu0 0
  %1920 = vmatprep.subr.bf16.mxu0 0
  %1921 = vmatpush1.bf16.msra.mxu0 0
  %1922 = vmatprep.subr.bf16.mxu0 0
  %1923 = vmatpush1.bf16.msra.mxu0 0
  %1924 = vmatprep.subr.bf16.mxu0 0
  %1925 = vmatpush1.bf16.msra.mxu0 0
  %1926 = vmatprep.subr.bf16.mxu0 0
  %1927 = vmatpush1.bf16.msra.mxu0 0
  %1928 = vmatprep.subr.bf16.mxu0 0
  %1929 = vmatpush1.bf16.msra.mxu0 0
  %1930 = vmatprep.subr.bf16.mxu0 0
  %1931 = vmatpush1.bf16.msra.mxu0 0
  %1932 = vmatprep.subr.bf16.mxu0 0
  %1933 = vmatpush1.bf16.msra.mxu0 0
  %1934 = vmatprep.subr.bf16.mxu0 0
  %1935 = vmatpush1.bf16.msra.mxu0 0
  %1936 = vmatprep.subr.bf16.mxu0 0
  %1937 = vmatpush1.bf16.msra.mxu0 0
  %1938 = vmatprep.mubr.bf16.mxu0 0
  %1939 = vmatmul.mubr.bf16.gmra.mrb[0].mxu0 %v1901
  %v1940 = vpop.f32.mrb[0].mxu0
  %v1941 = vadd.f32 0.0, %v1940
  %v1942 = vpop.f32.mrb[0].mxu0
  %v1943 = vpop.f32.mrb[0].mxu0
  %v1944 = vpop.f32.mrb[0].mxu0
  %1945 = vdwg.mxu0
  %v1947 = vsel %vm1378, %v1803, 0
  %v1950 = vsel %vm1618, %v1807, 0
  %1952 = vmatprep.subr.bf16.mxu0 0
  %1953 = vmatpush1.bf16.msra.mxu0 %v1950
  %1954 = vmatprep.subr.bf16.mxu0 0
  %1955 = vmatpush1.bf16.msra.mxu0 0
  %1956 = vmatprep.subr.bf16.mxu0 0
  %1957 = vmatpush1.bf16.msra.mxu0 0
  %1958 = vmatprep.subr.bf16.mxu0 0
  %1959 = vmatpush1.bf16.msra.mxu0 0
  %1960 = vmatprep.subr.bf16.mxu0 0
  %1961 = vmatpush1.bf16.msra.mxu0 0
  %1962 = vmatprep.subr.bf16.mxu0 0
  %1963 = vmatpush1.bf16.msra.mxu0 0
  %1964 = vmatprep.subr.bf16.mxu0 0
  %1965 = vmatpush1.bf16.msra.mxu0 0
  %1966 = vmatprep.subr.bf16.mxu0 0
  %1967 = vmatpush1.bf16.msra.mxu0 0
  %1968 = vmatprep.subr.bf16.mxu0 0
  %1969 = vmatpush1.bf16.msra.mxu0 0
  %1970 = vmatprep.subr.bf16.mxu0 0
  %1971 = vmatpush1.bf16.msra.mxu0 0
  %1972 = vmatprep.subr.bf16.mxu0 0
  %1973 = vmatpush1.bf16.msra.mxu0 0
  %1974 = vmatprep.subr.bf16.mxu0 0
  %1975 = vmatpush1.bf16.msra.mxu0 0
  %1976 = vmatprep.subr.bf16.mxu0 0
  %1977 = vmatpush1.bf16.msra.mxu0 0
  %1978 = vmatprep.subr.bf16.mxu0 0
  %1979 = vmatpush1.bf16.msra.mxu0 0
  %1980 = vmatprep.subr.bf16.mxu0 0
  %1981 = vmatpush1.bf16.msra.mxu0 0
  %1982 = vmatprep.subr.bf16.mxu0 0
  %1983 = vmatpush1.bf16.msra.mxu0 0
  %1984 = vmatprep.mubr.bf16.mxu0 0
  %1985 = vmatmul.mubr.bf16.gmra.mrb[0].mxu0 %v1947
  %v1986 = vpop.f32.mrb[0].mxu0
  %v1987 = vadd.f32 0.0, %v1986
  %v1988 = vpop.f32.mrb[0].mxu0
  %v1989 = vpop.f32.mrb[0].mxu0
  %v1990 = vpop.f32.mrb[0].mxu0
  %1991 = vdwg.mxu0
  %v1992 = vsel %vm568, %v1849, 0.0
  %v1993 = vsel %vm568, %v1895, 0.0
  %v1994 = vadd.f32 %v1992, %v1993
  %v1995 = vsel %vm568, %v1941, 0.0
  %v1996 = vadd.f32 %v1994, %v1995
  %v1997 = vsel %vm568, %v1987, 0.0
  %v1998 = vadd.f32 %v1996, %v1997
  %v1999 = vadd.f32 %v574, %v1998
  %v2000 = vlaneseq
  %v2001 = vshrl.u32 %v2000, 7
  %v2002 = vsub.s32 0, %v2001
  %v2003 = vrot.slane %v576, %v2002
  %v2004 = vadd.f32 %v1999, %v2003
  %v2005 = vsel %vm568, %v2004, 0.0
  %2006 = vadd.xlane.f32.xlu0 %v2005
  %v2007 = vpop.xlane.xlu0 %2006
  %v2008 = vmul.f32 %v2007, %v585
  %v2009 = vsub.f32 %v2004, %v2008
  %v2010 = vmul.f32 %v2009, %v2009
  %v2011 = vsel %vm568, %v2010, 0.0
  %2012 = vadd.xlane.f32.xlu0 %v2011
  %v2013 = vpop.xlane.xlu0 %2012
  %v2014 = vmul.f32 %v2013, %v585
  %v2015 = vadd.f32 %v2014, 1e-06
  %v2016 = vrsqrt.pop %v2015
  %v2017 = vmul.f32 %v2009, %v2016
  %v2018 = vlaneseq
  %v2019 = vshrl.u32 %v2018, 7
  %v2020 = vsub.s32 0, %v2019
  %v2021 = vrot.slane %v580, %v2020
  %v2022 = vmul.f32 %v2017, %v2021
  %v2023 = vlaneseq
  %v2024 = vshrl.u32 %v2023, 7
  %v2025 = vsub.s32 0, %v2024
  %v2026 = vrot.slane %v581, %v2025
  %v2027 = vadd.f32 %v2022, %v2026
  %v2028 = vpack.c.bf16 %v2027, %v2027
  %v2029 = vld [vmem:[%s5] sm:$0xf]
  %v2030 = vld [vmem:[%s5 + $0x4] sm:$0xf]
  %v2031 = vld [vmem:[%s5 + $0x8] sm:$0xf]
  %v2032 = vld [vmem:[%s5 + $0xc] sm:$0xf]
  %v2033 = vlaneseq
  %v2034 = vshrl.u32 %v2033, 7
  %v2035 = vsub.s32 0, %v2034
  %v2036 = vrot.slane %v575, %v2035
  %v2041 = vunpack.c.l.b16 %v2029
  %v2042 = vunpack.c.l.b16 %v2030
  %v2043 = vunpack.c.l.b16 %v2031
  %v2044 = vunpack.c.l.b16 %v2032
  %v2045 = vpack.c.b16 %v2042, %v2041
  %v2046 = vpack.c.b16 %v2044, %v2043
  %v2050 = vsel %vm568, %v2028, 0
  %2052 = vmatprep.subr.bf16.mxu0 0
  %2053 = vmatpush1.bf16.msra.mxu0 %v2045
  %2054 = vmatprep.subr.bf16.mxu0 0
  %2055 = vmatpush1.bf16.msra.mxu0 %v2046
  %2056 = vmatprep.subr.bf16.mxu0 0
  %2057 = vmatpush1.bf16.msra.mxu0 0
  %2058 = vmatprep.subr.bf16.mxu0 0
  %2059 = vmatpush1.bf16.msra.mxu0 0
  %2060 = vmatprep.subr.bf16.mxu0 0
  %2061 = vmatpush1.bf16.msra.mxu0 0
  %2062 = vmatprep.subr.bf16.mxu0 0
  %2063 = vmatpush1.bf16.msra.mxu0 0
  %2064 = vmatprep.subr.bf16.mxu0 0
  %2065 = vmatpush1.bf16.msra.mxu0 0
  %2066 = vmatprep.subr.bf16.mxu0 0
  %2067 = vmatpush1.bf16.msra.mxu0 0
  %2068 = vmatprep.subr.bf16.mxu0 0
  %2069 = vmatpush1.bf16.msra.mxu0 0
  %2070 = vmatprep.subr.bf16.mxu0 0
  %2071 = vmatpush1.bf16.msra.mxu0 0
  %2072 = vmatprep.subr.bf16.mxu0 0
  %2073 = vmatpush1.bf16.msra.mxu0 0
  %2074 = vmatprep.subr.bf16.mxu0 0
  %2075 = vmatpush1.bf16.msra.mxu0 0
  %2076 = vmatprep.subr.bf16.mxu0 0
  %2077 = vmatpush1.bf16.msra.mxu0 0
  %2078 = vmatprep.subr.bf16.mxu0 0
  %2079 = vmatpush1.bf16.msra.mxu0 0
  %2080 = vmatprep.subr.bf16.mxu0 0
  %2081 = vmatpush1.bf16.msra.mxu0 0
  %2082 = vmatprep.subr.bf16.mxu0 0
  %2083 = vmatpush1.bf16.msra.mxu0 0
  %2084 = vmatprep.mubr.bf16.mxu0 0
  %2085 = vmatmul.mubr.bf16.gmra.mrb[0].mxu0 %v2050
  %v2086 = vpop.f32.mrb[0].mxu0
  %v2087 = vadd.f32 %v2036, %v2086
  %v2088 = vpop.f32.mrb[0].mxu0
  %v2089 = vpop.f32.mrb[0].mxu0
  %v2090 = vpop.f32.mrb[0].mxu0
  %2091 = vdwg.mxu0
  %v2092 = vmax.f32 %v2087, 0.0
  %v2093 = vpack.c.bf16 %v2092, %v2092
  %v2094 = vld [vmem:[%s6] sm:$0xf]
  %v2095 = vld [vmem:[%s6 + $0x4] sm:$0xf]
  %v2096 = vld [vmem:[%s6 + $0x8] sm:$0xf]
  %v2097 = vld [vmem:[%s6 + $0xc] sm:$0xf]
  %v2098 = vld [vmem:[%s6 + $0x10] sm:$0xf]
  %v2099 = vld [vmem:[%s6 + $0x14] sm:$0xf]
  %v2100 = vld [vmem:[%s6 + $0x18] sm:$0xf]
  %v2101 = vld [vmem:[%s6 + $0x1c] sm:$0xf]
  %v2110 = vunpack.c.l.b16 %v2094
  %v2111 = vunpack.c.l.b16 %v2095
  %v2112 = vunpack.c.l.b16 %v2096
  %v2113 = vunpack.c.l.b16 %v2097
  %v2114 = vunpack.c.l.b16 %v2098
  %v2115 = vunpack.c.l.b16 %v2099
  %v2116 = vunpack.c.l.b16 %v2100
  %v2117 = vunpack.c.l.b16 %v2101
  %v2118 = vpack.c.b16 %v2111, %v2110
  %v2119 = vpack.c.b16 %v2113, %v2112
  %v2120 = vpack.c.b16 %v2115, %v2114
  %v2121 = vpack.c.b16 %v2117, %v2116
  %vm2126 = vcmask 523264
  %v2128 = vsel %vm2126, %v2093, 0
  %2130 = vmatprep.subr.bf16.mxu0 0
  %2131 = vmatpush1.bf16.msra.mxu0 %v2118
  %2132 = vmatprep.subr.bf16.mxu0 0
  %2133 = vmatpush1.bf16.msra.mxu0 %v2119
  %2134 = vmatprep.subr.bf16.mxu0 0
  %2135 = vmatpush1.bf16.msra.mxu0 %v2120
  %2136 = vmatprep.subr.bf16.mxu0 0
  %2137 = vmatpush1.bf16.msra.mxu0 %v2121
  %2138 = vmatprep.subr.bf16.mxu0 0
  %2139 = vmatpush1.bf16.msra.mxu0 0
  %2140 = vmatprep.subr.bf16.mxu0 0
  %2141 = vmatpush1.bf16.msra.mxu0 0
  %2142 = vmatprep.subr.bf16.mxu0 0
  %2143 = vmatpush1.bf16.msra.mxu0 0
  %2144 = vmatprep.subr.bf16.mxu0 0
  %2145 = vmatpush1.bf16.msra.mxu0 0
  %2146 = vmatprep.subr.bf16.mxu0 0
  %2147 = vmatpush1.bf16.msra.mxu0 0
  %2148 = vmatprep.subr.bf16.mxu0 0
  %2149 = vmatpush1.bf16.msra.mxu0 0
  %2150 = vmatprep.subr.bf16.mxu0 0
  %2151 = vmatpush1.bf16.msra.mxu0 0
  %2152 = vmatprep.subr.bf16.mxu0 0
  %2153 = vmatpush1.bf16.msra.mxu0 0
  %2154 = vmatprep.subr.bf16.mxu0 0
  %2155 = vmatpush1.bf16.msra.mxu0 0
  %2156 = vmatprep.subr.bf16.mxu0 0
  %2157 = vmatpush1.bf16.msra.mxu0 0
  %2158 = vmatprep.subr.bf16.mxu0 0
  %2159 = vmatpush1.bf16.msra.mxu0 0
  %2160 = vmatprep.subr.bf16.mxu0 0
  %2161 = vmatpush1.bf16.msra.mxu0 0
  %2162 = vmatprep.mubr.bf16.mxu0 0
  %2163 = vmatmul.mubr.bf16.gmra.mrb[0].mxu0 %v2128
  %v2164 = vpop.f32.mrb[0].mxu0
  %v2165 = vadd.f32 0.0, %v2164
  %v2166 = vpop.f32.mrb[0].mxu0
  %v2167 = vpop.f32.mrb[0].mxu0
  %v2168 = vpop.f32.mrb[0].mxu0
  %2169 = vdwg.mxu0
  %v2170 = vadd.f32 %v2004, %v2165
  %v2171 = vlaneseq
  %v2172 = vshrl.u32 %v2171, 7
  %v2173 = vsub.s32 0, %v2172
  %v2174 = vrot.slane %v577, %v2173
  %v2175 = vadd.f32 %v2170, %v2174
  %s2176 = scalar_lea.vmem %s7, 8
  %v2177 = vld [vmem:[%s2176] sm:$0x1]
  %v2178 = vld [vmem:[%s2176 + $0x1] sm:$0x1]
  %v2179 = vld [vmem:[%s2176 + $0x2] sm:$0x1]
  %v2180 = vld [vmem:[%s2176 + $0x3] sm:$0x1]
  %v2181 = vld [vmem:[%s2176 + $0x4] sm:$0x1]
  %v2182 = vld [vmem:[%s2176 + $0x5] sm:$0x1]
  %v2183 = vld [vmem:[%s2176 + $0x6] sm:$0x1]
  %v2184 = vsel %vm568, %v2175, 0.0
  %2185 = vadd.xlane.f32.xlu0 %v2184
  %v2186 = vpop.xlane.xlu0 %2185
  %v2187 = vmul.f32 %v2186, %v585
  %v2188 = vsub.f32 %v2175, %v2187
  %v2189 = vmul.f32 %v2188, %v2188
  %v2190 = vsel %vm568, %v2189, 0.0
  %2191 = vadd.xlane.f32.xlu0 %v2190
  %v2192 = vpop.xlane.xlu0 %2191
  %v2193 = vmul.f32 %v2192, %v585
  %v2194 = vadd.f32 %v2193, 1e-06
  %v2195 = vrsqrt.pop %v2194
  %v2196 = vmul.f32 %v2188, %v2195
  %v2197 = vlaneseq
  %v2198 = vshrl.u32 %v2197, 7
  %v2199 = vsub.s32 0, %v2198
  %v2200 = vrot.slane %v2180, %v2199
  %v2201 = vmul.f32 %v2196, %v2200
  %v2202 = vlaneseq
  %v2203 = vshrl.u32 %v2202, 7
  %v2204 = vsub.s32 0, %v2203
  %v2205 = vrot.slane %v2181, %v2204
  %v2206 = vadd.f32 %v2201, %v2205
  %v2207 = vpack.c.bf16 %v2206, %v2206
  %s2208 = scalar_lea.vmem %s2, 192
  %v2209 = vld [vmem:[%s2208] sm:$0xf]
  %v2210 = vld [vmem:[%s2208 + $0x4] sm:$0xf]
  %v2211 = vld [vmem:[%s2208 + $0x8] sm:$0xf]
  %v2212 = vld [vmem:[%s2208 + $0xc] sm:$0xf]
  %v2213 = vld [vmem:[%s2208 + $0x10] sm:$0xf]
  %v2214 = vld [vmem:[%s2208 + $0x14] sm:$0xf]
  %v2215 = vld [vmem:[%s2208 + $0x18] sm:$0xf]
  %v2216 = vld [vmem:[%s2208 + $0x1c] sm:$0xf]
  %v2217 = vld [vmem:[%s2208 + $0x20] sm:$0xf]
  %v2218 = vld [vmem:[%s2208 + $0x24] sm:$0xf]
  %v2219 = vld [vmem:[%s2208 + $0x28] sm:$0xf]
  %v2220 = vld [vmem:[%s2208 + $0x2c] sm:$0xf]
  %v2221 = vld [vmem:[%s2208 + $0x30] sm:$0xf]
  %v2222 = vld [vmem:[%s2208 + $0x34] sm:$0xf]
  %v2223 = vld [vmem:[%s2208 + $0x38] sm:$0xf]
  %v2224 = vld [vmem:[%s2208 + $0x3c] sm:$0xf]
  %v2225 = vld [vmem:[%s2208 + $0x40] sm:$0xf]
  %v2226 = vld [vmem:[%s2208 + $0x44] sm:$0xf]
  %v2227 = vld [vmem:[%s2208 + $0x48] sm:$0xf]
  %v2228 = vld [vmem:[%s2208 + $0x4c] sm:$0xf]
  %v2229 = vld [vmem:[%s2208 + $0x50] sm:$0xf]
  %v2230 = vld [vmem:[%s2208 + $0x54] sm:$0xf]
  %v2231 = vld [vmem:[%s2208 + $0x58] sm:$0xf]
  %v2232 = vld [vmem:[%s2208 + $0x5c] sm:$0xf]
  %v2233 = vld [vmem:[%s2208 + $0x60] sm:$0xf]
  %v2234 = vld [vmem:[%s2208 + $0x64] sm:$0xf]
  %v2235 = vld [vmem:[%s2208 + $0x68] sm:$0xf]
  %v2236 = vld [vmem:[%s2208 + $0x6c] sm:$0xf]
  %v2237 = vld [vmem:[%s2208 + $0x70] sm:$0xf]
  %v2238 = vld [vmem:[%s2208 + $0x74] sm:$0xf]
  %v2239 = vld [vmem:[%s2208 + $0x78] sm:$0xf]
  %v2240 = vld [vmem:[%s2208 + $0x7c] sm:$0xf]
  %v2241 = vld [vmem:[%s2208 + $0x80] sm:$0xf]
  %v2242 = vld [vmem:[%s2208 + $0x84] sm:$0xf]
  %v2243 = vld [vmem:[%s2208 + $0x88] sm:$0xf]
  %v2244 = vld [vmem:[%s2208 + $0x8c] sm:$0xf]
  %v2245 = vld [vmem:[%s2208 + $0x90] sm:$0xf]
  %v2246 = vld [vmem:[%s2208 + $0x94] sm:$0xf]
  %v2247 = vld [vmem:[%s2208 + $0x98] sm:$0xf]
  %v2248 = vld [vmem:[%s2208 + $0x9c] sm:$0xf]
  %v2249 = vld [vmem:[%s2208 + $0xa0] sm:$0xf]
  %v2250 = vld [vmem:[%s2208 + $0xa4] sm:$0xf]
  %v2251 = vld [vmem:[%s2208 + $0xa8] sm:$0xf]
  %v2252 = vld [vmem:[%s2208 + $0xac] sm:$0xf]
  %v2253 = vld [vmem:[%s2208 + $0xb0] sm:$0xf]
  %v2254 = vld [vmem:[%s2208 + $0xb4] sm:$0xf]
  %v2255 = vld [vmem:[%s2208 + $0xb8] sm:$0xf]
  %v2256 = vld [vmem:[%s2208 + $0xbc] sm:$0xf]
  %s2257 = scalar_lea.vmem %s3, 12
  %v2258 = vld [vmem:[%s2257] sm:$0x1]
  %v2259 = vld [vmem:[%s2257 + $0x1] sm:$0x1]
  %v2260 = vld [vmem:[%s2257 + $0x2] sm:$0x1]
  %v2261 = vld [vmem:[%s2257 + $0x3] sm:$0x1]
  %v2262 = vld [vmem:[%s2257 + $0x4] sm:$0x1]
  %v2263 = vld [vmem:[%s2257 + $0x5] sm:$0x1]
  %v2264 = vld [vmem:[%s2257 + $0x6] sm:$0x1]
  %v2265 = vld [vmem:[%s2257 + $0x7] sm:$0x1]
  %v2266 = vld [vmem:[%s2257 + $0x8] sm:$0x1]
  %v2267 = vld [vmem:[%s2257 + $0x9] sm:$0x1]
  %v2268 = vld [vmem:[%s2257 + $0xa] sm:$0x1]
  %v2269 = vld [vmem:[%s2257 + $0xb] sm:$0x1]
  %v2282 = vlaneseq
  %v2283 = vshrl.u32 %v2282, 7
  %v2284 = vsub.s32 0, %v2283
  %v2285 = vrot.slane %v2258, %v2284
  %v2286 = vlaneseq
  %v2287 = vshrl.u32 %v2286, 7
  %v2288 = vsub.s32 0, %v2287
  %v2289 = vrot.slane %v2259, %v2288
  %v2290 = vlaneseq
  %v2291 = vshrl.u32 %v2290, 7
  %v2292 = vsub.s32 0, %v2291
  %v2293 = vrot.slane %v2260, %v2292
  %v2294 = vlaneseq
  %v2295 = vshrl.u32 %v2294, 7
  %v2296 = vsub.s32 0, %v2295
  %v2297 = vrot.slane %v2261, %v2296
  %v2298 = vlaneseq
  %v2299 = vshrl.u32 %v2298, 7
  %v2300 = vsub.s32 0, %v2299
  %v2301 = vrot.slane %v2262, %v2300
  %v2302 = vlaneseq
  %v2303 = vshrl.u32 %v2302, 7
  %v2304 = vsub.s32 0, %v2303
  %v2305 = vrot.slane %v2263, %v2304
  %v2306 = vlaneseq
  %v2307 = vshrl.u32 %v2306, 7
  %v2308 = vsub.s32 0, %v2307
  %v2309 = vrot.slane %v2264, %v2308
  %v2310 = vlaneseq
  %v2311 = vshrl.u32 %v2310, 7
  %v2312 = vsub.s32 0, %v2311
  %v2313 = vrot.slane %v2265, %v2312
  %v2314 = vlaneseq
  %v2315 = vshrl.u32 %v2314, 7
  %v2316 = vsub.s32 0, %v2315
  %v2317 = vrot.slane %v2266, %v2316
  %v2318 = vlaneseq
  %v2319 = vshrl.u32 %v2318, 7
  %v2320 = vsub.s32 0, %v2319
  %v2321 = vrot.slane %v2267, %v2320
  %v2322 = vlaneseq
  %v2323 = vshrl.u32 %v2322, 7
  %v2324 = vsub.s32 0, %v2323
  %v2325 = vrot.slane %v2268, %v2324
  %v2326 = vlaneseq
  %v2327 = vshrl.u32 %v2326, 7
  %v2328 = vsub.s32 0, %v2327
  %v2329 = vrot.slane %v2269, %v2328
  %v2346 = vunpack.c.l.b16 %v2209
  %v2347 = vunpack.c.l.b16 %v2210
  %v2348 = vunpack.c.l.b16 %v2211
  %v2349 = vunpack.c.l.b16 %v2212
  %v2350 = vpack.c.b16 %v2347, %v2346
  %v2351 = vpack.c.b16 %v2349, %v2348
  %v2355 = vsel %vm568, %v2207, 0
  %2357 = vmatprep.subr.bf16.mxu0 0
  %2358 = vmatpush1.bf16.msra.mxu0 %v2350
  %2359 = vmatprep.subr.bf16.mxu0 0
  %2360 = vmatpush1.bf16.msra.mxu0 %v2351
  %2361 = vmatprep.subr.bf16.mxu0 0
  %2362 = vmatpush1.bf16.msra.mxu0 0
  %2363 = vmatprep.subr.bf16.mxu0 0
  %2364 = vmatpush1.bf16.msra.mxu0 0
  %2365 = vmatprep.subr.bf16.mxu0 0
  %2366 = vmatpush1.bf16.msra.mxu0 0
  %2367 = vmatprep.subr.bf16.mxu0 0
  %2368 = vmatpush1.bf16.msra.mxu0 0
  %2369 = vmatprep.subr.bf16.mxu0 0
  %2370 = vmatpush1.bf16.msra.mxu0 0
  %2371 = vmatprep.subr.bf16.mxu0 0
  %2372 = vmatpush1.bf16.msra.mxu0 0
  %2373 = vmatprep.subr.bf16.mxu0 0
  %2374 = vmatpush1.bf16.msra.mxu0 0
  %2375 = vmatprep.subr.bf16.mxu0 0
  %2376 = vmatpush1.bf16.msra.mxu0 0
  %2377 = vmatprep.subr.bf16.mxu0 0
  %2378 = vmatpush1.bf16.msra.mxu0 0
  %2379 = vmatprep.subr.bf16.mxu0 0
  %2380 = vmatpush1.bf16.msra.mxu0 0
  %2381 = vmatprep.subr.bf16.mxu0 0
  %2382 = vmatpush1.bf16.msra.mxu0 0
  %2383 = vmatprep.subr.bf16.mxu0 0
  %2384 = vmatpush1.bf16.msra.mxu0 0
  %2385 = vmatprep.subr.bf16.mxu0 0
  %2386 = vmatpush1.bf16.msra.mxu0 0
  %2387 = vmatprep.subr.bf16.mxu0 0
  %2388 = vmatpush1.bf16.msra.mxu0 0
  %2389 = vmatprep.mubr.bf16.mxu0 0
  %2390 = vmatmul.mubr.bf16.gmra.mrb[0].mxu0 %v2355
  %v2391 = vpop.f32.mrb[0].mxu0
  %v2392 = vadd.f32 %v2285, %v2391
  %v2393 = vpop.f32.mrb[0].mxu0
  %v2394 = vpop.f32.mrb[0].mxu0
  %v2395 = vpop.f32.mrb[0].mxu0
  %2396 = vdwg.mxu0
  %v2401 = vunpack.c.l.b16 %v2213
  %v2402 = vunpack.c.l.b16 %v2214
  %v2403 = vunpack.c.l.b16 %v2215
  %v2404 = vunpack.c.l.b16 %v2216
  %v2405 = vpack.c.b16 %v2402, %v2401
  %v2406 = vpack.c.b16 %v2404, %v2403
  %2409 = vmatprep.subr.bf16.mxu0 0
  %2410 = vmatpush1.bf16.msra.mxu0 %v2405
  %2411 = vmatprep.subr.bf16.mxu0 0
  %2412 = vmatpush1.bf16.msra.mxu0 %v2406
  %2413 = vmatprep.subr.bf16.mxu0 0
  %2414 = vmatpush1.bf16.msra.mxu0 0
  %2415 = vmatprep.subr.bf16.mxu0 0
  %2416 = vmatpush1.bf16.msra.mxu0 0
  %2417 = vmatprep.subr.bf16.mxu0 0
  %2418 = vmatpush1.bf16.msra.mxu0 0
  %2419 = vmatprep.subr.bf16.mxu0 0
  %2420 = vmatpush1.bf16.msra.mxu0 0
  %2421 = vmatprep.subr.bf16.mxu0 0
  %2422 = vmatpush1.bf16.msra.mxu0 0
  %2423 = vmatprep.subr.bf16.mxu0 0
  %2424 = vmatpush1.bf16.msra.mxu0 0
  %2425 = vmatprep.subr.bf16.mxu0 0
  %2426 = vmatpush1.bf16.msra.mxu0 0
  %2427 = vmatprep.subr.bf16.mxu0 0
  %2428 = vmatpush1.bf16.msra.mxu0 0
  %2429 = vmatprep.subr.bf16.mxu0 0
  %2430 = vmatpush1.bf16.msra.mxu0 0
  %2431 = vmatprep.subr.bf16.mxu0 0
  %2432 = vmatpush1.bf16.msra.mxu0 0
  %2433 = vmatprep.subr.bf16.mxu0 0
  %2434 = vmatpush1.bf16.msra.mxu0 0
  %2435 = vmatprep.subr.bf16.mxu0 0
  %2436 = vmatpush1.bf16.msra.mxu0 0
  %2437 = vmatprep.subr.bf16.mxu0 0
  %2438 = vmatpush1.bf16.msra.mxu0 0
  %2439 = vmatprep.subr.bf16.mxu0 0
  %2440 = vmatpush1.bf16.msra.mxu0 0
  %2441 = vmatprep.mubr.bf16.mxu0 0
  %2442 = vmatmul.mubr.bf16.gmra.mrb[0].mxu0 %v2355
  %v2443 = vpop.f32.mrb[0].mxu0
  %v2444 = vadd.f32 %v2289, %v2443
  %v2445 = vpop.f32.mrb[0].mxu0
  %v2446 = vpop.f32.mrb[0].mxu0
  %v2447 = vpop.f32.mrb[0].mxu0
  %2448 = vdwg.mxu0
  %v2453 = vunpack.c.l.b16 %v2217
  %v2454 = vunpack.c.l.b16 %v2218
  %v2455 = vunpack.c.l.b16 %v2219
  %v2456 = vunpack.c.l.b16 %v2220
  %v2457 = vpack.c.b16 %v2454, %v2453
  %v2458 = vpack.c.b16 %v2456, %v2455
  %2461 = vmatprep.subr.bf16.mxu0 0
  %2462 = vmatpush1.bf16.msra.mxu0 %v2457
  %2463 = vmatprep.subr.bf16.mxu0 0
  %2464 = vmatpush1.bf16.msra.mxu0 %v2458
  %2465 = vmatprep.subr.bf16.mxu0 0
  %2466 = vmatpush1.bf16.msra.mxu0 0
  %2467 = vmatprep.subr.bf16.mxu0 0
  %2468 = vmatpush1.bf16.msra.mxu0 0
  %2469 = vmatprep.subr.bf16.mxu0 0
  %2470 = vmatpush1.bf16.msra.mxu0 0
  %2471 = vmatprep.subr.bf16.mxu0 0
  %2472 = vmatpush1.bf16.msra.mxu0 0
  %2473 = vmatprep.subr.bf16.mxu0 0
  %2474 = vmatpush1.bf16.msra.mxu0 0
  %2475 = vmatprep.subr.bf16.mxu0 0
  %2476 = vmatpush1.bf16.msra.mxu0 0
  %2477 = vmatprep.subr.bf16.mxu0 0
  %2478 = vmatpush1.bf16.msra.mxu0 0
  %2479 = vmatprep.subr.bf16.mxu0 0
  %2480 = vmatpush1.bf16.msra.mxu0 0
  %2481 = vmatprep.subr.bf16.mxu0 0
  %2482 = vmatpush1.bf16.msra.mxu0 0
  %2483 = vmatprep.subr.bf16.mxu0 0
  %2484 = vmatpush1.bf16.msra.mxu0 0
  %2485 = vmatprep.subr.bf16.mxu0 0
  %2486 = vmatpush1.bf16.msra.mxu0 0
  %2487 = vmatprep.subr.bf16.mxu0 0
  %2488 = vmatpush1.bf16.msra.mxu0 0
  %2489 = vmatprep.subr.bf16.mxu0 0
  %2490 = vmatpush1.bf16.msra.mxu0 0
  %2491 = vmatprep.subr.bf16.mxu0 0
  %2492 = vmatpush1.bf16.msra.mxu0 0
  %2493 = vmatprep.mubr.bf16.mxu0 0
  %2494 = vmatmul.mubr.bf16.gmra.mrb[0].mxu0 %v2355
  %v2495 = vpop.f32.mrb[0].mxu0
  %v2496 = vadd.f32 %v2293, %v2495
  %v2497 = vpop.f32.mrb[0].mxu0
  %v2498 = vpop.f32.mrb[0].mxu0
  %v2499 = vpop.f32.mrb[0].mxu0
  %2500 = vdwg.mxu0
  %v2505 = vunpack.c.l.b16 %v2221
  %v2506 = vunpack.c.l.b16 %v2222
  %v2507 = vunpack.c.l.b16 %v2223
  %v2508 = vunpack.c.l.b16 %v2224
  %v2509 = vpack.c.b16 %v2506, %v2505
  %v2510 = vpack.c.b16 %v2508, %v2507
  %2513 = vmatprep.subr.bf16.mxu0 0
  %2514 = vmatpush1.bf16.msra.mxu0 %v2509
  %2515 = vmatprep.subr.bf16.mxu0 0
  %2516 = vmatpush1.bf16.msra.mxu0 %v2510
  %2517 = vmatprep.subr.bf16.mxu0 0
  %2518 = vmatpush1.bf16.msra.mxu0 0
  %2519 = vmatprep.subr.bf16.mxu0 0
  %2520 = vmatpush1.bf16.msra.mxu0 0
  %2521 = vmatprep.subr.bf16.mxu0 0
  %2522 = vmatpush1.bf16.msra.mxu0 0
  %2523 = vmatprep.subr.bf16.mxu0 0
  %2524 = vmatpush1.bf16.msra.mxu0 0
  %2525 = vmatprep.subr.bf16.mxu0 0
  %2526 = vmatpush1.bf16.msra.mxu0 0
  %2527 = vmatprep.subr.bf16.mxu0 0
  %2528 = vmatpush1.bf16.msra.mxu0 0
  %2529 = vmatprep.subr.bf16.mxu0 0
  %2530 = vmatpush1.bf16.msra.mxu0 0
  %2531 = vmatprep.subr.bf16.mxu0 0
  %2532 = vmatpush1.bf16.msra.mxu0 0
  %2533 = vmatprep.subr.bf16.mxu0 0
  %2534 = vmatpush1.bf16.msra.mxu0 0
  %2535 = vmatprep.subr.bf16.mxu0 0
  %2536 = vmatpush1.bf16.msra.mxu0 0
  %2537 = vmatprep.subr.bf16.mxu0 0
  %2538 = vmatpush1.bf16.msra.mxu0 0
  %2539 = vmatprep.subr.bf16.mxu0 0
  %2540 = vmatpush1.bf16.msra.mxu0 0
  %2541 = vmatprep.subr.bf16.mxu0 0
  %2542 = vmatpush1.bf16.msra.mxu0 0
  %2543 = vmatprep.subr.bf16.mxu0 0
  %2544 = vmatpush1.bf16.msra.mxu0 0
  %2545 = vmatprep.mubr.bf16.mxu0 0
  %2546 = vmatmul.mubr.bf16.gmra.mrb[0].mxu0 %v2355
  %v2547 = vpop.f32.mrb[0].mxu0
  %v2548 = vadd.f32 %v2297, %v2547
  %v2549 = vpop.f32.mrb[0].mxu0
  %v2550 = vpop.f32.mrb[0].mxu0
  %v2551 = vpop.f32.mrb[0].mxu0
  %2552 = vdwg.mxu0
  %v2557 = vunpack.c.l.b16 %v2225
  %v2558 = vunpack.c.l.b16 %v2226
  %v2559 = vunpack.c.l.b16 %v2227
  %v2560 = vunpack.c.l.b16 %v2228
  %v2561 = vpack.c.b16 %v2558, %v2557
  %v2562 = vpack.c.b16 %v2560, %v2559
  %2565 = vmatprep.subr.bf16.mxu0 0
  %2566 = vmatpush1.bf16.msra.mxu0 %v2561
  %2567 = vmatprep.subr.bf16.mxu0 0
  %2568 = vmatpush1.bf16.msra.mxu0 %v2562
  %2569 = vmatprep.subr.bf16.mxu0 0
  %2570 = vmatpush1.bf16.msra.mxu0 0
  %2571 = vmatprep.subr.bf16.mxu0 0
  %2572 = vmatpush1.bf16.msra.mxu0 0
  %2573 = vmatprep.subr.bf16.mxu0 0
  %2574 = vmatpush1.bf16.msra.mxu0 0
  %2575 = vmatprep.subr.bf16.mxu0 0
  %2576 = vmatpush1.bf16.msra.mxu0 0
  %2577 = vmatprep.subr.bf16.mxu0 0
  %2578 = vmatpush1.bf16.msra.mxu0 0
  %2579 = vmatprep.subr.bf16.mxu0 0
  %2580 = vmatpush1.bf16.msra.mxu0 0
  %2581 = vmatprep.subr.bf16.mxu0 0
  %2582 = vmatpush1.bf16.msra.mxu0 0
  %2583 = vmatprep.subr.bf16.mxu0 0
  %2584 = vmatpush1.bf16.msra.mxu0 0
  %2585 = vmatprep.subr.bf16.mxu0 0
  %2586 = vmatpush1.bf16.msra.mxu0 0
  %2587 = vmatprep.subr.bf16.mxu0 0
  %2588 = vmatpush1.bf16.msra.mxu0 0
  %2589 = vmatprep.subr.bf16.mxu0 0
  %2590 = vmatpush1.bf16.msra.mxu0 0
  %2591 = vmatprep.subr.bf16.mxu0 0
  %2592 = vmatpush1.bf16.msra.mxu0 0
  %2593 = vmatprep.subr.bf16.mxu0 0
  %2594 = vmatpush1.bf16.msra.mxu0 0
  %2595 = vmatprep.subr.bf16.mxu0 0
  %2596 = vmatpush1.bf16.msra.mxu0 0
  %2597 = vmatprep.mubr.bf16.mxu0 0
  %2598 = vmatmul.mubr.bf16.gmra.mrb[0].mxu0 %v2355
  %v2599 = vpop.f32.mrb[0].mxu0
  %v2600 = vadd.f32 %v2301, %v2599
  %v2601 = vpop.f32.mrb[0].mxu0
  %v2602 = vpop.f32.mrb[0].mxu0
  %v2603 = vpop.f32.mrb[0].mxu0
  %2604 = vdwg.mxu0
  %v2609 = vunpack.c.l.b16 %v2229
  %v2610 = vunpack.c.l.b16 %v2230
  %v2611 = vunpack.c.l.b16 %v2231
  %v2612 = vunpack.c.l.b16 %v2232
  %v2613 = vpack.c.b16 %v2610, %v2609
  %v2614 = vpack.c.b16 %v2612, %v2611
  %2617 = vmatprep.subr.bf16.mxu0 0
  %2618 = vmatpush1.bf16.msra.mxu0 %v2613
  %2619 = vmatprep.subr.bf16.mxu0 0
  %2620 = vmatpush1.bf16.msra.mxu0 %v2614
  %2621 = vmatprep.subr.bf16.mxu0 0
  %2622 = vmatpush1.bf16.msra.mxu0 0
  %2623 = vmatprep.subr.bf16.mxu0 0
  %2624 = vmatpush1.bf16.msra.mxu0 0
  %2625 = vmatprep.subr.bf16.mxu0 0
  %2626 = vmatpush1.bf16.msra.mxu0 0
  %2627 = vmatprep.subr.bf16.mxu0 0
  %2628 = vmatpush1.bf16.msra.mxu0 0
  %2629 = vmatprep.subr.bf16.mxu0 0
  %2630 = vmatpush1.bf16.msra.mxu0 0
  %2631 = vmatprep.subr.bf16.mxu0 0
  %2632 = vmatpush1.bf16.msra.mxu0 0
  %2633 = vmatprep.subr.bf16.mxu0 0
  %2634 = vmatpush1.bf16.msra.mxu0 0
  %2635 = vmatprep.subr.bf16.mxu0 0
  %2636 = vmatpush1.bf16.msra.mxu0 0
  %2637 = vmatprep.subr.bf16.mxu0 0
  %2638 = vmatpush1.bf16.msra.mxu0 0
  %2639 = vmatprep.subr.bf16.mxu0 0
  %2640 = vmatpush1.bf16.msra.mxu0 0
  %2641 = vmatprep.subr.bf16.mxu0 0
  %2642 = vmatpush1.bf16.msra.mxu0 0
  %2643 = vmatprep.subr.bf16.mxu0 0
  %2644 = vmatpush1.bf16.msra.mxu0 0
  %2645 = vmatprep.subr.bf16.mxu0 0
  %2646 = vmatpush1.bf16.msra.mxu0 0
  %2647 = vmatprep.subr.bf16.mxu0 0
  %2648 = vmatpush1.bf16.msra.mxu0 0
  %2649 = vmatprep.mubr.bf16.mxu0 0
  %2650 = vmatmul.mubr.bf16.gmra.mrb[0].mxu0 %v2355
  %v2651 = vpop.f32.mrb[0].mxu0
  %v2652 = vadd.f32 %v2305, %v2651
  %v2653 = vpop.f32.mrb[0].mxu0
  %v2654 = vpop.f32.mrb[0].mxu0
  %v2655 = vpop.f32.mrb[0].mxu0
  %2656 = vdwg.mxu0
  %v2661 = vunpack.c.l.b16 %v2233
  %v2662 = vunpack.c.l.b16 %v2234
  %v2663 = vunpack.c.l.b16 %v2235
  %v2664 = vunpack.c.l.b16 %v2236
  %v2665 = vpack.c.b16 %v2662, %v2661
  %v2666 = vpack.c.b16 %v2664, %v2663
  %2669 = vmatprep.subr.bf16.mxu0 0
  %2670 = vmatpush1.bf16.msra.mxu0 %v2665
  %2671 = vmatprep.subr.bf16.mxu0 0
  %2672 = vmatpush1.bf16.msra.mxu0 %v2666
  %2673 = vmatprep.subr.bf16.mxu0 0
  %2674 = vmatpush1.bf16.msra.mxu0 0
  %2675 = vmatprep.subr.bf16.mxu0 0
  %2676 = vmatpush1.bf16.msra.mxu0 0
  %2677 = vmatprep.subr.bf16.mxu0 0
  %2678 = vmatpush1.bf16.msra.mxu0 0
  %2679 = vmatprep.subr.bf16.mxu0 0
  %2680 = vmatpush1.bf16.msra.mxu0 0
  %2681 = vmatprep.subr.bf16.mxu0 0
  %2682 = vmatpush1.bf16.msra.mxu0 0
  %2683 = vmatprep.subr.bf16.mxu0 0
  %2684 = vmatpush1.bf16.msra.mxu0 0
  %2685 = vmatprep.subr.bf16.mxu0 0
  %2686 = vmatpush1.bf16.msra.mxu0 0
  %2687 = vmatprep.subr.bf16.mxu0 0
  %2688 = vmatpush1.bf16.msra.mxu0 0
  %2689 = vmatprep.subr.bf16.mxu0 0
  %2690 = vmatpush1.bf16.msra.mxu0 0
  %2691 = vmatprep.subr.bf16.mxu0 0
  %2692 = vmatpush1.bf16.msra.mxu0 0
  %2693 = vmatprep.subr.bf16.mxu0 0
  %2694 = vmatpush1.bf16.msra.mxu0 0
  %2695 = vmatprep.subr.bf16.mxu0 0
  %2696 = vmatpush1.bf16.msra.mxu0 0
  %2697 = vmatprep.subr.bf16.mxu0 0
  %2698 = vmatpush1.bf16.msra.mxu0 0
  %2699 = vmatprep.subr.bf16.mxu0 0
  %2700 = vmatpush1.bf16.msra.mxu0 0
  %2701 = vmatprep.mubr.bf16.mxu0 0
  %2702 = vmatmul.mubr.bf16.gmra.mrb[0].mxu0 %v2355
  %v2703 = vpop.f32.mrb[0].mxu0
  %v2704 = vadd.f32 %v2309, %v2703
  %v2705 = vpop.f32.mrb[0].mxu0
  %v2706 = vpop.f32.mrb[0].mxu0
  %v2707 = vpop.f32.mrb[0].mxu0
  %2708 = vdwg.mxu0
  %v2713 = vunpack.c.l.b16 %v2237
  %v2714 = vunpack.c.l.b16 %v2238
  %v2715 = vunpack.c.l.b16 %v2239
  %v2716 = vunpack.c.l.b16 %v2240
  %v2717 = vpack.c.b16 %v2714, %v2713
  %v2718 = vpack.c.b16 %v2716, %v2715
  %2721 = vmatprep.subr.bf16.mxu0 0
  %2722 = vmatpush1.bf16.msra.mxu0 %v2717
  %2723 = vmatprep.subr.bf16.mxu0 0
  %2724 = vmatpush1.bf16.msra.mxu0 %v2718
  %2725 = vmatprep.subr.bf16.mxu0 0
  %2726 = vmatpush1.bf16.msra.mxu0 0
  %2727 = vmatprep.subr.bf16.mxu0 0
  %2728 = vmatpush1.bf16.msra.mxu0 0
  %2729 = vmatprep.subr.bf16.mxu0 0
  %2730 = vmatpush1.bf16.msra.mxu0 0
  %2731 = vmatprep.subr.bf16.mxu0 0
  %2732 = vmatpush1.bf16.msra.mxu0 0
  %2733 = vmatprep.subr.bf16.mxu0 0
  %2734 = vmatpush1.bf16.msra.mxu0 0
  %2735 = vmatprep.subr.bf16.mxu0 0
  %2736 = vmatpush1.bf16.msra.mxu0 0
  %2737 = vmatprep.subr.bf16.mxu0 0
  %2738 = vmatpush1.bf16.msra.mxu0 0
  %2739 = vmatprep.subr.bf16.mxu0 0
  %2740 = vmatpush1.bf16.msra.mxu0 0
  %2741 = vmatprep.subr.bf16.mxu0 0
  %2742 = vmatpush1.bf16.msra.mxu0 0
  %2743 = vmatprep.subr.bf16.mxu0 0
  %2744 = vmatpush1.bf16.msra.mxu0 0
  %2745 = vmatprep.subr.bf16.mxu0 0
  %2746 = vmatpush1.bf16.msra.mxu0 0
  %2747 = vmatprep.subr.bf16.mxu0 0
  %2748 = vmatpush1.bf16.msra.mxu0 0
  %2749 = vmatprep.subr.bf16.mxu0 0
  %2750 = vmatpush1.bf16.msra.mxu0 0
  %2751 = vmatprep.subr.bf16.mxu0 0
  %2752 = vmatpush1.bf16.msra.mxu0 0
  %2753 = vmatprep.mubr.bf16.mxu0 0
  %2754 = vmatmul.mubr.bf16.gmra.mrb[0].mxu0 %v2355
  %v2755 = vpop.f32.mrb[0].mxu0
  %v2756 = vadd.f32 %v2313, %v2755
  %v2757 = vpop.f32.mrb[0].mxu0
  %v2758 = vpop.f32.mrb[0].mxu0
  %v2759 = vpop.f32.mrb[0].mxu0
  %2760 = vdwg.mxu0
  %v2765 = vunpack.c.l.b16 %v2241
  %v2766 = vunpack.c.l.b16 %v2242
  %v2767 = vunpack.c.l.b16 %v2243
  %v2768 = vunpack.c.l.b16 %v2244
  %v2769 = vpack.c.b16 %v2766, %v2765
  %v2770 = vpack.c.b16 %v2768, %v2767
  %2773 = vmatprep.subr.bf16.mxu0 0
  %2774 = vmatpush1.bf16.msra.mxu0 %v2769
  %2775 = vmatprep.subr.bf16.mxu0 0
  %2776 = vmatpush1.bf16.msra.mxu0 %v2770
  %2777 = vmatprep.subr.bf16.mxu0 0
  %2778 = vmatpush1.bf16.msra.mxu0 0
  %2779 = vmatprep.subr.bf16.mxu0 0
  %2780 = vmatpush1.bf16.msra.mxu0 0
  %2781 = vmatprep.subr.bf16.mxu0 0
  %2782 = vmatpush1.bf16.msra.mxu0 0
  %2783 = vmatprep.subr.bf16.mxu0 0
  %2784 = vmatpush1.bf16.msra.mxu0 0
  %2785 = vmatprep.subr.bf16.mxu0 0
  %2786 = vmatpush1.bf16.msra.mxu0 0
  %2787 = vmatprep.subr.bf16.mxu0 0
  %2788 = vmatpush1.bf16.msra.mxu0 0
  %2789 = vmatprep.subr.bf16.mxu0 0
  %2790 = vmatpush1.bf16.msra.mxu0 0
  %2791 = vmatprep.subr.bf16.mxu0 0
  %2792 = vmatpush1.bf16.msra.mxu0 0
  %2793 = vmatprep.subr.bf16.mxu0 0
  %2794 = vmatpush1.bf16.msra.mxu0 0
  %2795 = vmatprep.subr.bf16.mxu0 0
  %2796 = vmatpush1.bf16.msra.mxu0 0
  %2797 = vmatprep.subr.bf16.mxu0 0
  %2798 = vmatpush1.bf16.msra.mxu0 0
  %2799 = vmatprep.subr.bf16.mxu0 0
  %2800 = vmatpush1.bf16.msra.mxu0 0
  %2801 = vmatprep.subr.bf16.mxu0 0
  %2802 = vmatpush1.bf16.msra.mxu0 0
  %2803 = vmatprep.subr.bf16.mxu0 0
  %2804 = vmatpush1.bf16.msra.mxu0 0
  %2805 = vmatprep.mubr.bf16.mxu0 0
  %2806 = vmatmul.mubr.bf16.gmra.mrb[0].mxu0 %v2355
  %v2807 = vpop.f32.mrb[0].mxu0
  %v2808 = vadd.f32 %v2317, %v2807
  %v2809 = vpop.f32.mrb[0].mxu0
  %v2810 = vpop.f32.mrb[0].mxu0
  %v2811 = vpop.f32.mrb[0].mxu0
  %2812 = vdwg.mxu0
  %v2817 = vunpack.c.l.b16 %v2245
  %v2818 = vunpack.c.l.b16 %v2246
  %v2819 = vunpack.c.l.b16 %v2247
  %v2820 = vunpack.c.l.b16 %v2248
  %v2821 = vpack.c.b16 %v2818, %v2817
  %v2822 = vpack.c.b16 %v2820, %v2819
  %2825 = vmatprep.subr.bf16.mxu0 0
  %2826 = vmatpush1.bf16.msra.mxu0 %v2821
  %2827 = vmatprep.subr.bf16.mxu0 0
  %2828 = vmatpush1.bf16.msra.mxu0 %v2822
  %2829 = vmatprep.subr.bf16.mxu0 0
  %2830 = vmatpush1.bf16.msra.mxu0 0
  %2831 = vmatprep.subr.bf16.mxu0 0
  %2832 = vmatpush1.bf16.msra.mxu0 0
  %2833 = vmatprep.subr.bf16.mxu0 0
  %2834 = vmatpush1.bf16.msra.mxu0 0
  %2835 = vmatprep.subr.bf16.mxu0 0
  %2836 = vmatpush1.bf16.msra.mxu0 0
  %2837 = vmatprep.subr.bf16.mxu0 0
  %2838 = vmatpush1.bf16.msra.mxu0 0
  %2839 = vmatprep.subr.bf16.mxu0 0
  %2840 = vmatpush1.bf16.msra.mxu0 0
  %2841 = vmatprep.subr.bf16.mxu0 0
  %2842 = vmatpush1.bf16.msra.mxu0 0
  %2843 = vmatprep.subr.bf16.mxu0 0
  %2844 = vmatpush1.bf16.msra.mxu0 0
  %2845 = vmatprep.subr.bf16.mxu0 0
  %2846 = vmatpush1.bf16.msra.mxu0 0
  %2847 = vmatprep.subr.bf16.mxu0 0
  %2848 = vmatpush1.bf16.msra.mxu0 0
  %2849 = vmatprep.subr.bf16.mxu0 0
  %2850 = vmatpush1.bf16.msra.mxu0 0
  %2851 = vmatprep.subr.bf16.mxu0 0
  %2852 = vmatpush1.bf16.msra.mxu0 0
  %2853 = vmatprep.subr.bf16.mxu0 0
  %2854 = vmatpush1.bf16.msra.mxu0 0
  %2855 = vmatprep.subr.bf16.mxu0 0
  %2856 = vmatpush1.bf16.msra.mxu0 0
  %2857 = vmatprep.mubr.bf16.mxu0 0
  %2858 = vmatmul.mubr.bf16.gmra.mrb[0].mxu0 %v2355
  %v2859 = vpop.f32.mrb[0].mxu0
  %v2860 = vadd.f32 %v2321, %v2859
  %v2861 = vpop.f32.mrb[0].mxu0
  %v2862 = vpop.f32.mrb[0].mxu0
  %v2863 = vpop.f32.mrb[0].mxu0
  %2864 = vdwg.mxu0
  %v2869 = vunpack.c.l.b16 %v2249
  %v2870 = vunpack.c.l.b16 %v2250
  %v2871 = vunpack.c.l.b16 %v2251
  %v2872 = vunpack.c.l.b16 %v2252
  %v2873 = vpack.c.b16 %v2870, %v2869
  %v2874 = vpack.c.b16 %v2872, %v2871
  %2877 = vmatprep.subr.bf16.mxu0 0
  %2878 = vmatpush1.bf16.msra.mxu0 %v2873
  %2879 = vmatprep.subr.bf16.mxu0 0
  %2880 = vmatpush1.bf16.msra.mxu0 %v2874
  %2881 = vmatprep.subr.bf16.mxu0 0
  %2882 = vmatpush1.bf16.msra.mxu0 0
  %2883 = vmatprep.subr.bf16.mxu0 0
  %2884 = vmatpush1.bf16.msra.mxu0 0
  %2885 = vmatprep.subr.bf16.mxu0 0
  %2886 = vmatpush1.bf16.msra.mxu0 0
  %2887 = vmatprep.subr.bf16.mxu0 0
  %2888 = vmatpush1.bf16.msra.mxu0 0
  %2889 = vmatprep.subr.bf16.mxu0 0
  %2890 = vmatpush1.bf16.msra.mxu0 0
  %2891 = vmatprep.subr.bf16.mxu0 0
  %2892 = vmatpush1.bf16.msra.mxu0 0
  %2893 = vmatprep.subr.bf16.mxu0 0
  %2894 = vmatpush1.bf16.msra.mxu0 0
  %2895 = vmatprep.subr.bf16.mxu0 0
  %2896 = vmatpush1.bf16.msra.mxu0 0
  %2897 = vmatprep.subr.bf16.mxu0 0
  %2898 = vmatpush1.bf16.msra.mxu0 0
  %2899 = vmatprep.subr.bf16.mxu0 0
  %2900 = vmatpush1.bf16.msra.mxu0 0
  %2901 = vmatprep.subr.bf16.mxu0 0
  %2902 = vmatpush1.bf16.msra.mxu0 0
  %2903 = vmatprep.subr.bf16.mxu0 0
  %2904 = vmatpush1.bf16.msra.mxu0 0
  %2905 = vmatprep.subr.bf16.mxu0 0
  %2906 = vmatpush1.bf16.msra.mxu0 0
  %2907 = vmatprep.subr.bf16.mxu0 0
  %2908 = vmatpush1.bf16.msra.mxu0 0
  %2909 = vmatprep.mubr.bf16.mxu0 0
  %2910 = vmatmul.mubr.bf16.gmra.mrb[0].mxu0 %v2355
  %v2911 = vpop.f32.mrb[0].mxu0
  %v2912 = vadd.f32 %v2325, %v2911
  %v2913 = vpop.f32.mrb[0].mxu0
  %v2914 = vpop.f32.mrb[0].mxu0
  %v2915 = vpop.f32.mrb[0].mxu0
  %2916 = vdwg.mxu0
  %v2921 = vunpack.c.l.b16 %v2253
  %v2922 = vunpack.c.l.b16 %v2254
  %v2923 = vunpack.c.l.b16 %v2255
  %v2924 = vunpack.c.l.b16 %v2256
  %v2925 = vpack.c.b16 %v2922, %v2921
  %v2926 = vpack.c.b16 %v2924, %v2923
  %2929 = vmatprep.subr.bf16.mxu0 0
  %2930 = vmatpush1.bf16.msra.mxu0 %v2925
  %2931 = vmatprep.subr.bf16.mxu0 0
  %2932 = vmatpush1.bf16.msra.mxu0 %v2926
  %2933 = vmatprep.subr.bf16.mxu0 0
  %2934 = vmatpush1.bf16.msra.mxu0 0
  %2935 = vmatprep.subr.bf16.mxu0 0
  %2936 = vmatpush1.bf16.msra.mxu0 0
  %2937 = vmatprep.subr.bf16.mxu0 0
  %2938 = vmatpush1.bf16.msra.mxu0 0
  %2939 = vmatprep.subr.bf16.mxu0 0
  %2940 = vmatpush1.bf16.msra.mxu0 0
  %2941 = vmatprep.subr.bf16.mxu0 0
  %2942 = vmatpush1.bf16.msra.mxu0 0
  %2943 = vmatprep.subr.bf16.mxu0 0
  %2944 = vmatpush1.bf16.msra.mxu0 0
  %2945 = vmatprep.subr.bf16.mxu0 0
  %2946 = vmatpush1.bf16.msra.mxu0 0
  %2947 = vmatprep.subr.bf16.mxu0 0
  %2948 = vmatpush1.bf16.msra.mxu0 0
  %2949 = vmatprep.subr.bf16.mxu0 0
  %2950 = vmatpush1.bf16.msra.mxu0 0
  %2951 = vmatprep.subr.bf16.mxu0 0
  %2952 = vmatpush1.bf16.msra.mxu0 0
  %2953 = vmatprep.subr.bf16.mxu0 0
  %2954 = vmatpush1.bf16.msra.mxu0 0
  %2955 = vmatprep.subr.bf16.mxu0 0
  %2956 = vmatpush1.bf16.msra.mxu0 0
  %2957 = vmatprep.subr.bf16.mxu0 0
  %2958 = vmatpush1.bf16.msra.mxu0 0
  %2959 = vmatprep.subr.bf16.mxu0 0
  %2960 = vmatpush1.bf16.msra.mxu0 0
  %2961 = vmatprep.mubr.bf16.mxu0 0
  %2962 = vmatmul.mubr.bf16.gmra.mrb[0].mxu0 %v2355
  %v2963 = vpop.f32.mrb[0].mxu0
  %v2964 = vadd.f32 %v2329, %v2963
  %v2965 = vpop.f32.mrb[0].mxu0
  %v2966 = vpop.f32.mrb[0].mxu0
  %v2967 = vpop.f32.mrb[0].mxu0
  %2968 = vdwg.mxu0
  %v2969 = vpack.c.bf16 %v2392, %v2392
  %v2970 = vpack.c.bf16 %v2444, %v2444
  %v2971 = vpack.c.bf16 %v2496, %v2496
  %v2972 = vpack.c.bf16 %v2548, %v2548
  %v2973 = vpack.c.bf16 %v2600, %v2600
  %v2974 = vpack.c.bf16 %v2652, %v2652
  %v2975 = vpack.c.bf16 %v2704, %v2704
  %v2976 = vpack.c.bf16 %v2756, %v2756
  %v2977 = vpack.c.bf16 %v2808, %v2808
  %v2978 = vpack.c.bf16 %v2860, %v2860
  %v2979 = vpack.c.bf16 %v2912, %v2912
  %v2980 = vpack.c.bf16 %v2964, %v2964
  %v2982 = vsel %vm1378, %v2969, 0
  %v2985 = vsel %vm1378, %v2973, 0
  %2987 = vmatprep.subr.bf16.mxu0 0
  %2988 = vmatpush1.bf16.xpose.msra.mxu0 %v2985
  %2989 = vmatprep.subr.bf16.mxu0 0
  %2990 = vmatpush1.bf16.xpose.msra.mxu0 0
  %2991 = vmatprep.subr.bf16.mxu0 0
  %2992 = vmatpush1.bf16.xpose.msra.mxu0 0
  %2993 = vmatprep.subr.bf16.mxu0 0
  %2994 = vmatpush1.bf16.xpose.msra.mxu0 0
  %2995 = vmatprep.subr.bf16.mxu0 0
  %2996 = vmatpush1.bf16.xpose.msra.mxu0 0
  %2997 = vmatprep.subr.bf16.mxu0 0
  %2998 = vmatpush1.bf16.xpose.msra.mxu0 0
  %2999 = vmatprep.subr.bf16.mxu0 0
  %3000 = vmatpush1.bf16.xpose.msra.mxu0 0
  %3001 = vmatprep.subr.bf16.mxu0 0
  %3002 = vmatpush1.bf16.xpose.msra.mxu0 0
  %3003 = vmatprep.subr.bf16.mxu0 0
  %3004 = vmatpush1.bf16.xpose.msra.mxu0 0
  %3005 = vmatprep.subr.bf16.mxu0 0
  %3006 = vmatpush1.bf16.xpose.msra.mxu0 0
  %3007 = vmatprep.subr.bf16.mxu0 0
  %3008 = vmatpush1.bf16.xpose.msra.mxu0 0
  %3009 = vmatprep.subr.bf16.mxu0 0
  %3010 = vmatpush1.bf16.xpose.msra.mxu0 0
  %3011 = vmatprep.subr.bf16.mxu0 0
  %3012 = vmatpush1.bf16.xpose.msra.mxu0 0
  %3013 = vmatprep.subr.bf16.mxu0 0
  %3014 = vmatpush1.bf16.xpose.msra.mxu0 0
  %3015 = vmatprep.subr.bf16.mxu0 0
  %3016 = vmatpush1.bf16.xpose.msra.mxu0 0
  %3017 = vmatprep.subr.bf16.mxu0 0
  %3018 = vmatpush1.bf16.xpose.msra.mxu0 0
  %3019 = vmatprep.mubr.bf16.mxu0 0
  %3020 = vmatmul.mubr.bf16.gmra.mrb[0].mxu0 %v2982
  %v3021 = vpop.f32.mrb[0].mxu0
  %v3022 = vadd.f32 0.0, %v3021
  %v3023 = vpop.f32.mrb[0].mxu0
  %v3024 = vpop.f32.mrb[0].mxu0
  %v3025 = vpop.f32.mrb[0].mxu0
  %3026 = vdwg.mxu0
  %v3028 = vsel %vm1378, %v2970, 0
  %v3031 = vsel %vm1378, %v2974, 0
  %3033 = vmatprep.subr.bf16.mxu0 0
  %3034 = vmatpush1.bf16.xpose.msra.mxu0 %v3031
  %3035 = vmatprep.subr.bf16.mxu0 0
  %3036 = vmatpush1.bf16.xpose.msra.mxu0 0
  %3037 = vmatprep.subr.bf16.mxu0 0
  %3038 = vmatpush1.bf16.xpose.msra.mxu0 0
  %3039 = vmatprep.subr.bf16.mxu0 0
  %3040 = vmatpush1.bf16.xpose.msra.mxu0 0
  %3041 = vmatprep.subr.bf16.mxu0 0
  %3042 = vmatpush1.bf16.xpose.msra.mxu0 0
  %3043 = vmatprep.subr.bf16.mxu0 0
  %3044 = vmatpush1.bf16.xpose.msra.mxu0 0
  %3045 = vmatprep.subr.bf16.mxu0 0
  %3046 = vmatpush1.bf16.xpose.msra.mxu0 0
  %3047 = vmatprep.subr.bf16.mxu0 0
  %3048 = vmatpush1.bf16.xpose.msra.mxu0 0
  %3049 = vmatprep.subr.bf16.mxu0 0
  %3050 = vmatpush1.bf16.xpose.msra.mxu0 0
  %3051 = vmatprep.subr.bf16.mxu0 0
  %3052 = vmatpush1.bf16.xpose.msra.mxu0 0
  %3053 = vmatprep.subr.bf16.mxu0 0
  %3054 = vmatpush1.bf16.xpose.msra.mxu0 0
  %3055 = vmatprep.subr.bf16.mxu0 0
  %3056 = vmatpush1.bf16.xpose.msra.mxu0 0
  %3057 = vmatprep.subr.bf16.mxu0 0
  %3058 = vmatpush1.bf16.xpose.msra.mxu0 0
  %3059 = vmatprep.subr.bf16.mxu0 0
  %3060 = vmatpush1.bf16.xpose.msra.mxu0 0
  %3061 = vmatprep.subr.bf16.mxu0 0
  %3062 = vmatpush1.bf16.xpose.msra.mxu0 0
  %3063 = vmatprep.subr.bf16.mxu0 0
  %3064 = vmatpush1.bf16.xpose.msra.mxu0 0
  %3065 = vmatprep.mubr.bf16.mxu0 0
  %3066 = vmatmul.mubr.bf16.gmra.mrb[0].mxu0 %v3028
  %v3067 = vpop.f32.mrb[0].mxu0
  %v3068 = vadd.f32 0.0, %v3067
  %v3069 = vpop.f32.mrb[0].mxu0
  %v3070 = vpop.f32.mrb[0].mxu0
  %v3071 = vpop.f32.mrb[0].mxu0
  %3072 = vdwg.mxu0
  %v3074 = vsel %vm1378, %v2971, 0
  %v3077 = vsel %vm1378, %v2975, 0
  %3079 = vmatprep.subr.bf16.mxu0 0
  %3080 = vmatpush1.bf16.xpose.msra.mxu0 %v3077
  %3081 = vmatprep.subr.bf16.mxu0 0
  %3082 = vmatpush1.bf16.xpose.msra.mxu0 0
  %3083 = vmatprep.subr.bf16.mxu0 0
  %3084 = vmatpush1.bf16.xpose.msra.mxu0 0
  %3085 = vmatprep.subr.bf16.mxu0 0
  %3086 = vmatpush1.bf16.xpose.msra.mxu0 0
  %3087 = vmatprep.subr.bf16.mxu0 0
  %3088 = vmatpush1.bf16.xpose.msra.mxu0 0
  %3089 = vmatprep.subr.bf16.mxu0 0
  %3090 = vmatpush1.bf16.xpose.msra.mxu0 0
  %3091 = vmatprep.subr.bf16.mxu0 0
  %3092 = vmatpush1.bf16.xpose.msra.mxu0 0
  %3093 = vmatprep.subr.bf16.mxu0 0
  %3094 = vmatpush1.bf16.xpose.msra.mxu0 0
  %3095 = vmatprep.subr.bf16.mxu0 0
  %3096 = vmatpush1.bf16.xpose.msra.mxu0 0
  %3097 = vmatprep.subr.bf16.mxu0 0
  %3098 = vmatpush1.bf16.xpose.msra.mxu0 0
  %3099 = vmatprep.subr.bf16.mxu0 0
  %3100 = vmatpush1.bf16.xpose.msra.mxu0 0
  %3101 = vmatprep.subr.bf16.mxu0 0
  %3102 = vmatpush1.bf16.xpose.msra.mxu0 0
  %3103 = vmatprep.subr.bf16.mxu0 0
  %3104 = vmatpush1.bf16.xpose.msra.mxu0 0
  %3105 = vmatprep.subr.bf16.mxu0 0
  %3106 = vmatpush1.bf16.xpose.msra.mxu0 0
  %3107 = vmatprep.subr.bf16.mxu0 0
  %3108 = vmatpush1.bf16.xpose.msra.mxu0 0
  %3109 = vmatprep.subr.bf16.mxu0 0
  %3110 = vmatpush1.bf16.xpose.msra.mxu0 0
  %3111 = vmatprep.mubr.bf16.mxu0 0
  %3112 = vmatmul.mubr.bf16.gmra.mrb[0].mxu0 %v3074
  %v3113 = vpop.f32.mrb[0].mxu0
  %v3114 = vadd.f32 0.0, %v3113
  %v3115 = vpop.f32.mrb[0].mxu0
  %v3116 = vpop.f32.mrb[0].mxu0
  %v3117 = vpop.f32.mrb[0].mxu0
  %3118 = vdwg.mxu0
  %v3120 = vsel %vm1378, %v2972, 0
  %v3123 = vsel %vm1378, %v2976, 0
  %3125 = vmatprep.subr.bf16.mxu0 0
  %3126 = vmatpush1.bf16.xpose.msra.mxu0 %v3123
  %3127 = vmatprep.subr.bf16.mxu0 0
  %3128 = vmatpush1.bf16.xpose.msra.mxu0 0
  %3129 = vmatprep.subr.bf16.mxu0 0
  %3130 = vmatpush1.bf16.xpose.msra.mxu0 0
  %3131 = vmatprep.subr.bf16.mxu0 0
  %3132 = vmatpush1.bf16.xpose.msra.mxu0 0
  %3133 = vmatprep.subr.bf16.mxu0 0
  %3134 = vmatpush1.bf16.xpose.msra.mxu0 0
  %3135 = vmatprep.subr.bf16.mxu0 0
  %3136 = vmatpush1.bf16.xpose.msra.mxu0 0
  %3137 = vmatprep.subr.bf16.mxu0 0
  %3138 = vmatpush1.bf16.xpose.msra.mxu0 0
  %3139 = vmatprep.subr.bf16.mxu0 0
  %3140 = vmatpush1.bf16.xpose.msra.mxu0 0
  %3141 = vmatprep.subr.bf16.mxu0 0
  %3142 = vmatpush1.bf16.xpose.msra.mxu0 0
  %3143 = vmatprep.subr.bf16.mxu0 0
  %3144 = vmatpush1.bf16.xpose.msra.mxu0 0
  %3145 = vmatprep.subr.bf16.mxu0 0
  %3146 = vmatpush1.bf16.xpose.msra.mxu0 0
  %3147 = vmatprep.subr.bf16.mxu0 0
  %3148 = vmatpush1.bf16.xpose.msra.mxu0 0
  %3149 = vmatprep.subr.bf16.mxu0 0
  %3150 = vmatpush1.bf16.xpose.msra.mxu0 0
  %3151 = vmatprep.subr.bf16.mxu0 0
  %3152 = vmatpush1.bf16.xpose.msra.mxu0 0
  %3153 = vmatprep.subr.bf16.mxu0 0
  %3154 = vmatpush1.bf16.xpose.msra.mxu0 0
  %3155 = vmatprep.subr.bf16.mxu0 0
  %3156 = vmatpush1.bf16.xpose.msra.mxu0 0
  %3157 = vmatprep.mubr.bf16.mxu0 0
  %3158 = vmatmul.mubr.bf16.gmra.mrb[0].mxu0 %v3120
  %v3159 = vpop.f32.mrb[0].mxu0
  %v3160 = vadd.f32 0.0, %v3159
  %v3161 = vpop.f32.mrb[0].mxu0
  %v3162 = vpop.f32.mrb[0].mxu0
  %v3163 = vpop.f32.mrb[0].mxu0
  %3164 = vdwg.mxu0
  %v3165 = vmul.f32 %v3022, 0.35355338
  %v3166 = vmul.f32 %v3068, 0.35355338
  %v3167 = vmul.f32 %v3114, 0.35355338
  %v3168 = vmul.f32 %v3160, 0.35355338
  %v3169 = vsel %vm1378, %v3165, -inf
  %3170 = vmax.xlane.f32.xlu0 %v3169
  %v3171 = vpop.xlane.xlu0 %3170
  %v3172 = vsel %vm1378, %v3166, -inf
  %3173 = vmax.xlane.f32.xlu0 %v3172
  %v3174 = vpop.xlane.xlu0 %3173
  %v3175 = vsel %vm1378, %v3167, -inf
  %3176 = vmax.xlane.f32.xlu0 %v3175
  %v3177 = vpop.xlane.xlu0 %3176
  %v3178 = vsel %vm1378, %v3168, -inf
  %3179 = vmax.xlane.f32.xlu0 %v3178
  %v3180 = vpop.xlane.xlu0 %3179
  %v3181 = vsub.f32 %v3165, %v3171
  %v3182 = vsub.f32 %v3166, %v3174
  %v3183 = vsub.f32 %v3167, %v3177
  %v3184 = vsub.f32 %v3168, %v3180
  %v3185 = vmul.f32 %v3181, 1.442695
  %v3186 = vpow.pop %v3185
  %v3187 = vmul.f32 %v3182, 1.442695
  %v3188 = vpow.pop %v3187
  %v3189 = vmul.f32 %v3183, 1.442695
  %v3190 = vpow.pop %v3189
  %v3191 = vmul.f32 %v3184, 1.442695
  %v3192 = vpow.pop %v3191
  %v3193 = vsel %vm1378, %v3186, 0.0
  %3194 = vadd.xlane.f32.xlu0 %v3193
  %v3195 = vpop.xlane.xlu0 %3194
  %v3196 = vsel %vm1378, %v3188, 0.0
  %3197 = vadd.xlane.f32.xlu0 %v3196
  %v3198 = vpop.xlane.xlu0 %3197
  %v3199 = vsel %vm1378, %v3190, 0.0
  %3200 = vadd.xlane.f32.xlu0 %v3199
  %v3201 = vpop.xlane.xlu0 %3200
  %v3202 = vsel %vm1378, %v3192, 0.0
  %3203 = vadd.xlane.f32.xlu0 %v3202
  %v3204 = vpop.xlane.xlu0 %3203
  %v3205 = vrcp.pop %v3195
  %v3206 = vrcp.pop %v3198
  %v3207 = vrcp.pop %v3201
  %v3208 = vrcp.pop %v3204
  %v3209 = vmul.f32 %v3186, %v3205
  %v3210 = vmul.f32 %v3188, %v3206
  %v3211 = vmul.f32 %v3190, %v3207
  %v3212 = vmul.f32 %v3192, %v3208
  %v3213 = vpack.c.bf16 %v3209, %v3209
  %v3214 = vpack.c.bf16 %v3210, %v3210
  %v3215 = vpack.c.bf16 %v3211, %v3211
  %v3216 = vpack.c.bf16 %v3212, %v3212
  %v3218 = vsel %vm1378, %v3213, 0
  %v3221 = vsel %vm1618, %v2977, 0
  %3223 = vmatprep.subr.bf16.mxu0 0
  %3224 = vmatpush1.bf16.msra.mxu0 %v3221
  %3225 = vmatprep.subr.bf16.mxu0 0
  %3226 = vmatpush1.bf16.msra.mxu0 0
  %3227 = vmatprep.subr.bf16.mxu0 0
  %3228 = vmatpush1.bf16.msra.mxu0 0
  %3229 = vmatprep.subr.bf16.mxu0 0
  %3230 = vmatpush1.bf16.msra.mxu0 0
  %3231 = vmatprep.subr.bf16.mxu0 0
  %3232 = vmatpush1.bf16.msra.mxu0 0
  %3233 = vmatprep.subr.bf16.mxu0 0
  %3234 = vmatpush1.bf16.msra.mxu0 0
  %3235 = vmatprep.subr.bf16.mxu0 0
  %3236 = vmatpush1.bf16.msra.mxu0 0
  %3237 = vmatprep.subr.bf16.mxu0 0
  %3238 = vmatpush1.bf16.msra.mxu0 0
  %3239 = vmatprep.subr.bf16.mxu0 0
  %3240 = vmatpush1.bf16.msra.mxu0 0
  %3241 = vmatprep.subr.bf16.mxu0 0
  %3242 = vmatpush1.bf16.msra.mxu0 0
  %3243 = vmatprep.subr.bf16.mxu0 0
  %3244 = vmatpush1.bf16.msra.mxu0 0
  %3245 = vmatprep.subr.bf16.mxu0 0
  %3246 = vmatpush1.bf16.msra.mxu0 0
  %3247 = vmatprep.subr.bf16.mxu0 0
  %3248 = vmatpush1.bf16.msra.mxu0 0
  %3249 = vmatprep.subr.bf16.mxu0 0
  %3250 = vmatpush1.bf16.msra.mxu0 0
  %3251 = vmatprep.subr.bf16.mxu0 0
  %3252 = vmatpush1.bf16.msra.mxu0 0
  %3253 = vmatprep.subr.bf16.mxu0 0
  %3254 = vmatpush1.bf16.msra.mxu0 0
  %3255 = vmatprep.mubr.bf16.mxu0 0
  %3256 = vmatmul.mubr.bf16.gmra.mrb[0].mxu0 %v3218
  %v3257 = vpop.f32.mrb[0].mxu0
  %v3258 = vadd.f32 0.0, %v3257
  %v3259 = vpop.f32.mrb[0].mxu0
  %v3260 = vpop.f32.mrb[0].mxu0
  %v3261 = vpop.f32.mrb[0].mxu0
  %3262 = vdwg.mxu0
  %v3264 = vsel %vm1378, %v3214, 0
  %v3267 = vsel %vm1618, %v2978, 0
  %3269 = vmatprep.subr.bf16.mxu0 0
  %3270 = vmatpush1.bf16.msra.mxu0 %v3267
  %3271 = vmatprep.subr.bf16.mxu0 0
  %3272 = vmatpush1.bf16.msra.mxu0 0
  %3273 = vmatprep.subr.bf16.mxu0 0
  %3274 = vmatpush1.bf16.msra.mxu0 0
  %3275 = vmatprep.subr.bf16.mxu0 0
  %3276 = vmatpush1.bf16.msra.mxu0 0
  %3277 = vmatprep.subr.bf16.mxu0 0
  %3278 = vmatpush1.bf16.msra.mxu0 0
  %3279 = vmatprep.subr.bf16.mxu0 0
  %3280 = vmatpush1.bf16.msra.mxu0 0
  %3281 = vmatprep.subr.bf16.mxu0 0
  %3282 = vmatpush1.bf16.msra.mxu0 0
  %3283 = vmatprep.subr.bf16.mxu0 0
  %3284 = vmatpush1.bf16.msra.mxu0 0
  %3285 = vmatprep.subr.bf16.mxu0 0
  %3286 = vmatpush1.bf16.msra.mxu0 0
  %3287 = vmatprep.subr.bf16.mxu0 0
  %3288 = vmatpush1.bf16.msra.mxu0 0
  %3289 = vmatprep.subr.bf16.mxu0 0
  %3290 = vmatpush1.bf16.msra.mxu0 0
  %3291 = vmatprep.subr.bf16.mxu0 0
  %3292 = vmatpush1.bf16.msra.mxu0 0
  %3293 = vmatprep.subr.bf16.mxu0 0
  %3294 = vmatpush1.bf16.msra.mxu0 0
  %3295 = vmatprep.subr.bf16.mxu0 0
  %3296 = vmatpush1.bf16.msra.mxu0 0
  %3297 = vmatprep.subr.bf16.mxu0 0
  %3298 = vmatpush1.bf16.msra.mxu0 0
  %3299 = vmatprep.subr.bf16.mxu0 0
  %3300 = vmatpush1.bf16.msra.mxu0 0
  %3301 = vmatprep.mubr.bf16.mxu0 0
  %3302 = vmatmul.mubr.bf16.gmra.mrb[0].mxu0 %v3264
  %v3303 = vpop.f32.mrb[0].mxu0
  %v3304 = vadd.f32 0.0, %v3303
  %v3305 = vpop.f32.mrb[0].mxu0
  %v3306 = vpop.f32.mrb[0].mxu0
  %v3307 = vpop.f32.mrb[0].mxu0
  %3308 = vdwg.mxu0
  %v3310 = vsel %vm1378, %v3215, 0
  %v3313 = vsel %vm1618, %v2979, 0
  %3315 = vmatprep.subr.bf16.mxu0 0
  %3316 = vmatpush1.bf16.msra.mxu0 %v3313
  %3317 = vmatprep.subr.bf16.mxu0 0
  %3318 = vmatpush1.bf16.msra.mxu0 0
  %3319 = vmatprep.subr.bf16.mxu0 0
  %3320 = vmatpush1.bf16.msra.mxu0 0
  %3321 = vmatprep.subr.bf16.mxu0 0
  %3322 = vmatpush1.bf16.msra.mxu0 0
  %3323 = vmatprep.subr.bf16.mxu0 0
  %3324 = vmatpush1.bf16.msra.mxu0 0
  %3325 = vmatprep.subr.bf16.mxu0 0
  %3326 = vmatpush1.bf16.msra.mxu0 0
  %3327 = vmatprep.subr.bf16.mxu0 0
  %3328 = vmatpush1.bf16.msra.mxu0 0
  %3329 = vmatprep.subr.bf16.mxu0 0
  %3330 = vmatpush1.bf16.msra.mxu0 0
  %3331 = vmatprep.subr.bf16.mxu0 0
  %3332 = vmatpush1.bf16.msra.mxu0 0
  %3333 = vmatprep.subr.bf16.mxu0 0
  %3334 = vmatpush1.bf16.msra.mxu0 0
  %3335 = vmatprep.subr.bf16.mxu0 0
  %3336 = vmatpush1.bf16.msra.mxu0 0
  %3337 = vmatprep.subr.bf16.mxu0 0
  %3338 = vmatpush1.bf16.msra.mxu0 0
  %3339 = vmatprep.subr.bf16.mxu0 0
  %3340 = vmatpush1.bf16.msra.mxu0 0
  %3341 = vmatprep.subr.bf16.mxu0 0
  %3342 = vmatpush1.bf16.msra.mxu0 0
  %3343 = vmatprep.subr.bf16.mxu0 0
  %3344 = vmatpush1.bf16.msra.mxu0 0
  %3345 = vmatprep.subr.bf16.mxu0 0
  %3346 = vmatpush1.bf16.msra.mxu0 0
  %3347 = vmatprep.mubr.bf16.mxu0 0
  %3348 = vmatmul.mubr.bf16.gmra.mrb[0].mxu0 %v3310
  %v3349 = vpop.f32.mrb[0].mxu0
  %v3350 = vadd.f32 0.0, %v3349
  %v3351 = vpop.f32.mrb[0].mxu0
  %v3352 = vpop.f32.mrb[0].mxu0
  %v3353 = vpop.f32.mrb[0].mxu0
  %3354 = vdwg.mxu0
  %v3356 = vsel %vm1378, %v3216, 0
  %v3359 = vsel %vm1618, %v2980, 0
  %3361 = vmatprep.subr.bf16.mxu0 0
  %3362 = vmatpush1.bf16.msra.mxu0 %v3359
  %3363 = vmatprep.subr.bf16.mxu0 0
  %3364 = vmatpush1.bf16.msra.mxu0 0
  %3365 = vmatprep.subr.bf16.mxu0 0
  %3366 = vmatpush1.bf16.msra.mxu0 0
  %3367 = vmatprep.subr.bf16.mxu0 0
  %3368 = vmatpush1.bf16.msra.mxu0 0
  %3369 = vmatprep.subr.bf16.mxu0 0
  %3370 = vmatpush1.bf16.msra.mxu0 0
  %3371 = vmatprep.subr.bf16.mxu0 0
  %3372 = vmatpush1.bf16.msra.mxu0 0
  %3373 = vmatprep.subr.bf16.mxu0 0
  %3374 = vmatpush1.bf16.msra.mxu0 0
  %3375 = vmatprep.subr.bf16.mxu0 0
  %3376 = vmatpush1.bf16.msra.mxu0 0
  %3377 = vmatprep.subr.bf16.mxu0 0
  %3378 = vmatpush1.bf16.msra.mxu0 0
  %3379 = vmatprep.subr.bf16.mxu0 0
  %3380 = vmatpush1.bf16.msra.mxu0 0
  %3381 = vmatprep.subr.bf16.mxu0 0
  %3382 = vmatpush1.bf16.msra.mxu0 0
  %3383 = vmatprep.subr.bf16.mxu0 0
  %3384 = vmatpush1.bf16.msra.mxu0 0
  %3385 = vmatprep.subr.bf16.mxu0 0
  %3386 = vmatpush1.bf16.msra.mxu0 0
  %3387 = vmatprep.subr.bf16.mxu0 0
  %3388 = vmatpush1.bf16.msra.mxu0 0
  %3389 = vmatprep.subr.bf16.mxu0 0
  %3390 = vmatpush1.bf16.msra.mxu0 0
  %3391 = vmatprep.subr.bf16.mxu0 0
  %3392 = vmatpush1.bf16.msra.mxu0 0
  %3393 = vmatprep.mubr.bf16.mxu0 0
  %3394 = vmatmul.mubr.bf16.gmra.mrb[0].mxu0 %v3356
  %v3395 = vpop.f32.mrb[0].mxu0
  %v3396 = vadd.f32 0.0, %v3395
  %v3397 = vpop.f32.mrb[0].mxu0
  %v3398 = vpop.f32.mrb[0].mxu0
  %v3399 = vpop.f32.mrb[0].mxu0
  %3400 = vdwg.mxu0
  %v3401 = vpack.c.bf16 %v3258, %v3258
  %v3402 = vpack.c.bf16 %v3304, %v3304
  %v3403 = vpack.c.bf16 %v3350, %v3350
  %v3404 = vpack.c.bf16 %v3396, %v3396
  %s3405 = scalar_lea.vmem %s4, 16
  %v3406 = vld [vmem:[%s3405] sm:$0xf]
  %v3407 = vld [vmem:[%s3405 + $0x4] sm:$0xf]
  %v3408 = vld [vmem:[%s3405 + $0x8] sm:$0xf]
  %v3409 = vld [vmem:[%s3405 + $0xc] sm:$0xf]
  %v3411 = vsel %vm1378, %v3401, 0
  %v3414 = vsel %vm1618, %v3406, 0
  %3416 = vmatprep.subr.bf16.mxu0 0
  %3417 = vmatpush1.bf16.msra.mxu0 %v3414
  %3418 = vmatprep.subr.bf16.mxu0 0
  %3419 = vmatpush1.bf16.msra.mxu0 0
  %3420 = vmatprep.subr.bf16.mxu0 0
  %3421 = vmatpush1.bf16.msra.mxu0 0
  %3422 = vmatprep.subr.bf16.mxu0 0
  %3423 = vmatpush1.bf16.msra.mxu0 0
  %3424 = vmatprep.subr.bf16.mxu0 0
  %3425 = vmatpush1.bf16.msra.mxu0 0
  %3426 = vmatprep.subr.bf16.mxu0 0
  %3427 = vmatpush1.bf16.msra.mxu0 0
  %3428 = vmatprep.subr.bf16.mxu0 0
  %3429 = vmatpush1.bf16.msra.mxu0 0
  %3430 = vmatprep.subr.bf16.mxu0 0
  %3431 = vmatpush1.bf16.msra.mxu0 0
  %3432 = vmatprep.subr.bf16.mxu0 0
  %3433 = vmatpush1.bf16.msra.mxu0 0
  %3434 = vmatprep.subr.bf16.mxu0 0
  %3435 = vmatpush1.bf16.msra.mxu0 0
  %3436 = vmatprep.subr.bf16.mxu0 0
  %3437 = vmatpush1.bf16.msra.mxu0 0
  %3438 = vmatprep.subr.bf16.mxu0 0
  %3439 = vmatpush1.bf16.msra.mxu0 0
  %3440 = vmatprep.subr.bf16.mxu0 0
  %3441 = vmatpush1.bf16.msra.mxu0 0
  %3442 = vmatprep.subr.bf16.mxu0 0
  %3443 = vmatpush1.bf16.msra.mxu0 0
  %3444 = vmatprep.subr.bf16.mxu0 0
  %3445 = vmatpush1.bf16.msra.mxu0 0
  %3446 = vmatprep.subr.bf16.mxu0 0
  %3447 = vmatpush1.bf16.msra.mxu0 0
  %3448 = vmatprep.mubr.bf16.mxu0 0
  %3449 = vmatmul.mubr.bf16.gmra.mrb[0].mxu0 %v3411
  %v3450 = vpop.f32.mrb[0].mxu0
  %v3451 = vadd.f32 0.0, %v3450
  %v3452 = vpop.f32.mrb[0].mxu0
  %v3453 = vpop.f32.mrb[0].mxu0
  %v3454 = vpop.f32.mrb[0].mxu0
  %3455 = vdwg.mxu0
  %v3457 = vsel %vm1378, %v3402, 0
  %v3460 = vsel %vm1618, %v3407, 0
  %3462 = vmatprep.subr.bf16.mxu0 0
  %3463 = vmatpush1.bf16.msra.mxu0 %v3460
  %3464 = vmatprep.subr.bf16.mxu0 0
  %3465 = vmatpush1.bf16.msra.mxu0 0
  %3466 = vmatprep.subr.bf16.mxu0 0
  %3467 = vmatpush1.bf16.msra.mxu0 0
  %3468 = vmatprep.subr.bf16.mxu0 0
  %3469 = vmatpush1.bf16.msra.mxu0 0
  %3470 = vmatprep.subr.bf16.mxu0 0
  %3471 = vmatpush1.bf16.msra.mxu0 0
  %3472 = vmatprep.subr.bf16.mxu0 0
  %3473 = vmatpush1.bf16.msra.mxu0 0
  %3474 = vmatprep.subr.bf16.mxu0 0
  %3475 = vmatpush1.bf16.msra.mxu0 0
  %3476 = vmatprep.subr.bf16.mxu0 0
  %3477 = vmatpush1.bf16.msra.mxu0 0
  %3478 = vmatprep.subr.bf16.mxu0 0
  %3479 = vmatpush1.bf16.msra.mxu0 0
  %3480 = vmatprep.subr.bf16.mxu0 0
  %3481 = vmatpush1.bf16.msra.mxu0 0
  %3482 = vmatprep.subr.bf16.mxu0 0
  %3483 = vmatpush1.bf16.msra.mxu0 0
  %3484 = vmatprep.subr.bf16.mxu0 0
  %3485 = vmatpush1.bf16.msra.mxu0 0
  %3486 = vmatprep.subr.bf16.mxu0 0
  %3487 = vmatpush1.bf16.msra.mxu0 0
  %3488 = vmatprep.subr.bf16.mxu0 0
  %3489 = vmatpush1.bf16.msra.mxu0 0
  %3490 = vmatprep.subr.bf16.mxu0 0
  %3491 = vmatpush1.bf16.msra.mxu0 0
  %3492 = vmatprep.subr.bf16.mxu0 0
  %3493 = vmatpush1.bf16.msra.mxu0 0
  %3494 = vmatprep.mubr.bf16.mxu0 0
  %3495 = vmatmul.mubr.bf16.gmra.mrb[0].mxu0 %v3457
  %v3496 = vpop.f32.mrb[0].mxu0
  %v3497 = vadd.f32 0.0, %v3496
  %v3498 = vpop.f32.mrb[0].mxu0
  %v3499 = vpop.f32.mrb[0].mxu0
  %v3500 = vpop.f32.mrb[0].mxu0
  %3501 = vdwg.mxu0
  %v3503 = vsel %vm1378, %v3403, 0
  %v3506 = vsel %vm1618, %v3408, 0
  %3508 = vmatprep.subr.bf16.mxu0 0
  %3509 = vmatpush1.bf16.msra.mxu0 %v3506
  %3510 = vmatprep.subr.bf16.mxu0 0
  %3511 = vmatpush1.bf16.msra.mxu0 0
  %3512 = vmatprep.subr.bf16.mxu0 0
  %3513 = vmatpush1.bf16.msra.mxu0 0
  %3514 = vmatprep.subr.bf16.mxu0 0
  %3515 = vmatpush1.bf16.msra.mxu0 0
  %3516 = vmatprep.subr.bf16.mxu0 0
  %3517 = vmatpush1.bf16.msra.mxu0 0
  %3518 = vmatprep.subr.bf16.mxu0 0
  %3519 = vmatpush1.bf16.msra.mxu0 0
  %3520 = vmatprep.subr.bf16.mxu0 0
  %3521 = vmatpush1.bf16.msra.mxu0 0
  %3522 = vmatprep.subr.bf16.mxu0 0
  %3523 = vmatpush1.bf16.msra.mxu0 0
  %3524 = vmatprep.subr.bf16.mxu0 0
  %3525 = vmatpush1.bf16.msra.mxu0 0
  %3526 = vmatprep.subr.bf16.mxu0 0
  %3527 = vmatpush1.bf16.msra.mxu0 0
  %3528 = vmatprep.subr.bf16.mxu0 0
  %3529 = vmatpush1.bf16.msra.mxu0 0
  %3530 = vmatprep.subr.bf16.mxu0 0
  %3531 = vmatpush1.bf16.msra.mxu0 0
  %3532 = vmatprep.subr.bf16.mxu0 0
  %3533 = vmatpush1.bf16.msra.mxu0 0
  %3534 = vmatprep.subr.bf16.mxu0 0
  %3535 = vmatpush1.bf16.msra.mxu0 0
  %3536 = vmatprep.subr.bf16.mxu0 0
  %3537 = vmatpush1.bf16.msra.mxu0 0
  %3538 = vmatprep.subr.bf16.mxu0 0
  %3539 = vmatpush1.bf16.msra.mxu0 0
  %3540 = vmatprep.mubr.bf16.mxu0 0
  %3541 = vmatmul.mubr.bf16.gmra.mrb[0].mxu0 %v3503
  %v3542 = vpop.f32.mrb[0].mxu0
  %v3543 = vadd.f32 0.0, %v3542
  %v3544 = vpop.f32.mrb[0].mxu0
  %v3545 = vpop.f32.mrb[0].mxu0
  %v3546 = vpop.f32.mrb[0].mxu0
  %3547 = vdwg.mxu0
  %v3549 = vsel %vm1378, %v3404, 0
  %v3552 = vsel %vm1618, %v3409, 0
  %3554 = vmatprep.subr.bf16.mxu0 0
  %3555 = vmatpush1.bf16.msra.mxu0 %v3552
  %3556 = vmatprep.subr.bf16.mxu0 0
  %3557 = vmatpush1.bf16.msra.mxu0 0
  %3558 = vmatprep.subr.bf16.mxu0 0
  %3559 = vmatpush1.bf16.msra.mxu0 0
  %3560 = vmatprep.subr.bf16.mxu0 0
  %3561 = vmatpush1.bf16.msra.mxu0 0
  %3562 = vmatprep.subr.bf16.mxu0 0
  %3563 = vmatpush1.bf16.msra.mxu0 0
  %3564 = vmatprep.subr.bf16.mxu0 0
  %3565 = vmatpush1.bf16.msra.mxu0 0
  %3566 = vmatprep.subr.bf16.mxu0 0
  %3567 = vmatpush1.bf16.msra.mxu0 0
  %3568 = vmatprep.subr.bf16.mxu0 0
  %3569 = vmatpush1.bf16.msra.mxu0 0
  %3570 = vmatprep.subr.bf16.mxu0 0
  %3571 = vmatpush1.bf16.msra.mxu0 0
  %3572 = vmatprep.subr.bf16.mxu0 0
  %3573 = vmatpush1.bf16.msra.mxu0 0
  %3574 = vmatprep.subr.bf16.mxu0 0
  %3575 = vmatpush1.bf16.msra.mxu0 0
  %3576 = vmatprep.subr.bf16.mxu0 0
  %3577 = vmatpush1.bf16.msra.mxu0 0
  %3578 = vmatprep.subr.bf16.mxu0 0
  %3579 = vmatpush1.bf16.msra.mxu0 0
  %3580 = vmatprep.subr.bf16.mxu0 0
  %3581 = vmatpush1.bf16.msra.mxu0 0
  %3582 = vmatprep.subr.bf16.mxu0 0
  %3583 = vmatpush1.bf16.msra.mxu0 0
  %3584 = vmatprep.subr.bf16.mxu0 0
  %3585 = vmatpush1.bf16.msra.mxu0 0
  %3586 = vmatprep.mubr.bf16.mxu0 0
  %3587 = vmatmul.mubr.bf16.gmra.mrb[0].mxu0 %v3549
  %v3588 = vpop.f32.mrb[0].mxu0
  %v3589 = vadd.f32 0.0, %v3588
  %v3590 = vpop.f32.mrb[0].mxu0
  %v3591 = vpop.f32.mrb[0].mxu0
  %v3592 = vpop.f32.mrb[0].mxu0
  %3593 = vdwg.mxu0
  %v3594 = vsel %vm568, %v3451, 0.0
  %v3595 = vsel %vm568, %v3497, 0.0
  %v3596 = vadd.f32 %v3594, %v3595
  %v3597 = vsel %vm568, %v3543, 0.0
  %v3598 = vadd.f32 %v3596, %v3597
  %v3599 = vsel %vm568, %v3589, 0.0
  %v3600 = vadd.f32 %v3598, %v3599
  %v3601 = vadd.f32 %v2175, %v3600
  %v3602 = vlaneseq
  %v3603 = vshrl.u32 %v3602, 7
  %v3604 = vsub.s32 0, %v3603
  %v3605 = vrot.slane %v2178, %v3604
  %v3606 = vadd.f32 %v3601, %v3605
  %v3607 = vsel %vm568, %v3606, 0.0
  %3608 = vadd.xlane.f32.xlu0 %v3607
  %v3609 = vpop.xlane.xlu0 %3608
  %v3610 = vmul.f32 %v3609, %v585
  %v3611 = vsub.f32 %v3606, %v3610
  %v3612 = vmul.f32 %v3611, %v3611
  %v3613 = vsel %vm568, %v3612, 0.0
  %3614 = vadd.xlane.f32.xlu0 %v3613
  %v3615 = vpop.xlane.xlu0 %3614
  %v3616 = vmul.f32 %v3615, %v585
  %v3617 = vadd.f32 %v3616, 1e-06
  %v3618 = vrsqrt.pop %v3617
  %v3619 = vmul.f32 %v3611, %v3618
  %v3620 = vlaneseq
  %v3621 = vshrl.u32 %v3620, 7
  %v3622 = vsub.s32 0, %v3621
  %v3623 = vrot.slane %v2182, %v3622
  %v3624 = vmul.f32 %v3619, %v3623
  %v3625 = vlaneseq
  %v3626 = vshrl.u32 %v3625, 7
  %v3627 = vsub.s32 0, %v3626
  %v3628 = vrot.slane %v2183, %v3627
  %v3629 = vadd.f32 %v3624, %v3628
  %v3630 = vpack.c.bf16 %v3629, %v3629
  %s3631 = scalar_lea.vmem %s5, 16
  %v3632 = vld [vmem:[%s3631] sm:$0xf]
  %v3633 = vld [vmem:[%s3631 + $0x4] sm:$0xf]
  %v3634 = vld [vmem:[%s3631 + $0x8] sm:$0xf]
  %v3635 = vld [vmem:[%s3631 + $0xc] sm:$0xf]
  %v3636 = vlaneseq
  %v3637 = vshrl.u32 %v3636, 7
  %v3638 = vsub.s32 0, %v3637
  %v3639 = vrot.slane %v2177, %v3638
  %v3644 = vunpack.c.l.b16 %v3632
  %v3645 = vunpack.c.l.b16 %v3633
  %v3646 = vunpack.c.l.b16 %v3634
  %v3647 = vunpack.c.l.b16 %v3635
  %v3648 = vpack.c.b16 %v3645, %v3644
  %v3649 = vpack.c.b16 %v3647, %v3646
  %v3653 = vsel %vm568, %v3630, 0
  %3655 = vmatprep.subr.bf16.mxu0 0
  %3656 = vmatpush1.bf16.msra.mxu0 %v3648
  %3657 = vmatprep.subr.bf16.mxu0 0
  %3658 = vmatpush1.bf16.msra.mxu0 %v3649
  %3659 = vmatprep.subr.bf16.mxu0 0
  %3660 = vmatpush1.bf16.msra.mxu0 0
  %3661 = vmatprep.subr.bf16.mxu0 0
  %3662 = vmatpush1.bf16.msra.mxu0 0
  %3663 = vmatprep.subr.bf16.mxu0 0
  %3664 = vmatpush1.bf16.msra.mxu0 0
  %3665 = vmatprep.subr.bf16.mxu0 0
  %3666 = vmatpush1.bf16.msra.mxu0 0
  %3667 = vmatprep.subr.bf16.mxu0 0
  %3668 = vmatpush1.bf16.msra.mxu0 0
  %3669 = vmatprep.subr.bf16.mxu0 0
  %3670 = vmatpush1.bf16.msra.mxu0 0
  %3671 = vmatprep.subr.bf16.mxu0 0
  %3672 = vmatpush1.bf16.msra.mxu0 0
  %3673 = vmatprep.subr.bf16.mxu0 0
  %3674 = vmatpush1.bf16.msra.mxu0 0
  %3675 = vmatprep.subr.bf16.mxu0 0
  %3676 = vmatpush1.bf16.msra.mxu0 0
  %3677 = vmatprep.subr.bf16.mxu0 0
  %3678 = vmatpush1.bf16.msra.mxu0 0
  %3679 = vmatprep.subr.bf16.mxu0 0
  %3680 = vmatpush1.bf16.msra.mxu0 0
  %3681 = vmatprep.subr.bf16.mxu0 0
  %3682 = vmatpush1.bf16.msra.mxu0 0
  %3683 = vmatprep.subr.bf16.mxu0 0
  %3684 = vmatpush1.bf16.msra.mxu0 0
  %3685 = vmatprep.subr.bf16.mxu0 0
  %3686 = vmatpush1.bf16.msra.mxu0 0
  %3687 = vmatprep.mubr.bf16.mxu0 0
  %3688 = vmatmul.mubr.bf16.gmra.mrb[0].mxu0 %v3653
  %v3689 = vpop.f32.mrb[0].mxu0
  %v3690 = vadd.f32 %v3639, %v3689
  %v3691 = vpop.f32.mrb[0].mxu0
  %v3692 = vpop.f32.mrb[0].mxu0
  %v3693 = vpop.f32.mrb[0].mxu0
  %3694 = vdwg.mxu0
  %v3695 = vmax.f32 %v3690, 0.0
  %v3696 = vpack.c.bf16 %v3695, %v3695
  %s3697 = scalar_lea.vmem %s6, 32
  %v3698 = vld [vmem:[%s3697] sm:$0xf]
  %v3699 = vld [vmem:[%s3697 + $0x4] sm:$0xf]
  %v3700 = vld [vmem:[%s3697 + $0x8] sm:$0xf]
  %v3701 = vld [vmem:[%s3697 + $0xc] sm:$0xf]
  %v3702 = vld [vmem:[%s3697 + $0x10] sm:$0xf]
  %v3703 = vld [vmem:[%s3697 + $0x14] sm:$0xf]
  %v3704 = vld [vmem:[%s3697 + $0x18] sm:$0xf]
  %v3705 = vld [vmem:[%s3697 + $0x1c] sm:$0xf]
  %v3714 = vunpack.c.l.b16 %v3698
  %v3715 = vunpack.c.l.b16 %v3699
  %v3716 = vunpack.c.l.b16 %v3700
  %v3717 = vunpack.c.l.b16 %v3701
  %v3718 = vunpack.c.l.b16 %v3702
  %v3719 = vunpack.c.l.b16 %v3703
  %v3720 = vunpack.c.l.b16 %v3704
  %v3721 = vunpack.c.l.b16 %v3705
  %v3722 = vpack.c.b16 %v3715, %v3714
  %v3723 = vpack.c.b16 %v3717, %v3716
  %v3724 = vpack.c.b16 %v3719, %v3718
  %v3725 = vpack.c.b16 %v3721, %v3720
  %v3731 = vsel %vm2126, %v3696, 0
  %3733 = vmatprep.subr.bf16.mxu0 0
  %3734 = vmatpush1.bf16.msra.mxu0 %v3722
  %3735 = vmatprep.subr.bf16.mxu0 0
  %3736 = vmatpush1.bf16.msra.mxu0 %v3723
  %3737 = vmatprep.subr.bf16.mxu0 0
  %3738 = vmatpush1.bf16.msra.mxu0 %v3724
  %3739 = vmatprep.subr.bf16.mxu0 0
  %3740 = vmatpush1.bf16.msra.mxu0 %v3725
  %3741 = vmatprep.subr.bf16.mxu0 0
  %3742 = vmatpush1.bf16.msra.mxu0 0
  %3743 = vmatprep.subr.bf16.mxu0 0
  %3744 = vmatpush1.bf16.msra.mxu0 0
  %3745 = vmatprep.subr.bf16.mxu0 0
  %3746 = vmatpush1.bf16.msra.mxu0 0
  %3747 = vmatprep.subr.bf16.mxu0 0
  %3748 = vmatpush1.bf16.msra.mxu0 0
  %3749 = vmatprep.subr.bf16.mxu0 0
  %3750 = vmatpush1.bf16.msra.mxu0 0
  %3751 = vmatprep.subr.bf16.mxu0 0
  %3752 = vmatpush1.bf16.msra.mxu0 0
  %3753 = vmatprep.subr.bf16.mxu0 0
  %3754 = vmatpush1.bf16.msra.mxu0 0
  %3755 = vmatprep.subr.bf16.mxu0 0
  %3756 = vmatpush1.bf16.msra.mxu0 0
  %3757 = vmatprep.subr.bf16.mxu0 0
  %3758 = vmatpush1.bf16.msra.mxu0 0
  %3759 = vmatprep.subr.bf16.mxu0 0
  %3760 = vmatpush1.bf16.msra.mxu0 0
  %3761 = vmatprep.subr.bf16.mxu0 0
  %3762 = vmatpush1.bf16.msra.mxu0 0
  %3763 = vmatprep.subr.bf16.mxu0 0
  %3764 = vmatpush1.bf16.msra.mxu0 0
  %3765 = vmatprep.mubr.bf16.mxu0 0
  %3766 = vmatmul.mubr.bf16.gmra.mrb[0].mxu0 %v3731
  %v3767 = vpop.f32.mrb[0].mxu0
  %v3768 = vadd.f32 0.0, %v3767
  %v3769 = vpop.f32.mrb[0].mxu0
  %v3770 = vpop.f32.mrb[0].mxu0
  %v3771 = vpop.f32.mrb[0].mxu0
  %3772 = vdwg.mxu0
  %v3773 = vadd.f32 %v3606, %v3768
  %v3774 = vlaneseq
  %v3775 = vshrl.u32 %v3774, 7
  %v3776 = vsub.s32 0, %v3775
  %v3777 = vrot.slane %v2179, %v3776
  %v3778 = vadd.f32 %v3773, %v3777
  %v3779 = vld [vmem:[%s10] sm:$0x1]
  %v3780 = vld [vmem:[%s10 + $0x1] sm:$0x1]
  %v3781 = vsel %vm568, %v3778, 0.0
  %3782 = vadd.xlane.f32.xlu0 %v3781
  %v3783 = vpop.xlane.xlu0 %3782
  %v3784 = vmul.f32 %v3783, %v585
  %v3785 = vsub.f32 %v3778, %v3784
  %v3786 = vmul.f32 %v3785, %v3785
  %v3787 = vsel %vm568, %v3786, 0.0
  %3788 = vadd.xlane.f32.xlu0 %v3787
  %v3789 = vpop.xlane.xlu0 %3788
  %v3790 = vmul.f32 %v3789, %v585
  %v3791 = vadd.f32 %v3790, 1e-06
  %v3792 = vrsqrt.pop %v3791
  %v3793 = vmul.f32 %v3785, %v3792
  %v3794 = vlaneseq
  %v3795 = vshrl.u32 %v3794, 7
  %v3796 = vsub.s32 0, %v3795
  %v3797 = vrot.slane %v3779, %v3796
  %v3798 = vmul.f32 %v3793, %v3797
  %v3799 = vlaneseq
  %v3800 = vshrl.u32 %v3799, 7
  %v3801 = vsub.s32 0, %v3800
  %v3802 = vrot.slane %v3780, %v3801
  %v3803 = vadd.f32 %v3798, %v3802
  %v3804 = vpack.c.bf16 %v3803, %v3803
  %v3805 = vld [vmem:[%s8] sm:$0xf]
  %v3806 = vld [vmem:[%s8 + $0x4] sm:$0xf]
  %v3807 = vld [vmem:[%s8 + $0x8] sm:$0xf]
  %v3808 = vld [vmem:[%s8 + $0xc] sm:$0xf]
  %v3809 = vld [vmem:[%s8 + $0x10] sm:$0xf]
  %v3810 = vld [vmem:[%s8 + $0x14] sm:$0xf]
  %v3811 = vld [vmem:[%s8 + $0x18] sm:$0xf]
  %v3812 = vld [vmem:[%s8 + $0x1c] sm:$0xf]
  %v3817 = vunpack.c.l.b16 %v3805
  %v3818 = vunpack.c.l.b16 %v3806
  %v3819 = vunpack.c.l.b16 %v3807
  %v3820 = vunpack.c.l.b16 %v3808
  %v3821 = vpack.c.b16 %v3818, %v3817
  %v3822 = vpack.c.b16 %v3820, %v3819
  %v3826 = vsel %vm568, %v3804, 0
  %3828 = vmatprep.subr.bf16.mxu0 0
  %3829 = vmatpush1.bf16.msra.mxu0 %v3821
  %3830 = vmatprep.subr.bf16.mxu0 0
  %3831 = vmatpush1.bf16.msra.mxu0 %v3822
  %3832 = vmatprep.subr.bf16.mxu0 0
  %3833 = vmatpush1.bf16.msra.mxu0 0
  %3834 = vmatprep.subr.bf16.mxu0 0
  %3835 = vmatpush1.bf16.msra.mxu0 0
  %3836 = vmatprep.subr.bf16.mxu0 0
  %3837 = vmatpush1.bf16.msra.mxu0 0
  %3838 = vmatprep.subr.bf16.mxu0 0
  %3839 = vmatpush1.bf16.msra.mxu0 0
  %3840 = vmatprep.subr.bf16.mxu0 0
  %3841 = vmatpush1.bf16.msra.mxu0 0
  %3842 = vmatprep.subr.bf16.mxu0 0
  %3843 = vmatpush1.bf16.msra.mxu0 0
  %3844 = vmatprep.subr.bf16.mxu0 0
  %3845 = vmatpush1.bf16.msra.mxu0 0
  %3846 = vmatprep.subr.bf16.mxu0 0
  %3847 = vmatpush1.bf16.msra.mxu0 0
  %3848 = vmatprep.subr.bf16.mxu0 0
  %3849 = vmatpush1.bf16.msra.mxu0 0
  %3850 = vmatprep.subr.bf16.mxu0 0
  %3851 = vmatpush1.bf16.msra.mxu0 0
  %3852 = vmatprep.subr.bf16.mxu0 0
  %3853 = vmatpush1.bf16.msra.mxu0 0
  %3854 = vmatprep.subr.bf16.mxu0 0
  %3855 = vmatpush1.bf16.msra.mxu0 0
  %3856 = vmatprep.subr.bf16.mxu0 0
  %3857 = vmatpush1.bf16.msra.mxu0 0
  %3858 = vmatprep.subr.bf16.mxu0 0
  %3859 = vmatpush1.bf16.msra.mxu0 0
  %3860 = vmatprep.mubr.bf16.mxu0 0
  %3861 = vmatmul.mubr.bf16.gmra.mrb[0].mxu0 %v3826
  %v3862 = vpop.f32.mrb[0].mxu0
  %v3863 = vadd.f32 0.0, %v3862
  %v3864 = vpop.f32.mrb[0].mxu0
  %v3865 = vpop.f32.mrb[0].mxu0
  %v3866 = vpop.f32.mrb[0].mxu0
  %3867 = vdwg.mxu0
  %v3872 = vunpack.c.l.b16 %v3809
  %v3873 = vunpack.c.l.b16 %v3810
  %v3874 = vunpack.c.l.b16 %v3811
  %v3875 = vunpack.c.l.b16 %v3812
  %v3876 = vpack.c.b16 %v3873, %v3872
  %v3877 = vpack.c.b16 %v3875, %v3874
  %3880 = vmatprep.subr.bf16.mxu0 0
  %3881 = vmatpush1.bf16.msra.mxu0 %v3876
  %3882 = vmatprep.subr.bf16.mxu0 0
  %3883 = vmatpush1.bf16.msra.mxu0 %v3877
  %3884 = vmatprep.subr.bf16.mxu0 0
  %3885 = vmatpush1.bf16.msra.mxu0 0
  %3886 = vmatprep.subr.bf16.mxu0 0
  %3887 = vmatpush1.bf16.msra.mxu0 0
  %3888 = vmatprep.subr.bf16.mxu0 0
  %3889 = vmatpush1.bf16.msra.mxu0 0
  %3890 = vmatprep.subr.bf16.mxu0 0
  %3891 = vmatpush1.bf16.msra.mxu0 0
  %3892 = vmatprep.subr.bf16.mxu0 0
  %3893 = vmatpush1.bf16.msra.mxu0 0
  %3894 = vmatprep.subr.bf16.mxu0 0
  %3895 = vmatpush1.bf16.msra.mxu0 0
  %3896 = vmatprep.subr.bf16.mxu0 0
  %3897 = vmatpush1.bf16.msra.mxu0 0
  %3898 = vmatprep.subr.bf16.mxu0 0
  %3899 = vmatpush1.bf16.msra.mxu0 0
  %3900 = vmatprep.subr.bf16.mxu0 0
  %3901 = vmatpush1.bf16.msra.mxu0 0
  %3902 = vmatprep.subr.bf16.mxu0 0
  %3903 = vmatpush1.bf16.msra.mxu0 0
  %3904 = vmatprep.subr.bf16.mxu0 0
  %3905 = vmatpush1.bf16.msra.mxu0 0
  %3906 = vmatprep.subr.bf16.mxu0 0
  %3907 = vmatpush1.bf16.msra.mxu0 0
  %3908 = vmatprep.subr.bf16.mxu0 0
  %3909 = vmatpush1.bf16.msra.mxu0 0
  %3910 = vmatprep.subr.bf16.mxu0 0
  %3911 = vmatpush1.bf16.msra.mxu0 0
  %3912 = vmatprep.mubr.bf16.mxu0 0
  %3913 = vmatmul.mubr.bf16.gmra.mrb[0].mxu0 %v3826
  %v3914 = vpop.f32.mrb[0].mxu0
  %v3915 = vadd.f32 0.0, %v3914
  %v3916 = vpop.f32.mrb[0].mxu0
  %v3917 = vpop.f32.mrb[0].mxu0
  %v3918 = vpop.f32.mrb[0].mxu0
  %3919 = vdwg.mxu0
  %v3921 = vcombine.high %v3863, %v3863
  %v3923 = vunpack.c.l.s4 1966171168
  %v3924 = vunpack.c.0.s8 %v3923
  %v3925 = vlaneseq
  %v3926 = vshrl.u32 %v3925, 7
  %v3927 = vsub.s32 %v3924, %v3926
  %v3928 = vrot.slane %v3863, %v3927
  %v3930 = vunpack.c.l.s4 1966171168
  %v3931 = vunpack.c.0.s8 %v3930
  %v3932 = vlaneseq
  %v3933 = vshrl.u32 %v3932, 7
  %v3934 = vsub.s32 %v3931, %v3933
  %v3935 = vrot.slane %v3921, %v3934
  %v3936 = vcombine.high %v3928, %v3928
  %v3937 = vcombine.high %v3935, %v3935
  %v3939 = vunpack.c.l.s4 1966171168
  %v3940 = vunpack.c.0.s8 %v3939
  %v3941 = vlaneseq
  %v3942 = vshrl.u32 %v3941, 7
  %v3943 = vsub.s32 %v3940, %v3942
  %v3944 = vrot.slane %v3928, %v3943
  %v3946 = vunpack.c.l.s4 1966171168
  %v3947 = vunpack.c.0.s8 %v3946
  %v3948 = vlaneseq
  %v3949 = vshrl.u32 %v3948, 7
  %v3950 = vsub.s32 %v3947, %v3949
  %v3951 = vrot.slane %v3935, %v3950
  %v3953 = vunpack.c.l.s4 1966171168
  %v3954 = vunpack.c.0.s8 %v3953
  %v3955 = vlaneseq
  %v3956 = vshrl.u32 %v3955, 7
  %v3957 = vsub.s32 %v3954, %v3956
  %v3958 = vrot.slane %v3936, %v3957
  %v3960 = vunpack.c.l.s4 1966171168
  %v3961 = vunpack.c.0.s8 %v3960
  %v3962 = vlaneseq
  %v3963 = vshrl.u32 %v3962, 7
  %v3964 = vsub.s32 %v3961, %v3963
  %v3965 = vrot.slane %v3937, %v3964
  %v3966 = vcombine.high %v3944, %v3944
  %v3967 = vcombine.high %v3951, %v3951
  %v3968 = vcombine.high %v3958, %v3958
  %v3969 = vcombine.high %v3965, %v3965
  %v3970 = vlaneseq
  %v3971 = vshrl.u32 %v3970, 7
  %v3972 = vsub.s32 0, %v3971
  %v3973 = vrot.slane %v3944, %v3972
  %v3974 = vlaneseq
  %v3975 = vshrl.u32 %v3974, 7
  %v3976 = vsub.s32 0, %v3975
  %v3977 = vrot.slane %v3958, %v3976
  %v3978 = vlaneseq
  %v3979 = vshrl.u32 %v3978, 7
  %v3980 = vsub.s32 0, %v3979
  %v3981 = vrot.slane %v3966, %v3980
  %v3982 = vlaneseq
  %v3983 = vshrl.u32 %v3982, 7
  %v3984 = vsub.s32 0, %v3983
  %v3985 = vrot.slane %v3968, %v3984
  %v3986 = vlaneseq
  %v3987 = vshrl.u32 %v3986, 7
  %v3988 = vsub.s32 0, %v3987
  %v3989 = vrot.slane %v3951, %v3988
  %v3990 = vlaneseq
  %v3991 = vshrl.u32 %v3990, 7
  %v3992 = vsub.s32 0, %v3991
  %v3993 = vrot.slane %v3965, %v3992
  %v3994 = vlaneseq
  %v3995 = vshrl.u32 %v3994, 7
  %v3996 = vsub.s32 0, %v3995
  %v3997 = vrot.slane %v3967, %v3996
  %v3998 = vlaneseq
  %v3999 = vshrl.u32 %v3998, 7
  %v4000 = vsub.s32 0, %v3999
  %v4001 = vrot.slane %v3969, %v4000
  %v4010 = vadd.f32 %v3973, %v3915
  %v4011 = vadd.f32 %v3977, %v3915
  %v4012 = vadd.f32 %v3981, %v3915
  %v4013 = vadd.f32 %v3985, %v3915
  %v4014 = vadd.f32 %v3989, %v3915
  %v4015 = vadd.f32 %v3993, %v3915
  %v4016 = vadd.f32 %v3997, %v3915
  %v4017 = vadd.f32 %v4001, %v3915
  %v4018 = vld [vmem:[%s10 + $0x2] sm:$0x1]
  %v4019 = vlaneseq
  %v4020 = vshrl.u32 %v4019, 7
  %v4021 = vsub.s32 0, %v4020
  %v4022 = vrot.slane %v4018, %v4021
  %v4023 = vadd.f32 %v4010, %v4022
  %v4024 = vadd.f32 %v4011, %v4022
  %v4025 = vadd.f32 %v4012, %v4022
  %v4026 = vadd.f32 %v4013, %v4022
  %v4027 = vadd.f32 %v4014, %v4022
  %v4028 = vadd.f32 %v4015, %v4022
  %v4029 = vadd.f32 %v4016, %v4022
  %v4030 = vadd.f32 %v4017, %v4022
  %v4031 = vtanh.pop %v4023
  %v4032 = vtanh.pop %v4024
  %v4033 = vtanh.pop %v4025
  %v4034 = vtanh.pop %v4026
  %v4035 = vtanh.pop %v4027
  %v4036 = vtanh.pop %v4028
  %v4037 = vtanh.pop %v4029
  %v4038 = vtanh.pop %v4030
  %v4039 = vpack.c.bf16 %v4032, %v4031
  %v4040 = vpack.c.bf16 %v4034, %v4033
  %v4041 = vpack.c.bf16 %v4036, %v4035
  %v4042 = vpack.c.bf16 %v4038, %v4037
  %v4043 = vld [vmem:[%s9] sm:$0xf]
  %v4044 = vld [vmem:[%s9 + $0x4] sm:$0xf]
  %v4045 = vld [vmem:[%s9 + $0x8] sm:$0xf]
  %v4046 = vld [vmem:[%s9 + $0xc] sm:$0xf]
  %v4047 = vld [vmem:[%s10 + $0x3] sm:$0x1]
  %v4048 = vlaneseq
  %v4049 = vshrl.u32 %v4048, 7
  %v4050 = vsub.s32 0, %v4049
  %v4051 = vrot.slane %v4047, %v4050
  %v4056 = vunpack.c.l.b16 %v4043
  %v4057 = vunpack.c.l.b16 %v4044
  %v4058 = vunpack.c.l.b16 %v4045
  %v4059 = vunpack.c.l.b16 %v4046
  %v4060 = vpack.c.b16 %v4057, %v4056
  %v4061 = vpack.c.b16 %v4059, %v4058
  %v4065 = vsel %vm568, %v4039, 0
  %v4068 = vsel %vm568, %v4040, 0
  %v4071 = vsel %vm568, %v4041, 0
  %v4074 = vsel %vm568, %v4042, 0
  %4076 = vmatprep.subr.bf16.mxu0 0
  %4077 = vmatpush1.bf16.msra.mxu0 %v4060
  %4078 = vmatprep.subr.bf16.mxu0 0
  %4079 = vmatpush1.bf16.msra.mxu0 %v4061
  %4080 = vmatprep.subr.bf16.mxu0 0
  %4081 = vmatpush1.bf16.msra.mxu0 0
  %4082 = vmatprep.subr.bf16.mxu0 0
  %4083 = vmatpush1.bf16.msra.mxu0 0
  %4084 = vmatprep.subr.bf16.mxu0 0
  %4085 = vmatpush1.bf16.msra.mxu0 0
  %4086 = vmatprep.subr.bf16.mxu0 0
  %4087 = vmatpush1.bf16.msra.mxu0 0
  %4088 = vmatprep.subr.bf16.mxu0 0
  %4089 = vmatpush1.bf16.msra.mxu0 0
  %4090 = vmatprep.subr.bf16.mxu0 0
  %4091 = vmatpush1.bf16.msra.mxu0 0
  %4092 = vmatprep.subr.bf16.mxu0 0
  %4093 = vmatpush1.bf16.msra.mxu0 0
  %4094 = vmatprep.subr.bf16.mxu0 0
  %4095 = vmatpush1.bf16.msra.mxu0 0
  %4096 = vmatprep.subr.bf16.mxu0 0
  %4097 = vmatpush1.bf16.msra.mxu0 0
  %4098 = vmatprep.subr.bf16.mxu0 0
  %4099 = vmatpush1.bf16.msra.mxu0 0
  %4100 = vmatprep.subr.bf16.mxu0 0
  %4101 = vmatpush1.bf16.msra.mxu0 0
  %4102 = vmatprep.subr.bf16.mxu0 0
  %4103 = vmatpush1.bf16.msra.mxu0 0
  %4104 = vmatprep.subr.bf16.mxu0 0
  %4105 = vmatpush1.bf16.msra.mxu0 0
  %4106 = vmatprep.subr.bf16.mxu0 0
  %4107 = vmatpush1.bf16.msra.mxu0 0
  %4108 = vmatprep.mubr.bf16.mxu0 0
  %4109 = vmatmul.mubr.bf16.gmra.mrb[0].mxu0 %v4065
  %v4110 = vpop.f32.mrb[0].mxu0
  %v4111 = vadd.f32 %v4051, %v4110
  %v4112 = vpop.f32.mrb[0].mxu0
  %v4113 = vpop.f32.mrb[0].mxu0
  %v4114 = vadd.f32 %v4051, %v4113
  %v4115 = vpop.f32.mrb[0].mxu0
  %4116 = vmatprep.mubr.bf16.mxu0 0
  %4117 = vmatmul.mubr.bf16.gmra.mrb[0].mxu0 %v4068
  %v4118 = vpop.f32.mrb[0].mxu0
  %v4119 = vadd.f32 %v4051, %v4118
  %v4120 = vpop.f32.mrb[0].mxu0
  %v4121 = vpop.f32.mrb[0].mxu0
  %v4122 = vadd.f32 %v4051, %v4121
  %v4123 = vpop.f32.mrb[0].mxu0
  %4124 = vmatprep.mubr.bf16.mxu0 0
  %4125 = vmatmul.mubr.bf16.gmra.mrb[0].mxu0 %v4071
  %v4126 = vpop.f32.mrb[0].mxu0
  %v4127 = vadd.f32 %v4051, %v4126
  %v4128 = vpop.f32.mrb[0].mxu0
  %v4129 = vpop.f32.mrb[0].mxu0
  %v4130 = vadd.f32 %v4051, %v4129
  %v4131 = vpop.f32.mrb[0].mxu0
  %4132 = vmatprep.mubr.bf16.mxu0 0
  %4133 = vmatmul.mubr.bf16.gmra.mrb[0].mxu0 %v4074
  %v4134 = vpop.f32.mrb[0].mxu0
  %v4135 = vadd.f32 %v4051, %v4134
  %v4136 = vpop.f32.mrb[0].mxu0
  %v4137 = vpop.f32.mrb[0].mxu0
  %v4138 = vadd.f32 %v4051, %v4137
  %v4139 = vpop.f32.mrb[0].mxu0
  %4140 = vdwg.mxu0
  %4141 = vst [vmem:[%s11] sm:$0xff] %v4111
  %4142 = vst [vmem:[%s11 + $0x8] sm:$0xff] %v4114
  %4143 = vst [vmem:[%s11 + $0x10] sm:$0xff] %v4119
  %4144 = vst [vmem:[%s11 + $0x18] sm:$0xff] %v4122
  %4145 = vst [vmem:[%s11 + $0x20] sm:$0xff] %v4127
  %4146 = vst [vmem:[%s11 + $0x28] sm:$0xff] %v4130
  %4147 = vst [vmem:[%s11 + $0x30] sm:$0xff] %v4135
  %4148 = vst [vmem:[%s11 + $0x38] sm:$0xff] %v4138
  // Predicated region
  $region46: #{image_encoder_forward.1} parent=0 // pred_check
    _
  $region47: #{image_encoder_forward.1} parent=0 // pred_check_branch
    %4150 = sbr.rel (0) target = $region49
  $region48: #{image_encoder_forward.1} parent=0 // pred_region
    _
  $region49: #{image_encoder_forward.1} parent=0 // pred_fallthru
    _
  // Predicated region
  $region50: #{image_encoder_forward.1} parent=0 // pred_check
    _
  $region51: #{image_encoder_forward.1} parent=0 // pred_check_branch
    %4152 = sbr.rel (0) target = $region53
  $region52: #{image_encoder_forward.1} parent=0 // pred_region
    _
  $region53: #{image_encoder_forward.1} parent=0 // pred_fallthru
    _

</llo_original>
